<compile_context>
chip_gen: v6e
topology: v6e:2x2x1
jax: 0.10.0
libtpu: 0.0.40
codegen_flags: <defaults>
</compile_context>

<pallas_src>
import math

import numpy as np
import jax
import jax.numpy as jnp
from jax.experimental import pallas as pl
from jax.experimental.pallas import tpu as pltpu

SIGMA = 25.0
TWO_PI = 2.0 * math.pi
HIGH = jax.lax.Precision.HIGHEST  # only used in the tiny per-node kernel


# ---------------------------------------------------------------------------
# Kernel 1: per-node features (runs once over the whole graph, O(N*H*H) work).
#   init_feature = relu(x @ Wi + bi)
#   emb          = relu(sin(proj) @ We[:E/2] + cos(proj) @ We[E/2:] + be)
#   x_sigma      = rep @ emb                 (one-hot node -> graph expansion)
#   A = init @ W1s[:H] + x_sigma @ W1s[H:] + b1     (W1s = W1[:F] - W1[F:])
#   B = init @ W1n[:H] + x_sigma @ W1n[H:]          (W1n = W1[F:])
#   inv_std      = 1 / (marginal_prob_std(t_node) + 1e-7)
# ---------------------------------------------------------------------------
def feature_kernel(x_ref, t_ref, rep_ref, wf_ref, wi_ref, bi_ref,
                   wes_ref, wec_ref, be_ref,
                   w1si_ref, w1ss_ref, w1ni_ref, w1ns_ref, b1_ref,
                   a_ref, b_ref, inv_ref):
    x = x_ref[...]            # (N, 2)
    t = t_ref[...]            # (bs, 1)
    rep = rep_ref[...]        # (N, bs) one-hot node -> graph

    init_feat = jnp.maximum(
        jnp.dot(x, wi_ref[...], precision=HIGH, preferred_element_type=jnp.float32)
        + bi_ref[...], 0.0)                                                    # (N, H)

    proj = t * wf_ref[...] * TWO_PI                                            # (bs, E/2)
    emb = jnp.maximum(
        jnp.dot(jnp.sin(proj), wes_ref[...], precision=HIGH,
                preferred_element_type=jnp.float32)
        + jnp.dot(jnp.cos(proj), wec_ref[...], precision=HIGH,
                  preferred_element_type=jnp.float32)
        + be_ref[...], 0.0)                                                    # (bs, E)
    x_sigma = jnp.dot(rep, emb, precision=HIGH,
                      preferred_element_type=jnp.float32)                      # (N, E)

    a_ref[...] = (jnp.dot(init_feat, w1si_ref[...], precision=HIGH,
                          preferred_element_type=jnp.float32)
                  + jnp.dot(x_sigma, w1ss_ref[...], precision=HIGH,
                            preferred_element_type=jnp.float32)
                  + b1_ref[...])
    b_ref[...] = (jnp.dot(init_feat, w1ni_ref[...], precision=HIGH,
                          preferred_element_type=jnp.float32)
                  + jnp.dot(x_sigma, w1ns_ref[...], precision=HIGH,
                            preferred_element_type=jnp.float32))

    t_node = jnp.dot(rep, t, precision=HIGH, preferred_element_type=jnp.float32)  # (N, 1)
    log_s = math.log(SIGMA)
    std = jnp.sqrt((jnp.exp(2.0 * t_node * log_s) - 1.0) / (2.0 * log_s))
    inv_ref[...] = 1.0 / (std + 1e-7)


# ---------------------------------------------------------------------------
# Kernel 2: EdgeConv message + masked max aggregation + divide by std,
# vectorized over a tile of T target nodes per grid step:
#   h      = relu(A_tile[:,None,:] + B[None,:,:])        (T, N, H)
#   m      = h.reshape(T*N, H) @ W2 + b2                 (T*N, 2)  one MXU call
#   masked = m + bias_tile   (0 where edge, -1e30 else)  (T*N, 2)
#   agg    = max over sources of masked                  (T, 2)
#   out    = agg * inv_std_tile                          single batched store
# ---------------------------------------------------------------------------
def edgeconv_kernel(a_ref, b_ref, bias_ref, w2_ref, b2_ref, inv_ref, o_ref):
    A = a_ref[...]                        # (T, H)   target tile
    B = b_ref[...]                        # (N, H)   all sources (resident)
    T = A.shape[0]
    N, H = B.shape

    h = jnp.maximum(A[:, None, :] + B[None, :, :], 0.0)            # (T, N, H)
    m = (jnp.dot(h.reshape(T * N, H), w2_ref[...],
                 preferred_element_type=jnp.float32)
         + b2_ref[...])                                            # (T*N, 2)
    masked = (m + bias_ref[...]).reshape(T, N, 2)                  # additive mask
    agg = jnp.max(masked, axis=1)                                  # (T, 2)
    # TODO(synk): isolated targets (no incoming edge) are emitted as 0 here;
    # PyG max-aggregation fill semantics can differ by torch_scatter version.
    o_ref[...] = jnp.where(agg > -1e29, agg * inv_ref[...], 0.0)


# ---------------------------------------------------------------------------
# Wrapper
# ---------------------------------------------------------------------------
def score_model_gnn_mini(x, t, edge_index, params, num_nodes, tile=None):
    N = x.shape[0]
    bs = t.shape[0]
    H = params["Wi"].shape[1]
    E = params["We"].shape[1]
    F_dim = H + E
    assert N == bs * num_nodes and N % 8 == 0
    if tile is None:
        tile = min(N, 128)
    assert N % tile == 0 and (tile % 8 == 0 or tile == N)

    # ---- glue built once outside the kernels --------------------------------
    # one-hot node -> graph expansion matrix
    rep = (jnp.arange(N)[:, None] // num_nodes == jnp.arange(bs)[None, :]).astype(jnp.float32)
    # additive edge mask, flattened target-major so the (tile*N, 2) block for
    # target tile i is exactly rows [i*tile*N, (i+1)*tile*N):
    #   bias[tgt*N + src, :] = 0 if edge src->tgt else -1e30
    adj = jnp.zeros((N, N), jnp.float32).at[edge_index[1], edge_index[0]].set(1.0)
    bias_flat = jnp.broadcast_to(((adj - 1.0) * 1e30).reshape(N * N, 1), (N * N, 2))

    # EdgeConv layer-1 weight split: [x_i, x_j - x_i] @ W1 == x_i@(W1a-W1b) + x_j@W1b
    W1_self = params["W1"][:F_dim] - params["W1"][F_dim:]
    W1_nbr = params["W1"][F_dim:]
    W1s_init, W1s_sig = W1_self[:H], W1_self[H:]
    W1n_init, W1n_sig = W1_nbr[:H], W1_nbr[H:]
    e2 = E // 2
    We_sin, We_cos = params["We"][:e2], params["We"][e2:]

    def full(a):
        return pl.BlockSpec(a.shape, lambda i: (0, 0))

    A, Bm, inv_std = pl.pallas_call(
        feature_kernel,
        grid=(1,),
        in_specs=[full(x), full(t), full(rep), full(params["Wf"]), full(params["Wi"]),
                  full(params["bi"]), full(We_sin), full(We_cos), full(params["be"]),
                  full(W1s_init), full(W1s_sig), full(W1n_init), full(W1n_sig),
                  full(params["b1"])],
        out_specs=(pl.BlockSpec((N, H), lambda i: (0, 0)),
                   pl.BlockSpec((N, H), lambda i: (0, 0)),
                   pl.BlockSpec((N, 1), lambda i: (0, 0))),
        out_shape=(jax.ShapeDtypeStruct((N, H), jnp.float32),
                   jax.ShapeDtypeStruct((N, H), jnp.float32),
                   jax.ShapeDtypeStruct((N, 1), jnp.float32)),
        compiler_params=pltpu.CompilerParams(dimension_semantics=("arbitrary",)),
    )(x, t, rep, params["Wf"], params["Wi"], params["bi"], We_sin, We_cos, params["be"],
      W1s_init, W1s_sig, W1n_init, W1n_sig, params["b1"])

    out = pl.pallas_call(
        edgeconv_kernel,
        grid=(N // tile,),
        in_specs=[pl.BlockSpec((tile, H), lambda i: (i, 0)),        # A tile (targets)
                  pl.BlockSpec((N, H), lambda i: (0, 0)),           # B (all sources)
                  pl.BlockSpec((tile * N, 2), lambda i: (i, 0)),    # additive mask tile
                  pl.BlockSpec((H, 2), lambda i: (0, 0)),
                  pl.BlockSpec((1, 2), lambda i: (0, 0)),
                  pl.BlockSpec((tile, 1), lambda i: (i, 0))],
        out_specs=pl.BlockSpec((tile, 2), lambda i: (i, 0)),
        out_shape=jax.ShapeDtypeStruct((N, 2), jnp.float32),
        compiler_params=pltpu.CompilerParams(dimension_semantics=("parallel",)),
    )(A, Bm, bias_flat, params["W2"], params["b2"], inv_std)
    return out


# ---------------------------------------------------------------------------
# Deterministic synthetic parameters (shapes from ScoreModelGNNMini.__init__)
# ---------------------------------------------------------------------------
def make_params(key, hidden_dim=32, embed_dim=32):
    ks = jax.random.split(key, 9)
    e2 = embed_dim // 2
    f = hidden_dim + embed_dim
    s = 0.1
    Wf = jax.random.normal(ks[0], (1, e2), jnp.float32) * 30.0   # GaussianFourierProjection.W
    Wi = jax.random.normal(ks[1], (2, hidden_dim), jnp.float32) * s
    bi = jax.random.normal(ks[2], (1, hidden_dim), jnp.float32) * s
    We = jax.random.normal(ks[3], (embed_dim, embed_dim), jnp.float32) * s
    be = jax.random.normal(ks[4], (1, embed_dim), jnp.float32) * s
    W1 = jax.random.normal(ks[5], (2 * f, hidden_dim), jnp.float32) * s
    b1 = jax.random.normal(ks[6], (1, hidden_dim), jnp.float32) * s
    W2 = jax.random.normal(ks[7], (hidden_dim, 2), jnp.float32) * s
    b2 = jax.random.normal(ks[8], (1, 2), jnp.float32) * s
    return {"Wf": Wf, "Wi": Wi, "bi": bi, "We": We, "be": be,
            "W1": W1, "b1": b1, "W2": W2, "b2": b2}


# ---------------------------------------------------------------------------
# Independent float64 numpy reference (mirrors the PyTorch forward exactly)
# ---------------------------------------------------------------------------
def reference_forward_np(x, t, edge_index, params, num_nodes):
    x = x.astype(np.float64)
    t = t.astype(np.float64)
    p = {k: np.asarray(v, np.float64) for k, v in params.items()}

    init_feat = np.maximum(x @ p["Wi"] + p["bi"], 0.0)
    proj = t * p["Wf"] * TWO_PI
    fourier = np.concatenate([np.sin(proj), np.cos(proj)], axis=-1)
    emb = np.maximum(fourier @ p["We"] + p["be"], 0.0)
    x_sigma = np.repeat(emb, num_nodes, axis=0)
    feat = np.concatenate([init_feat, x_sigma], axis=-1)

    src, tgt = edge_index[0], edge_index[1]
    msg_in = np.concatenate([feat[tgt], feat[src] - feat[tgt]], axis=-1)
    h = np.maximum(msg_in @ p["W1"] + p["b1"], 0.0)
    m = h @ p["W2"] + p["b2"]

    N = x.shape[0]
    agg = np.zeros((N, 2))
    has = np.zeros(N, dtype=bool)
    for e in range(src.shape[0]):
        i = int(tgt[e])
        agg[i] = m[e] if not has[i] else np.maximum(agg[i], m[e])
        has[i] = True

    t_node = np.repeat(t, num_nodes, axis=0)
    log_s = math.log(SIGMA)
    std = np.sqrt((np.exp(2.0 * t_node * log_s) - 1.0) / (2.0 * log_s))
    return agg / (std + 1e-7)


if __name__ == "__main__":
    bs, num_nodes, hidden_dim, embed_dim = 2, 16, 32, 32
    N = bs * num_nodes

    key = jax.random.PRNGKey(0)
    k_x, k_t, k_p = jax.random.split(key, 3)
    params = make_params(k_p, hidden_dim, embed_dim)
    x = jax.random.normal(k_x, (N, 2), jnp.float32)                 # state_inp.x
    t = jax.random.uniform(k_t, (bs, 1), jnp.float32, minval=0.1, maxval=1.0)

    # fully-connected graph per sample (no self loops): edge (src=j, tgt=i)
    src, tgt = [], []
    for b in range(bs):
        for i in range(num_nodes):
            for j in range(num_nodes):
                if i != j:
                    src.append(b * num_nodes + j)
                    tgt.append(b * num_nodes + i)
    edge_index = jnp.array([src, tgt], dtype=jnp.int32)             # (2, E)

    # tile=16 -> grid=(2,) so the target-tiled BlockSpec index maps are exercised
    out = score_model_gnn_mini(x, t, edge_index, params, num_nodes, tile=16)
    out = jax.block_until_ready(out)

    ref = reference_forward_np(np.asarray(x), np.asarray(t), np.asarray(edge_index),
                               params, num_nodes)
    np.testing.assert_allclose(np.asarray(out), ref, rtol=5e-3, atol=5e-3)
    print("KERNEL_OK")
</pallas_src>

<mosaic_0001>
module attributes {stable_mosaic.version = 11 : i64} {
  func.func @feature_kernel(%arg0: i32, %arg1: memref<32x2xf32, #tpu.memory_space<vmem>>, %arg2: memref<2x1xf32, #tpu.memory_space<vmem>>, %arg3: memref<32x2xf32, #tpu.memory_space<vmem>>, %arg4: memref<1x16xf32, #tpu.memory_space<vmem>>, %arg5: memref<2x32xf32, #tpu.memory_space<vmem>>, %arg6: memref<1x32xf32, #tpu.memory_space<vmem>>, %arg7: memref<16x32xf32, #tpu.memory_space<vmem>>, %arg8: memref<16x32xf32, #tpu.memory_space<vmem>>, %arg9: memref<1x32xf32, #tpu.memory_space<vmem>>, %arg10: memref<32x32xf32, #tpu.memory_space<vmem>>, %arg11: memref<32x32xf32, #tpu.memory_space<vmem>>, %arg12: memref<32x32xf32, #tpu.memory_space<vmem>>, %arg13: memref<32x32xf32, #tpu.memory_space<vmem>>, %arg14: memref<1x32xf32, #tpu.memory_space<vmem>>, %arg15: memref<32x32xf32, #tpu.memory_space<vmem>>, %arg16: memref<32x32xf32, #tpu.memory_space<vmem>>, %arg17: memref<32x1xf32, #tpu.memory_space<vmem>>) attributes {dimension_semantics = [#tpu.dimension_semantics<arbitrary>], iteration_bounds = array<i64: 1>, scalar_prefetch = 0 : i64, scratch_operands = 0 : i64, tpu.core_type = #tpu.core_type<tc>, window_params = [{pipeline_mode = #tpu.pipeline_mode<synchronous>, transform_indices = @transform_0, window_bounds = array<i64: 32, 2>}, {pipeline_mode = #tpu.pipeline_mode<synchronous>, transform_indices = @transform_1, window_bounds = array<i64: 2, 1>}, {pipeline_mode = #tpu.pipeline_mode<synchronous>, transform_indices = @transform_2, window_bounds = array<i64: 32, 2>}, {pipeline_mode = #tpu.pipeline_mode<synchronous>, transform_indices = @transform_3, window_bounds = array<i64: 1, 16>}, {pipeline_mode = #tpu.pipeline_mode<synchronous>, transform_indices = @transform_4, window_bounds = array<i64: 2, 32>}, {pipeline_mode = #tpu.pipeline_mode<synchronous>, transform_indices = @transform_5, window_bounds = array<i64: 1, 32>}, {pipeline_mode = #tpu.pipeline_mode<synchronous>, transform_indices = @transform_6, window_bounds = array<i64: 16, 32>}, {pipeline_mode = #tpu.pipeline_mode<synchronous>, transform_indices = @transform_7, window_bounds = array<i64: 16, 32>}, {pipeline_mode = #tpu.pipeline_mode<synchronous>, transform_indices = @transform_8, window_bounds = array<i64: 1, 32>}, {pipeline_mode = #tpu.pipeline_mode<synchronous>, transform_indices = @transform_9, window_bounds = array<i64: 32, 32>}, {pipeline_mode = #tpu.pipeline_mode<synchronous>, transform_indices = @transform_10, window_bounds = array<i64: 32, 32>}, {pipeline_mode = #tpu.pipeline_mode<synchronous>, transform_indices = @transform_11, window_bounds = array<i64: 32, 32>}, {pipeline_mode = #tpu.pipeline_mode<synchronous>, transform_indices = @transform_12, window_bounds = array<i64: 32, 32>}, {pipeline_mode = #tpu.pipeline_mode<synchronous>, transform_indices = @transform_13, window_bounds = array<i64: 1, 32>}, {pipeline_mode = #tpu.pipeline_mode<synchronous>, transform_indices = @transform_14, window_bounds = array<i64: 32, 32>}, {pipeline_mode = #tpu.pipeline_mode<synchronous>, transform_indices = @transform_15, window_bounds = array<i64: 32, 32>}, {pipeline_mode = #tpu.pipeline_mode<synchronous>, transform_indices = @transform_16, window_bounds = array<i64: 32, 1>}]} {
    %c0 = arith.constant 0 : index
    %c0_0 = arith.constant 0 : index
    %0 = vector.load %arg1[%c0, %c0_0] : memref<32x2xf32, #tpu.memory_space<vmem>>, vector<32x2xf32>
    %c0_1 = arith.constant 0 : index
    %c0_2 = arith.constant 0 : index
    %1 = vector.load %arg2[%c0_1, %c0_2] : memref<2x1xf32, #tpu.memory_space<vmem>>, vector<2x1xf32>
    %c0_3 = arith.constant 0 : index
    %c0_4 = arith.constant 0 : index
    %2 = vector.load %arg3[%c0_3, %c0_4] : memref<32x2xf32, #tpu.memory_space<vmem>>, vector<32x2xf32>
    %c0_5 = arith.constant 0 : index
    %c0_6 = arith.constant 0 : index
    %3 = vector.load %arg5[%c0_5, %c0_6] : memref<2x32xf32, #tpu.memory_space<vmem>>, vector<2x32xf32>
    %cst = arith.constant dense<0.000000e+00> : vector<32x32xf32>
    %4 = tpu.matmul %0, %3, %cst {dimension_numbers = #tpu.dot_dimension_numbers<[1], [0], [0], [1], [0, 0, 1, 1], [], []>, precision = #tpu.contract_precision<fp32>} : vector<32x2xf32>, vector<2x32xf32>, vector<32x32xf32> -> vector<32x32xf32>
    %c0_7 = arith.constant 0 : index
    %c0_8 = arith.constant 0 : index
    %5 = vector.load %arg6[%c0_7, %c0_8] : memref<1x32xf32, #tpu.memory_space<vmem>>, vector<1x32xf32>
    %6 = vector.broadcast %5 : vector<1x32xf32> to vector<32x32xf32>
    %7 = arith.addf %4, %6 : vector<32x32xf32>
    %cst_9 = arith.constant 0.000000e+00 : f32
    %8 = vector.broadcast %cst_9 : f32 to vector<32x32xf32>
    %9 = arith.maximumf %7, %8 : vector<32x32xf32>
    %c0_10 = arith.constant 0 : index
    %c0_11 = arith.constant 0 : index
    %10 = vector.load %arg4[%c0_10, %c0_11] : memref<1x16xf32, #tpu.memory_space<vmem>>, vector<1x16xf32>
    %11 = vector.broadcast %1 : vector<2x1xf32> to vector<2x16xf32>
    %12 = vector.broadcast %10 : vector<1x16xf32> to vector<2x16xf32>
    %13 = arith.mulf %11, %12 : vector<2x16xf32>
    %cst_12 = arith.constant 6.28318548 : f32
    %14 = vector.broadcast %cst_12 : f32 to vector<2x16xf32>
    %15 = arith.mulf %13, %14 : vector<2x16xf32>
    %16 = math.sin %15 : vector<2x16xf32>
    %c0_13 = arith.constant 0 : index
    %c0_14 = arith.constant 0 : index
    %17 = vector.load %arg7[%c0_13, %c0_14] : memref<16x32xf32, #tpu.memory_space<vmem>>, vector<16x32xf32>
    %cst_15 = arith.constant dense<0.000000e+00> : vector<2x32xf32>
    %18 = tpu.matmul %16, %17, %cst_15 {dimension_numbers = #tpu.dot_dimension_numbers<[1], [0], [0], [1], [0, 0, 1, 1], [], []>, precision = #tpu.contract_precision<fp32>} : vector<2x16xf32>, vector<16x32xf32>, vector<2x32xf32> -> vector<2x32xf32>
    %19 = math.cos %15 : vector<2x16xf32>
    %c0_16 = arith.constant 0 : index
    %c0_17 = arith.constant 0 : index
    %20 = vector.load %arg8[%c0_16, %c0_17] : memref<16x32xf32, #tpu.memory_space<vmem>>, vector<16x32xf32>
    %cst_18 = arith.constant dense<0.000000e+00> : vector<2x32xf32>
    %21 = tpu.matmul %19, %20, %cst_18 {dimension_numbers = #tpu.dot_dimension_numbers<[1], [0], [0], [1], [0, 0, 1, 1], [], []>, precision = #tpu.contract_precision<fp32>} : vector<2x16xf32>, vector<16x32xf32>, vector<2x32xf32> -> vector<2x32xf32>
    %22 = arith.addf %18, %21 : vector<2x32xf32>
    %c0_19 = arith.constant 0 : index
    %c0_20 = arith.constant 0 : index
    %23 = vector.load %arg9[%c0_19, %c0_20] : memref<1x32xf32, #tpu.memory_space<vmem>>, vector<1x32xf32>
    %24 = vector.broadcast %23 : vector<1x32xf32> to vector<2x32xf32>
    %25 = arith.addf %22, %24 : vector<2x32xf32>
    %cst_21 = arith.constant 0.000000e+00 : f32
    %26 = vector.broadcast %cst_21 : f32 to vector<2x32xf32>
    %27 = arith.maximumf %25, %26 : vector<2x32xf32>
    %cst_22 = arith.constant dense<0.000000e+00> : vector<32x32xf32>
    %28 = tpu.matmul %2, %27, %cst_22 {dimension_numbers = #tpu.dot_dimension_numbers<[1], [0], [0], [1], [0, 0, 1, 1], [], []>, precision = #tpu.contract_precision<fp32>} : vector<32x2xf32>, vector<2x32xf32>, vector<32x32xf32> -> vector<32x32xf32>
    %c0_23 = arith.constant 0 : index
    %c0_24 = arith.constant 0 : index
    %29 = vector.load %arg10[%c0_23, %c0_24] : memref<32x32xf32, #tpu.memory_space<vmem>>, vector<32x32xf32>
    %cst_25 = arith.constant dense<0.000000e+00> : vector<32x32xf32>
    %30 = tpu.matmul %9, %29, %cst_25 {dimension_numbers = #tpu.dot_dimension_numbers<[1], [0], [0], [1], [0, 0, 1, 1], [], []>, precision = #tpu.contract_precision<fp32>} : vector<32x32xf32>, vector<32x32xf32>, vector<32x32xf32> -> vector<32x32xf32>
    %c0_26 = arith.constant 0 : index
    %c0_27 = arith.constant 0 : index
    %31 = vector.load %arg11[%c0_26, %c0_27] : memref<32x32xf32, #tpu.memory_space<vmem>>, vector<32x32xf32>
    %cst_28 = arith.constant dense<0.000000e+00> : vector<32x32xf32>
    %32 = tpu.matmul %28, %31, %cst_28 {dimension_numbers = #tpu.dot_dimension_numbers<[1], [0], [0], [1], [0, 0, 1, 1], [], []>, precision = #tpu.contract_precision<fp32>} : vector<32x32xf32>, vector<32x32xf32>, vector<32x32xf32> -> vector<32x32xf32>
    %33 = arith.addf %30, %32 : vector<32x32xf32>
    %c0_29 = arith.constant 0 : index
    %c0_30 = arith.constant 0 : index
    %34 = vector.load %arg14[%c0_29, %c0_30] : memref<1x32xf32, #tpu.memory_space<vmem>>, vector<1x32xf32>
    %35 = vector.broadcast %34 : vector<1x32xf32> to vector<32x32xf32>
    %36 = arith.addf %33, %35 : vector<32x32xf32>
    %c0_31 = arith.constant 0 : index
    %c0_32 = arith.constant 0 : index
    %37 = vector.load %arg15[%c0_31, %c0_32] : memref<32x32xf32, #tpu.memory_space<vmem>>, vector<32x32xf32>
    tpu.vector_store %arg15[%c0_31, %c0_32], %36 {strides = array<i32>} : memref<32x32xf32, #tpu.memory_space<vmem>>, vector<32x32xf32>,
    %c0_33 = arith.constant 0 : index
    %c0_34 = arith.constant 0 : index
    %38 = vector.load %arg12[%c0_33, %c0_34] : memref<32x32xf32, #tpu.memory_space<vmem>>, vector<32x32xf32>
    %cst_35 = arith.constant dense<0.000000e+00> : vector<32x32xf32>
    %39 = tpu.matmul %9, %38, %cst_35 {dimension_numbers = #tpu.dot_dimension_numbers<[1], [0], [0], [1], [0, 0, 1, 1], [], []>, precision = #tpu.contract_precision<fp32>} : vector<32x32xf32>, vector<32x32xf32>, vector<32x32xf32> -> vector<32x32xf32>
    %c0_36 = arith.constant 0 : index
    %c0_37 = arith.constant 0 : index
    %40 = vector.load %arg13[%c0_36, %c0_37] : memref<32x32xf32, #tpu.memory_space<vmem>>, vector<32x32xf32>
    %cst_38 = arith.constant dense<0.000000e+00> : vector<32x32xf32>
    %41 = tpu.matmul %28, %40, %cst_38 {dimension_numbers = #tpu.dot_dimension_numbers<[1], [0], [0], [1], [0, 0, 1, 1], [], []>, precision = #tpu.contract_precision<fp32>} : vector<32x32xf32>, vector<32x32xf32>, vector<32x32xf32> -> vector<32x32xf32>
    %42 = arith.addf %39, %41 : vector<32x32xf32>
    %c0_39 = arith.constant 0 : index
    %c0_40 = arith.constant 0 : index
    %43 = vector.load %arg16[%c0_39, %c0_40] : memref<32x32xf32, #tpu.memory_space<vmem>>, vector<32x32xf32>
    tpu.vector_store %arg16[%c0_39, %c0_40], %42 {strides = array<i32>} : memref<32x32xf32, #tpu.memory_space<vmem>>, vector<32x32xf32>,
    %cst_41 = arith.constant dense<0.000000e+00> : vector<32x1xf32>
    %44 = tpu.matmul %2, %1, %cst_41 {dimension_numbers = #tpu.dot_dimension_numbers<[1], [0], [0], [1], [0, 0, 1, 1], [], []>, precision = #tpu.contract_precision<fp32>} : vector<32x2xf32>, vector<2x1xf32>, vector<32x1xf32> -> vector<32x1xf32>
    %cst_42 = arith.constant 2.000000e+00 : f32
    %45 = vector.broadcast %cst_42 : f32 to vector<32x1xf32>
    %46 = arith.mulf %45, %44 : vector<32x1xf32>
    %cst_43 = arith.constant 3.21887589 : f32
    %47 = vector.broadcast %cst_43 : f32 to vector<32x1xf32>
    %48 = arith.mulf %46, %47 : vector<32x1xf32>
    %49 = math.exp %48 : vector<32x1xf32>
    %cst_44 = arith.constant 1.000000e+00 : f32
    %50 = vector.broadcast %cst_44 : f32 to vector<32x1xf32>
    %51 = arith.subf %49, %50 : vector<32x1xf32>
    %cst_45 = arith.constant 6.43775177 : f32
    %52 = vector.broadcast %cst_45 : f32 to vector<32x1xf32>
    %53 = arith.divf %51, %52 : vector<32x1xf32>
    %54 = math.sqrt %53 : vector<32x1xf32>
    %cst_46 = arith.constant 1.000000e-07 : f32
    %55 = vector.broadcast %cst_46 : f32 to vector<32x1xf32>
    %56 = arith.addf %54, %55 : vector<32x1xf32>
    %cst_47 = arith.constant 1.000000e+00 : f32
    %57 = vector.broadcast %cst_47 : f32 to vector<32x1xf32>
    %58 = arith.divf %57, %56 : vector<32x1xf32>
    %c0_48 = arith.constant 0 : index
    %c0_49 = arith.constant 0 : index
    %59 = vector.load %arg17[%c0_48, %c0_49] : memref<32x1xf32, #tpu.memory_space<vmem>>, vector<32x1xf32>
    tpu.vector_store %arg17[%c0_48, %c0_49], %58 {strides = array<i32>} : memref<32x1xf32, #tpu.memory_space<vmem>>, vector<32x1xf32>,
    return
  }
  func.func @transform_0(%arg0: i32) -> (i32, i32) {
    %c0_i32 = arith.constant 0 : i32
    %c0_i32_0 = arith.constant 0 : i32
    %c0_i32_1 = arith.constant 0 : i32
    return %c0_i32, %c0_i32_0 : i32, i32
  }
  func.func @transform_1(%arg0: i32) -> (i32, i32) {
    %c0_i32 = arith.constant 0 : i32
    %c0_i32_0 = arith.constant 0 : i32
    %c0_i32_1 = arith.constant 0 : i32
    return %c0_i32, %c0_i32_0 : i32, i32
  }
  func.func @transform_2(%arg0: i32) -> (i32, i32) {
    %c0_i32 = arith.constant 0 : i32
    %c0_i32_0 = arith.constant 0 : i32
    %c0_i32_1 = arith.constant 0 : i32
    return %c0_i32, %c0_i32_0 : i32, i32
  }
  func.func @transform_3(%arg0: i32) -> (i32, i32) {
    %c0_i32 = arith.constant 0 : i32
    %c0_i32_0 = arith.constant 0 : i32
    %c0_i32_1 = arith.constant 0 : i32
    return %c0_i32, %c0_i32_0 : i32, i32
  }
  func.func @transform_4(%arg0: i32) -> (i32, i32) {
    %c0_i32 = arith.constant 0 : i32
    %c0_i32_0 = arith.constant 0 : i32
    %c0_i32_1 = arith.constant 0 : i32
    return %c0_i32, %c0_i32_0 : i32, i32
  }
  func.func @transform_5(%arg0: i32) -> (i32, i32) {
    %c0_i32 = arith.constant 0 : i32
    %c0_i32_0 = arith.constant 0 : i32
    %c0_i32_1 = arith.constant 0 : i32
    return %c0_i32, %c0_i32_0 : i32, i32
  }
  func.func @transform_6(%arg0: i32) -> (i32, i32) {
    %c0_i32 = arith.constant 0 : i32
    %c0_i32_0 = arith.constant 0 : i32
    %c0_i32_1 = arith.constant 0 : i32
    return %c0_i32, %c0_i32_0 : i32, i32
  }
  func.func @transform_7(%arg0: i32) -> (i32, i32) {
    %c0_i32 = arith.constant 0 : i32
    %c0_i32_0 = arith.constant 0 : i32
    %c0_i32_1 = arith.constant 0 : i32
    return %c0_i32, %c0_i32_0 : i32, i32
  }
  func.func @transform_8(%arg0: i32) -> (i32, i32) {
    %c0_i32 = arith.constant 0 : i32
    %c0_i32_0 = arith.constant 0 : i32
    %c0_i32_1 = arith.constant 0 : i32
    return %c0_i32, %c0_i32_0 : i32, i32
  }
  func.func @transform_9(%arg0: i32) -> (i32, i32) {
    %c0_i32 = arith.constant 0 : i32
    %c0_i32_0 = arith.constant 0 : i32
    %c0_i32_1 = arith.constant 0 : i32
    return %c0_i32, %c0_i32_0 : i32, i32
  }
  func.func @transform_10(%arg0: i32) -> (i32, i32) {
    %c0_i32 = arith.constant 0 : i32
    %c0_i32_0 = arith.constant 0 : i32
    %c0_i32_1 = arith.constant 0 : i32
    return %c0_i32, %c0_i32_0 : i32, i32
  }
  func.func @transform_11(%arg0: i32) -> (i32, i32) {
    %c0_i32 = arith.constant 0 : i32
    %c0_i32_0 = arith.constant 0 : i32
    %c0_i32_1 = arith.constant 0 : i32
    return %c0_i32, %c0_i32_0 : i32, i32
  }
  func.func @transform_12(%arg0: i32) -> (i32, i32) {
    %c0_i32 = arith.constant 0 : i32
    %c0_i32_0 = arith.constant 0 : i32
    %c0_i32_1 = arith.constant 0 : i32
    return %c0_i32, %c0_i32_0 : i32, i32
  }
  func.func @transform_13(%arg0: i32) -> (i32, i32) {
    %c0_i32 = arith.constant 0 : i32
    %c0_i32_0 = arith.constant 0 : i32
    %c0_i32_1 = arith.constant 0 : i32
    return %c0_i32, %c0_i32_0 : i32, i32
  }
  func.func @transform_14(%arg0: i32) -> (i32, i32) {
    %c0_i32 = arith.constant 0 : i32
    %c0_i32_0 = arith.constant 0 : i32
    %c0_i32_1 = arith.constant 0 : i32
    return %c0_i32, %c0_i32_0 : i32, i32
  }
  func.func @transform_15(%arg0: i32) -> (i32, i32) {
    %c0_i32 = arith.constant 0 : i32
    %c0_i32_0 = arith.constant 0 : i32
    %c0_i32_1 = arith.constant 0 : i32
    return %c0_i32, %c0_i32_0 : i32, i32
  }
  func.func @transform_16(%arg0: i32) -> (i32, i32) {
    %c0_i32 = arith.constant 0 : i32
    %c0_i32_0 = arith.constant 0 : i32
    %c0_i32_1 = arith.constant 0 : i32
    return %c0_i32, %c0_i32_0 : i32, i32
  }
}

</mosaic_0001>

<llo_original>
// kernel: tpu_custom_call.1
$region0: #{tpu_custom_call.1}
  #allocation0 [shape = 'u32[]', space=smem, size = 0x4, offset = 0x4, fixed_abs, tag = 'smem constant byte address 0x4 - core index']
  #allocation1 [shape = 'u32[144,128]{1,0:T(1,128)}', space=vmem, size = 0x12000, scoped, tag = 'internal scratch']
  %s0 = inlined_call_operand.vmem [shape: f32[32,2], index: 0, kind: input, shape index: {}]
  %s1 = inlined_call_operand.vmem [shape: f32[2,1], index: 1, kind: input, shape index: {}]
  %s2 = inlined_call_operand.vmem [shape: f32[32,2], index: 2, kind: input, shape index: {}]
  %s3 = inlined_call_operand.hbm [shape: f32[1,16], index: 3, kind: input, shape index: {}]
  %s4 = inlined_call_operand.hbm [shape: f32[2,32], index: 4, kind: input, shape index: {}]
  %s5 = inlined_call_operand.hbm [shape: f32[1,32], index: 5, kind: input, shape index: {}]
  %s6 = inlined_call_operand.vmem [shape: f32[16,32], index: 6, kind: input, shape index: {}]
  %s7 = inlined_call_operand.hbm [shape: f32[16,32], index: 7, kind: input, shape index: {}]
  %s8 = inlined_call_operand.vmem [shape: f32[1,32], index: 8, kind: input, shape index: {}]
  %s9 = inlined_call_operand.vmem [shape: f32[32,32], index: 9, kind: input, shape index: {}]
  %s10 = inlined_call_operand.vmem [shape: f32[32,32], index: 10, kind: input, shape index: {}]
  %s11 = inlined_call_operand.hbm [shape: f32[32,32], index: 11, kind: input, shape index: {}]
  %s12 = inlined_call_operand.hbm [shape: f32[32,32], index: 12, kind: input, shape index: {}]
  %s13 = inlined_call_operand.vmem [shape: f32[1,32], index: 13, kind: input, shape index: {}]
  %s14 = inlined_call_operand.hbm [shape: f32[32,32], index: 14, kind: output, shape index: {0}]
  %s15 = inlined_call_operand.hbm [shape: f32[32,32], index: 15, kind: output, shape index: {1}]
  %s16 = inlined_call_operand.vmem [shape: f32[32,1], index: 16, kind: output, shape index: {2}]
  %17 = xla_tuple %s14, %s15, %s16
  %s18 = sld [smem:[#allocation0]]
  $region106: #{tpu_custom_call.1} parent=0
    _
  %s20 = ssub.s32 1, %s18
  %s21 = scalar_select 0, %s20, %s18
  $region1: #{tpu_custom_call.1} parent=0
    #allocation2 [shape = 'u8[512]{0}', space=vmem, size = 0x400, scoped, tag = 'input window, operand 3, single buffered']
    #allocation3 [shape = 's32[1]{0}', space=sflag, size = 0x4, scoped, tag = 'scoped memory for tpu_custom_call.1']
    #allocation4 [shape = 's32[1]{0}', space=sflag, size = 0x4, scoped, tag = 'scoped memory for tpu_custom_call.1']
    #allocation5 [shape = 'u8[1024]{0}', space=vmem, size = 0x400, scoped, tag = 'input window, operand 4, single buffered']
    #allocation6 [shape = 's32[1]{0}', space=sflag, size = 0x4, scoped, tag = 'scoped memory for tpu_custom_call.1']
    #allocation7 [shape = 'u8[512]{0}', space=vmem, size = 0x400, scoped, tag = 'input window, operand 5, single buffered']
    #allocation8 [shape = 'u8[8192]{0}', space=vmem, size = 0x2000, scoped, tag = 'input window, operand 7, single buffered']
    #allocation9 [shape = 's32[1]{0}', space=sflag, size = 0x4, scoped, tag = 'scoped memory for tpu_custom_call.1']
    #allocation10 [shape = 'u8[16384]{0}', space=vmem, size = 0x4000, scoped, tag = 'input window, operand 11, single buffered']
    #allocation11 [shape = 'u8[16384]{0}', space=vmem, size = 0x4000, scoped, tag = 'input window, operand 12, single buffered']
    #allocation12 [shape = 's32[1]{0}', space=sflag, size = 0x4, scoped, tag = 'scoped memory for tpu_custom_call.1']
    #allocation13 [shape = 'u8[16384]{0}', space=vmem, size = 0x4000, scoped, tag = 'output window, operand 0, single buffered']
    #allocation14 [shape = 'u8[16384]{0}', space=vmem, size = 0x4000, scoped, tag = 'output window, operand 1, single buffered']
    #allocation15 [shape = 's32[1]{0}', space=sflag, size = 0x4, scoped, tag = 'scoped memory for tpu_custom_call.1']
    %22 = vsyncpa [#allocation3], 0
    %23 = vsyncpa [#allocation6], 0
    %24 = vsyncpa [#allocation9], 0
    %25 = vsyncpa [#allocation12], 0
    %26 = vsyncpa [#allocation4], 0
    %27 = vsyncpa [#allocation15], 0
    // Predicated region
    $region2: #{tpu_custom_call.1} parent=1 // pred_check
      _
    $region3: #{tpu_custom_call.1} parent=1 // pred_check_branch
      %29 = sbr.rel (0) target = $region5
    $region4: #{tpu_custom_call.1} parent=1 // pred_region
      _
    $region5: #{tpu_custom_call.1} parent=1 // pred_fallthru
      _
    // Predicated region
    $region6: #{tpu_custom_call.1} parent=1 // pred_check
      _
    $region7: #{tpu_custom_call.1} parent=1 // pred_check_branch
      %31 = sbr.rel (0) target = $region9
    $region8: #{tpu_custom_call.1} parent=1 // pred_region
      _
    $region9: #{tpu_custom_call.1} parent=1 // pred_fallthru
      _
    // Predicated region
    $region10: #{tpu_custom_call.1} parent=1 // pred_check
      _
    $region11: #{tpu_custom_call.1} parent=1 // pred_check_branch
      %33 = sbr.rel (0) target = $region13
    $region12: #{tpu_custom_call.1} parent=1 // pred_region
      _
    $region13: #{tpu_custom_call.1} parent=1 // pred_fallthru
      _
    // Predicated region
    $region14: #{tpu_custom_call.1} parent=1 // pred_check
      _
    $region15: #{tpu_custom_call.1} parent=1 // pred_check_branch
      %35 = sbr.rel (0) target = $region17
    $region16: #{tpu_custom_call.1} parent=1 // pred_region
      %s37 = ssub.s32 16, 16
      %38 = vsyncadd [#allocation3], %s37
      %s40 = sshll.u32 [#allocation2], 4
      %s41 = int_to_ptr.vmem [resolvable:$true] %s40
      %43 = dma.hbm_to_vmem [thread:$0]  %s3, 16, %s41, [#allocation3]
    $region17: #{tpu_custom_call.1} parent=1 // pred_fallthru
      _
    // Predicated region
    $region18: #{tpu_custom_call.1} parent=1 // pred_check
      _
    $region19: #{tpu_custom_call.1} parent=1 // pred_check_branch
      %45 = sbr.rel (0) target = $region21
    $region20: #{tpu_custom_call.1} parent=1 // pred_region
      %s47 = ssub.s32 32, 32
      %48 = vsyncadd [#allocation6], %s47
      %s50 = sshll.u32 [#allocation5], 4
      %s51 = int_to_ptr.vmem [resolvable:$true] %s50
      %53 = dma.hbm_to_vmem [thread:$0]  %s4, 32, %s51, [#allocation6]
    $region21: #{tpu_custom_call.1} parent=1 // pred_fallthru
      _
    // Predicated region
    $region22: #{tpu_custom_call.1} parent=1 // pred_check
      _
    $region23: #{tpu_custom_call.1} parent=1 // pred_check_branch
      %55 = sbr.rel (0) target = $region25
    $region24: #{tpu_custom_call.1} parent=1 // pred_region
      %s57 = ssub.s32 16, 16
      %58 = vsyncadd [#allocation6], %s57
      %s60 = sshll.u32 [#allocation7], 4
      %s61 = int_to_ptr.vmem [resolvable:$true] %s60
      %63 = dma.hbm_to_vmem [thread:$0]  %s5, 16, %s61, [#allocation6]
    $region25: #{tpu_custom_call.1} parent=1 // pred_fallthru
      _
    // Predicated region
    $region26: #{tpu_custom_call.1} parent=1 // pred_check
      _
    $region27: #{tpu_custom_call.1} parent=1 // pred_check_branch
      %65 = sbr.rel (0) target = $region29
    $region28: #{tpu_custom_call.1} parent=1 // pred_region
      _
    $region29: #{tpu_custom_call.1} parent=1 // pred_fallthru
      _
    // Predicated region
    $region30: #{tpu_custom_call.1} parent=1 // pred_check
      _
    $region31: #{tpu_custom_call.1} parent=1 // pred_check_branch
      %67 = sbr.rel (0) target = $region33
    $region32: #{tpu_custom_call.1} parent=1 // pred_region
      %s69 = ssub.s32 256, 256
      %70 = vsyncadd [#allocation9], %s69
      %s71 = sshll.u32 [#allocation8], 4
      %s72 = int_to_ptr.vmem [resolvable:$true] %s71
      %77 = dma.hbm_to_vmem [thread:$0]  %s7, 256, %s72, [#allocation9], 128, 128, 8
    $region33: #{tpu_custom_call.1} parent=1 // pred_fallthru
      _
    // Predicated region
    $region34: #{tpu_custom_call.1} parent=1 // pred_check
      _
    $region35: #{tpu_custom_call.1} parent=1 // pred_check_branch
      %79 = sbr.rel (0) target = $region37
    $region36: #{tpu_custom_call.1} parent=1 // pred_region
      _
    $region37: #{tpu_custom_call.1} parent=1 // pred_fallthru
      _
    // Predicated region
    $region38: #{tpu_custom_call.1} parent=1 // pred_check
      _
    $region39: #{tpu_custom_call.1} parent=1 // pred_check_branch
      %81 = sbr.rel (0) target = $region41
    $region40: #{tpu_custom_call.1} parent=1 // pred_region
      _
    $region41: #{tpu_custom_call.1} parent=1 // pred_fallthru
      _
    // Predicated region
    $region42: #{tpu_custom_call.1} parent=1 // pred_check
      _
    $region43: #{tpu_custom_call.1} parent=1 // pred_check_branch
      %83 = sbr.rel (0) target = $region45
    $region44: #{tpu_custom_call.1} parent=1 // pred_region
      _
    $region45: #{tpu_custom_call.1} parent=1 // pred_fallthru
      _
    // Predicated region
    $region46: #{tpu_custom_call.1} parent=1 // pred_check
      _
    $region47: #{tpu_custom_call.1} parent=1 // pred_check_branch
      %85 = sbr.rel (0) target = $region49
    $region48: #{tpu_custom_call.1} parent=1 // pred_region
      %s87 = ssub.s32 512, 512
      %88 = vsyncadd [#allocation9], %s87
      %s89 = sshll.u32 [#allocation10], 4
      %s90 = int_to_ptr.vmem [resolvable:$true] %s89
      %95 = dma.hbm_to_vmem [thread:$0]  %s11, 512, %s90, [#allocation9], 128, 128, 8
    $region49: #{tpu_custom_call.1} parent=1 // pred_fallthru
      _
    // Predicated region
    $region50: #{tpu_custom_call.1} parent=1 // pred_check
      _
    $region51: #{tpu_custom_call.1} parent=1 // pred_check_branch
      %97 = sbr.rel (0) target = $region53
    $region52: #{tpu_custom_call.1} parent=1 // pred_region
      %s99 = ssub.s32 512, 512
      %100 = vsyncadd [#allocation12], %s99
      %s101 = sshll.u32 [#allocation11], 4
      %s102 = int_to_ptr.vmem [resolvable:$true] %s101
      %107 = dma.hbm_to_vmem [thread:$0]  %s12, 512, %s102, [#allocation12], 128, 128, 8
    $region53: #{tpu_custom_call.1} parent=1 // pred_fallthru
      _
    // Predicated region
    $region54: #{tpu_custom_call.1} parent=1 // pred_check
      _
    $region55: #{tpu_custom_call.1} parent=1 // pred_check_branch
      %109 = sbr.rel (0) target = $region57
    $region56: #{tpu_custom_call.1} parent=1 // pred_region
      _
    $region57: #{tpu_custom_call.1} parent=1 // pred_fallthru
      _
    // Predicated region
    $region58: #{tpu_custom_call.1} parent=1 // pred_check
      _
    $region59: #{tpu_custom_call.1} parent=1 // pred_check_branch
      %111 = sbr.rel (0) target = $region61
    $region60: #{tpu_custom_call.1} parent=1 // pred_region
      %112 = dma.done [#allocation3], 16
    $region61: #{tpu_custom_call.1} parent=1 // pred_fallthru
      _
    // Predicated region
    $region62: #{tpu_custom_call.1} parent=1 // pred_check
      _
    $region63: #{tpu_custom_call.1} parent=1 // pred_check_branch
      %114 = sbr.rel (0) target = $region65
    $region64: #{tpu_custom_call.1} parent=1 // pred_region
      %115 = dma.done [#allocation6], 32
    $region65: #{tpu_custom_call.1} parent=1 // pred_fallthru
      _
    // Predicated region
    $region66: #{tpu_custom_call.1} parent=1 // pred_check
      _
    $region67: #{tpu_custom_call.1} parent=1 // pred_check_branch
      %117 = sbr.rel (0) target = $region69
    $region68: #{tpu_custom_call.1} parent=1 // pred_region
      %118 = dma.done [#allocation6], 16
    $region69: #{tpu_custom_call.1} parent=1 // pred_fallthru
      _
    // Predicated region
    $region70: #{tpu_custom_call.1} parent=1 // pred_check
      _
    $region71: #{tpu_custom_call.1} parent=1 // pred_check_branch
      %120 = sbr.rel (0) target = $region73
    $region72: #{tpu_custom_call.1} parent=1 // pred_region
      %121 = dma.done [#allocation9], 256
    $region73: #{tpu_custom_call.1} parent=1 // pred_fallthru
      _
    // Predicated region
    $region74: #{tpu_custom_call.1} parent=1 // pred_check
      _
    $region75: #{tpu_custom_call.1} parent=1 // pred_check_branch
      %123 = sbr.rel (0) target = $region77
    $region76: #{tpu_custom_call.1} parent=1 // pred_region
      %124 = dma.done [#allocation9], 512
    $region77: #{tpu_custom_call.1} parent=1 // pred_fallthru
      _
    // Predicated region
    $region78: #{tpu_custom_call.1} parent=1 // pred_check
      _
    $region79: #{tpu_custom_call.1} parent=1 // pred_check_branch
      %126 = sbr.rel (0) target = $region81
    $region80: #{tpu_custom_call.1} parent=1 // pred_region
      %127 = dma.done [#allocation12], 512
    $region81: #{tpu_custom_call.1} parent=1 // pred_fallthru
      _
    %v128 = vld [vmem:[%s0] sm:$0xff]
    %v129 = vld [vmem:[%s0 + $0x8] sm:$0xff]
    %v130 = vld [vmem:[%s0 + $0x10] sm:$0xff]
    %v131 = vld [vmem:[%s0 + $0x18] sm:$0xff]
    %v132 = vld [vmem:[%s1] sm:$0x3]
    %v133 = vld [vmem:[%s2] sm:$0xff]
    %v134 = vld [vmem:[%s2 + $0x8] sm:$0xff]
    %v135 = vld [vmem:[%s2 + $0x10] sm:$0xff]
    %v136 = vld [vmem:[%s2 + $0x18] sm:$0xff]
    %v137 = vld [vmem:[#allocation5] sm:$0x3]
    %v138 = vld [vmem:[#allocation7] sm:$0x1]
    %v140 = vlaneseq
    %v141 = vshrl.u32 %v140, 7
    %v142 = vsub.s32 0, %v141
    %v143 = vrot.slane %v138, %v142
    %vm145 = vcmask 15360
    %v147 = vsel %vm145, %v128, 0
    %v150 = vsel %vm145, %v129, 0
    %v153 = vsel %vm145, %v130, 0
    %v156 = vsel %vm145, %v131, 0
    %vm158 = vcmask 1041408
    %v160 = vsel %vm158, %v137, 0
    %162 = vmatprep.subr.mxu0 0.0
    %163 = vmatpush1.msra.mxu0 0.0
    %164 = vmatprep.subr.mxu0 0.0
    %165 = vmatpush1.msra.mxu0 0.0
    %166 = vmatprep.subr.mxu0 0.0
    %167 = vmatpush1.msra.mxu0 0.0
    %168 = vmatprep.subr.mxu0 0.0
    %169 = vmatpush1.msra.mxu0 0.0
    %170 = vmatprep.subr.mxu0 0.0
    %171 = vmatpush1.msra.mxu0 0.0
    %172 = vmatprep.subr.mxu0 0.0
    %173 = vmatpush1.msra.mxu0 0.0
    %174 = vmatprep.subr.mxu0 0.0
    %175 = vmatpush1.msra.mxu0 0.0
    %176 = vmatprep.subr.mxu0 0.0
    %177 = vmatpush1.msra.mxu0 0.0
    %178 = vmatprep.subr.mxu0 0.0
    %179 = vmatpush1.msra.mxu0 0.0
    %180 = vmatprep.subr.mxu0 0.0
    %181 = vmatpush1.msra.mxu0 0.0
    %182 = vmatprep.subr.mxu0 0.0
    %183 = vmatpush1.msra.mxu0 0.0
    %184 = vmatprep.subr.mxu0 0.0
    %185 = vmatpush1.msra.mxu0 0.0
    %186 = vmatprep.subr.mxu0 0.0
    %187 = vmatpush1.msra.mxu0 0.0
    %188 = vmatprep.subr.mxu0 0.0
    %189 = vmatpush1.msra.mxu0 0.0
    %190 = vmatprep.subr.mxu0 0.0
    %191 = vmatpush1.msra.mxu0 0.0
    %192 = vmatprep.subr.mxu0 0.0
    %v193 = vand.u32 %v160, 4294901760
    %194 = vmatpush1.msra.mxu0 %v193
    %195 = vmatprep.subr.mxu0 0.0
    %196 = vmatpush2.msra.mxu0 0.0
    %197 = vmatprep.subr.mxu0 0.0
    %198 = vmatpush2.msra.mxu0 0.0
    %199 = vmatprep.subr.mxu0 0.0
    %200 = vmatpush2.msra.mxu0 0.0
    %201 = vmatprep.subr.mxu0 0.0
    %202 = vmatpush2.msra.mxu0 0.0
    %203 = vmatprep.subr.mxu0 0.0
    %204 = vmatpush2.msra.mxu0 0.0
    %205 = vmatprep.subr.mxu0 0.0
    %206 = vmatpush2.msra.mxu0 0.0
    %207 = vmatprep.subr.mxu0 0.0
    %208 = vmatpush2.msra.mxu0 0.0
    %209 = vmatprep.subr.mxu0 0.0
    %210 = vmatpush2.msra.mxu0 0.0
    %211 = vmatprep.subr.mxu0 0.0
    %212 = vmatpush2.msra.mxu0 0.0
    %213 = vmatprep.subr.mxu0 0.0
    %214 = vmatpush2.msra.mxu0 0.0
    %215 = vmatprep.subr.mxu0 0.0
    %216 = vmatpush2.msra.mxu0 0.0
    %217 = vmatprep.subr.mxu0 0.0
    %218 = vmatpush2.msra.mxu0 0.0
    %219 = vmatprep.subr.mxu0 0.0
    %220 = vmatpush2.msra.mxu0 0.0
    %221 = vmatprep.subr.mxu0 0.0
    %222 = vmatpush2.msra.mxu0 0.0
    %223 = vmatprep.subr.mxu0 0.0
    %224 = vmatpush2.msra.mxu0 0.0
    %225 = vmatprep.subr.mxu0 0.0
    %226 = vmatpush2.msra.mxu0 0.0
    %227 = vmatprep.mubr.f32.mxu0 0.0
    %v228 = vand.u32 %v147, 4294901760
    %v229 = vsub.f32 %v147, %v228
    %v230 = vand.u32 %v229, 4294901760
    %v231 = vsub.f32 %v229, %v230
    %v232 = vand.u32 %v231, 4294901760
    %233 = vmatmul.mubr.f32.gmra.mxu0 %v232
    %v234 = vpop.f32.mrf.mxu0
    %v235 = vadd.f32 %v143, %v234
    %v236 = vpop.f32.mrf.mxu0
    %237 = vmatprep.mubr.f32.mxu0 0.0
    %v238 = vand.u32 %v150, 4294901760
    %v239 = vsub.f32 %v150, %v238
    %v240 = vand.u32 %v239, 4294901760
    %v241 = vsub.f32 %v239, %v240
    %v242 = vand.u32 %v241, 4294901760
    %243 = vmatmul.mubr.f32.gmra.mxu0 %v242
    %v244 = vpop.f32.mrf.mxu0
    %v245 = vadd.f32 %v143, %v244
    %v246 = vpop.f32.mrf.mxu0
    %247 = vmatprep.mubr.f32.mxu0 0.0
    %v248 = vand.u32 %v153, 4294901760
    %v249 = vsub.f32 %v153, %v248
    %v250 = vand.u32 %v249, 4294901760
    %v251 = vsub.f32 %v249, %v250
    %v252 = vand.u32 %v251, 4294901760
    %253 = vmatmul.mubr.f32.gmra.mxu0 %v252
    %v254 = vpop.f32.mrf.mxu0
    %v255 = vadd.f32 %v143, %v254
    %v256 = vpop.f32.mrf.mxu0
    %257 = vmatprep.mubr.f32.mxu0 0.0
    %v258 = vand.u32 %v156, 4294901760
    %v259 = vsub.f32 %v156, %v258
    %v260 = vand.u32 %v259, 4294901760
    %v261 = vsub.f32 %v259, %v260
    %v262 = vand.u32 %v261, 4294901760
    %263 = vmatmul.mubr.f32.gmra.mxu0 %v262
    %v264 = vpop.f32.mrf.mxu0
    %v265 = vadd.f32 %v143, %v264
    %v266 = vpop.f32.mrf.mxu0
    %267 = vdwg.mxu0
    %268 = vmatprep.subr.mxu0 0.0
    %269 = vmatpush1.msra.mxu0 0.0
    %270 = vmatprep.subr.mxu0 0.0
    %271 = vmatpush1.msra.mxu0 0.0
    %272 = vmatprep.subr.mxu0 0.0
    %273 = vmatpush1.msra.mxu0 0.0
    %274 = vmatprep.subr.mxu0 0.0
    %275 = vmatpush1.msra.mxu0 0.0
    %276 = vmatprep.subr.mxu0 0.0
    %277 = vmatpush1.msra.mxu0 0.0
    %278 = vmatprep.subr.mxu0 0.0
    %279 = vmatpush1.msra.mxu0 0.0
    %280 = vmatprep.subr.mxu0 0.0
    %281 = vmatpush1.msra.mxu0 0.0
    %282 = vmatprep.subr.mxu0 0.0
    %283 = vmatpush1.msra.mxu0 0.0
    %284 = vmatprep.subr.mxu0 0.0
    %285 = vmatpush1.msra.mxu0 0.0
    %286 = vmatprep.subr.mxu0 0.0
    %287 = vmatpush1.msra.mxu0 0.0
    %288 = vmatprep.subr.mxu0 0.0
    %289 = vmatpush1.msra.mxu0 0.0
    %290 = vmatprep.subr.mxu0 0.0
    %291 = vmatpush1.msra.mxu0 0.0
    %292 = vmatprep.subr.mxu0 0.0
    %293 = vmatpush1.msra.mxu0 0.0
    %294 = vmatprep.subr.mxu0 0.0
    %295 = vmatpush1.msra.mxu0 0.0
    %296 = vmatprep.subr.mxu0 0.0
    %297 = vmatpush1.msra.mxu0 0.0
    %298 = vmatprep.subr.mxu0 0.0
    %v299 = vand.u32 %v160, 4294901760
    %v300 = vsub.f32 %v160, %v299
    %v301 = vand.u32 %v300, 4294901760
    %v302 = vsub.f32 %v300, %v301
    %v303 = vand.u32 %v302, 4294901760
    %304 = vmatpush1.msra.mxu0 %v303
    %305 = vmatprep.subr.mxu0 0.0
    %306 = vmatpush2.msra.mxu0 0.0
    %307 = vmatprep.subr.mxu0 0.0
    %308 = vmatpush2.msra.mxu0 0.0
    %309 = vmatprep.subr.mxu0 0.0
    %310 = vmatpush2.msra.mxu0 0.0
    %311 = vmatprep.subr.mxu0 0.0
    %312 = vmatpush2.msra.mxu0 0.0
    %313 = vmatprep.subr.mxu0 0.0
    %314 = vmatpush2.msra.mxu0 0.0
    %315 = vmatprep.subr.mxu0 0.0
    %316 = vmatpush2.msra.mxu0 0.0
    %317 = vmatprep.subr.mxu0 0.0
    %318 = vmatpush2.msra.mxu0 0.0
    %319 = vmatprep.subr.mxu0 0.0
    %320 = vmatpush2.msra.mxu0 0.0
    %321 = vmatprep.subr.mxu0 0.0
    %322 = vmatpush2.msra.mxu0 0.0
    %323 = vmatprep.subr.mxu0 0.0
    %324 = vmatpush2.msra.mxu0 0.0
    %325 = vmatprep.subr.mxu0 0.0
    %326 = vmatpush2.msra.mxu0 0.0
    %327 = vmatprep.subr.mxu0 0.0
    %328 = vmatpush2.msra.mxu0 0.0
    %329 = vmatprep.subr.mxu0 0.0
    %330 = vmatpush2.msra.mxu0 0.0
    %331 = vmatprep.subr.mxu0 0.0
    %332 = vmatpush2.msra.mxu0 0.0
    %333 = vmatprep.subr.mxu0 0.0
    %334 = vmatpush2.msra.mxu0 0.0
    %335 = vmatprep.subr.mxu0 0.0
    %336 = vmatpush2.msra.mxu0 0.0
    %337 = vmatprep.mubr.f32.mxu0 0.0
    %v338 = vand.u32 %v147, 4294901760
    %339 = vmatmul.mubr.f32.gmra.mxu0 %v338
    %v340 = vpop.f32.mrf.mxu0
    %v341 = vadd.f32 %v235, %v340
    %v342 = vpop.f32.mrf.mxu0
    %343 = vmatprep.mubr.f32.mxu0 0.0
    %v344 = vand.u32 %v150, 4294901760
    %345 = vmatmul.mubr.f32.gmra.mxu0 %v344
    %v346 = vpop.f32.mrf.mxu0
    %v347 = vadd.f32 %v245, %v346
    %v348 = vpop.f32.mrf.mxu0
    %349 = vmatprep.mubr.f32.mxu0 0.0
    %v350 = vand.u32 %v153, 4294901760
    %351 = vmatmul.mubr.f32.gmra.mxu0 %v350
    %v352 = vpop.f32.mrf.mxu0
    %v353 = vadd.f32 %v255, %v352
    %v354 = vpop.f32.mrf.mxu0
    %355 = vmatprep.mubr.f32.mxu0 0.0
    %v356 = vand.u32 %v156, 4294901760
    %357 = vmatmul.mubr.f32.gmra.mxu0 %v356
    %v358 = vpop.f32.mrf.mxu0
    %v359 = vadd.f32 %v265, %v358
    %v360 = vpop.f32.mrf.mxu0
    %361 = vdwg.mxu0
    %362 = vmatprep.subr.mxu0 0.0
    %363 = vmatpush1.msra.mxu0 0.0
    %364 = vmatprep.subr.mxu0 0.0
    %365 = vmatpush1.msra.mxu0 0.0
    %366 = vmatprep.subr.mxu0 0.0
    %367 = vmatpush1.msra.mxu0 0.0
    %368 = vmatprep.subr.mxu0 0.0
    %369 = vmatpush1.msra.mxu0 0.0
    %370 = vmatprep.subr.mxu0 0.0
    %371 = vmatpush1.msra.mxu0 0.0
    %372 = vmatprep.subr.mxu0 0.0
    %373 = vmatpush1.msra.mxu0 0.0
    %374 = vmatprep.subr.mxu0 0.0
    %375 = vmatpush1.msra.mxu0 0.0
    %376 = vmatprep.subr.mxu0 0.0
    %377 = vmatpush1.msra.mxu0 0.0
    %378 = vmatprep.subr.mxu0 0.0
    %379 = vmatpush1.msra.mxu0 0.0
    %380 = vmatprep.subr.mxu0 0.0
    %381 = vmatpush1.msra.mxu0 0.0
    %382 = vmatprep.subr.mxu0 0.0
    %383 = vmatpush1.msra.mxu0 0.0
    %384 = vmatprep.subr.mxu0 0.0
    %385 = vmatpush1.msra.mxu0 0.0
    %386 = vmatprep.subr.mxu0 0.0
    %387 = vmatpush1.msra.mxu0 0.0
    %388 = vmatprep.subr.mxu0 0.0
    %389 = vmatpush1.msra.mxu0 0.0
    %390 = vmatprep.subr.mxu0 0.0
    %391 = vmatpush1.msra.mxu0 0.0
    %392 = vmatprep.subr.mxu0 0.0
    %v393 = vand.u32 %v160, 4294901760
    %v394 = vsub.f32 %v160, %v393
    %395 = vmatpush1.msra.mxu0 %v394
    %396 = vmatprep.subr.mxu0 0.0
    %397 = vmatpush2.msra.mxu0 0.0
    %398 = vmatprep.subr.mxu0 0.0
    %399 = vmatpush2.msra.mxu0 0.0
    %400 = vmatprep.subr.mxu0 0.0
    %401 = vmatpush2.msra.mxu0 0.0
    %402 = vmatprep.subr.mxu0 0.0
    %403 = vmatpush2.msra.mxu0 0.0
    %404 = vmatprep.subr.mxu0 0.0
    %405 = vmatpush2.msra.mxu0 0.0
    %406 = vmatprep.subr.mxu0 0.0
    %407 = vmatpush2.msra.mxu0 0.0
    %408 = vmatprep.subr.mxu0 0.0
    %409 = vmatpush2.msra.mxu0 0.0
    %410 = vmatprep.subr.mxu0 0.0
    %411 = vmatpush2.msra.mxu0 0.0
    %412 = vmatprep.subr.mxu0 0.0
    %413 = vmatpush2.msra.mxu0 0.0
    %414 = vmatprep.subr.mxu0 0.0
    %415 = vmatpush2.msra.mxu0 0.0
    %416 = vmatprep.subr.mxu0 0.0
    %417 = vmatpush2.msra.mxu0 0.0
    %418 = vmatprep.subr.mxu0 0.0
    %419 = vmatpush2.msra.mxu0 0.0
    %420 = vmatprep.subr.mxu0 0.0
    %421 = vmatpush2.msra.mxu0 0.0
    %422 = vmatprep.subr.mxu0 0.0
    %423 = vmatpush2.msra.mxu0 0.0
    %424 = vmatprep.subr.mxu0 0.0
    %425 = vmatpush2.msra.mxu0 0.0
    %426 = vmatprep.subr.mxu0 0.0
    %427 = vmatpush2.msra.mxu0 0.0
    %428 = vmatprep.mubr.f32.mxu0 0.0
    %v429 = vand.u32 %v147, 4294901760
    %v430 = vsub.f32 %v147, %v429
    %431 = vmatmul.mubr.f32.gmra.mxu0 %v430
    %v432 = vpop.f32.mrf.mxu0
    %v433 = vadd.f32 %v341, %v432
    %v434 = vpop.f32.mrf.mxu0
    %435 = vmatprep.mubr.f32.mxu0 0.0
    %v436 = vand.u32 %v150, 4294901760
    %v437 = vsub.f32 %v150, %v436
    %438 = vmatmul.mubr.f32.gmra.mxu0 %v437
    %v439 = vpop.f32.mrf.mxu0
    %v440 = vadd.f32 %v347, %v439
    %v441 = vpop.f32.mrf.mxu0
    %442 = vmatprep.mubr.f32.mxu0 0.0
    %v443 = vand.u32 %v153, 4294901760
    %v444 = vsub.f32 %v153, %v443
    %445 = vmatmul.mubr.f32.gmra.mxu0 %v444
    %v446 = vpop.f32.mrf.mxu0
    %v447 = vadd.f32 %v353, %v446
    %v448 = vpop.f32.mrf.mxu0
    %449 = vmatprep.mubr.f32.mxu0 0.0
    %v450 = vand.u32 %v156, 4294901760
    %v451 = vsub.f32 %v156, %v450
    %452 = vmatmul.mubr.f32.gmra.mxu0 %v451
    %v453 = vpop.f32.mrf.mxu0
    %v454 = vadd.f32 %v359, %v453
    %v455 = vpop.f32.mrf.mxu0
    %456 = vdwg.mxu0
    %457 = vmatprep.subr.mxu0 0.0
    %458 = vmatpush1.msra.mxu0 0.0
    %459 = vmatprep.subr.mxu0 0.0
    %460 = vmatpush1.msra.mxu0 0.0
    %461 = vmatprep.subr.mxu0 0.0
    %462 = vmatpush1.msra.mxu0 0.0
    %463 = vmatprep.subr.mxu0 0.0
    %464 = vmatpush1.msra.mxu0 0.0
    %465 = vmatprep.subr.mxu0 0.0
    %466 = vmatpush1.msra.mxu0 0.0
    %467 = vmatprep.subr.mxu0 0.0
    %468 = vmatpush1.msra.mxu0 0.0
    %469 = vmatprep.subr.mxu0 0.0
    %470 = vmatpush1.msra.mxu0 0.0
    %471 = vmatprep.subr.mxu0 0.0
    %472 = vmatpush1.msra.mxu0 0.0
    %473 = vmatprep.subr.mxu0 0.0
    %474 = vmatpush1.msra.mxu0 0.0
    %475 = vmatprep.subr.mxu0 0.0
    %476 = vmatpush1.msra.mxu0 0.0
    %477 = vmatprep.subr.mxu0 0.0
    %478 = vmatpush1.msra.mxu0 0.0
    %479 = vmatprep.subr.mxu0 0.0
    %480 = vmatpush1.msra.mxu0 0.0
    %481 = vmatprep.subr.mxu0 0.0
    %482 = vmatpush1.msra.mxu0 0.0
    %483 = vmatprep.subr.mxu0 0.0
    %484 = vmatpush1.msra.mxu0 0.0
    %485 = vmatprep.subr.mxu0 0.0
    %486 = vmatpush1.msra.mxu0 0.0
    %487 = vmatprep.subr.mxu0 0.0
    %v488 = vand.u32 %v160, 4294901760
    %489 = vmatpush1.msra.mxu0 %v488
    %490 = vmatprep.subr.mxu0 0.0
    %491 = vmatpush2.msra.mxu0 0.0
    %492 = vmatprep.subr.mxu0 0.0
    %493 = vmatpush2.msra.mxu0 0.0
    %494 = vmatprep.subr.mxu0 0.0
    %495 = vmatpush2.msra.mxu0 0.0
    %496 = vmatprep.subr.mxu0 0.0
    %497 = vmatpush2.msra.mxu0 0.0
    %498 = vmatprep.subr.mxu0 0.0
    %499 = vmatpush2.msra.mxu0 0.0
    %500 = vmatprep.subr.mxu0 0.0
    %501 = vmatpush2.msra.mxu0 0.0
    %502 = vmatprep.subr.mxu0 0.0
    %503 = vmatpush2.msra.mxu0 0.0
    %504 = vmatprep.subr.mxu0 0.0
    %505 = vmatpush2.msra.mxu0 0.0
    %506 = vmatprep.subr.mxu0 0.0
    %507 = vmatpush2.msra.mxu0 0.0
    %508 = vmatprep.subr.mxu0 0.0
    %509 = vmatpush2.msra.mxu0 0.0
    %510 = vmatprep.subr.mxu0 0.0
    %511 = vmatpush2.msra.mxu0 0.0
    %512 = vmatprep.subr.mxu0 0.0
    %513 = vmatpush2.msra.mxu0 0.0
    %514 = vmatprep.subr.mxu0 0.0
    %515 = vmatpush2.msra.mxu0 0.0
    %516 = vmatprep.subr.mxu0 0.0
    %517 = vmatpush2.msra.mxu0 0.0
    %518 = vmatprep.subr.mxu0 0.0
    %519 = vmatpush2.msra.mxu0 0.0
    %520 = vmatprep.subr.mxu0 0.0
    %521 = vmatpush2.msra.mxu0 0.0
    %522 = vmatprep.mubr.f32.mxu0 0.0
    %v523 = vand.u32 %v147, 4294901760
    %v524 = vsub.f32 %v147, %v523
    %v525 = vand.u32 %v524, 4294901760
    %526 = vmatmul.mubr.f32.gmra.mxu0 %v525
    %v527 = vpop.f32.mrf.mxu0
    %v528 = vadd.f32 %v433, %v527
    %v529 = vpop.f32.mrf.mxu0
    %530 = vmatprep.mubr.f32.mxu0 0.0
    %v531 = vand.u32 %v150, 4294901760
    %v532 = vsub.f32 %v150, %v531
    %v533 = vand.u32 %v532, 4294901760
    %534 = vmatmul.mubr.f32.gmra.mxu0 %v533
    %v535 = vpop.f32.mrf.mxu0
    %v536 = vadd.f32 %v440, %v535
    %v537 = vpop.f32.mrf.mxu0
    %538 = vmatprep.mubr.f32.mxu0 0.0
    %v539 = vand.u32 %v153, 4294901760
    %v540 = vsub.f32 %v153, %v539
    %v541 = vand.u32 %v540, 4294901760
    %542 = vmatmul.mubr.f32.gmra.mxu0 %v541
    %v543 = vpop.f32.mrf.mxu0
    %v544 = vadd.f32 %v447, %v543
    %v545 = vpop.f32.mrf.mxu0
    %546 = vmatprep.mubr.f32.mxu0 0.0
    %v547 = vand.u32 %v156, 4294901760
    %v548 = vsub.f32 %v156, %v547
    %v549 = vand.u32 %v548, 4294901760
    %550 = vmatmul.mubr.f32.gmra.mxu0 %v549
    %v551 = vpop.f32.mrf.mxu0
    %v552 = vadd.f32 %v454, %v551
    %v553 = vpop.f32.mrf.mxu0
    %554 = vdwg.mxu0
    %555 = vmatprep.subr.mxu0 0.0
    %556 = vmatpush1.msra.mxu0 0.0
    %557 = vmatprep.subr.mxu0 0.0
    %558 = vmatpush1.msra.mxu0 0.0
    %559 = vmatprep.subr.mxu0 0.0
    %560 = vmatpush1.msra.mxu0 0.0
    %561 = vmatprep.subr.mxu0 0.0
    %562 = vmatpush1.msra.mxu0 0.0
    %563 = vmatprep.subr.mxu0 0.0
    %564 = vmatpush1.msra.mxu0 0.0
    %565 = vmatprep.subr.mxu0 0.0
    %566 = vmatpush1.msra.mxu0 0.0
    %567 = vmatprep.subr.mxu0 0.0
    %568 = vmatpush1.msra.mxu0 0.0
    %569 = vmatprep.subr.mxu0 0.0
    %570 = vmatpush1.msra.mxu0 0.0
    %571 = vmatprep.subr.mxu0 0.0
    %572 = vmatpush1.msra.mxu0 0.0
    %573 = vmatprep.subr.mxu0 0.0
    %574 = vmatpush1.msra.mxu0 0.0
    %575 = vmatprep.subr.mxu0 0.0
    %576 = vmatpush1.msra.mxu0 0.0
    %577 = vmatprep.subr.mxu0 0.0
    %578 = vmatpush1.msra.mxu0 0.0
    %579 = vmatprep.subr.mxu0 0.0
    %580 = vmatpush1.msra.mxu0 0.0
    %581 = vmatprep.subr.mxu0 0.0
    %582 = vmatpush1.msra.mxu0 0.0
    %583 = vmatprep.subr.mxu0 0.0
    %584 = vmatpush1.msra.mxu0 0.0
    %585 = vmatprep.subr.mxu0 0.0
    %v586 = vand.u32 %v160, 4294901760
    %v587 = vsub.f32 %v160, %v586
    %v588 = vand.u32 %v587, 4294901760
    %589 = vmatpush1.msra.mxu0 %v588
    %590 = vmatprep.subr.mxu0 0.0
    %591 = vmatpush2.msra.mxu0 0.0
    %592 = vmatprep.subr.mxu0 0.0
    %593 = vmatpush2.msra.mxu0 0.0
    %594 = vmatprep.subr.mxu0 0.0
    %595 = vmatpush2.msra.mxu0 0.0
    %596 = vmatprep.subr.mxu0 0.0
    %597 = vmatpush2.msra.mxu0 0.0
    %598 = vmatprep.subr.mxu0 0.0
    %599 = vmatpush2.msra.mxu0 0.0
    %600 = vmatprep.subr.mxu0 0.0
    %601 = vmatpush2.msra.mxu0 0.0
    %602 = vmatprep.subr.mxu0 0.0
    %603 = vmatpush2.msra.mxu0 0.0
    %604 = vmatprep.subr.mxu0 0.0
    %605 = vmatpush2.msra.mxu0 0.0
    %606 = vmatprep.subr.mxu0 0.0
    %607 = vmatpush2.msra.mxu0 0.0
    %608 = vmatprep.subr.mxu0 0.0
    %609 = vmatpush2.msra.mxu0 0.0
    %610 = vmatprep.subr.mxu0 0.0
    %611 = vmatpush2.msra.mxu0 0.0
    %612 = vmatprep.subr.mxu0 0.0
    %613 = vmatpush2.msra.mxu0 0.0
    %614 = vmatprep.subr.mxu0 0.0
    %615 = vmatpush2.msra.mxu0 0.0
    %616 = vmatprep.subr.mxu0 0.0
    %617 = vmatpush2.msra.mxu0 0.0
    %618 = vmatprep.subr.mxu0 0.0
    %619 = vmatpush2.msra.mxu0 0.0
    %620 = vmatprep.subr.mxu0 0.0
    %621 = vmatpush2.msra.mxu0 0.0
    %622 = vmatprep.mubr.f32.mxu0 0.0
    %v623 = vand.u32 %v147, 4294901760
    %624 = vmatmul.mubr.f32.gmra.mxu0 %v623
    %v625 = vpop.f32.mrf.mxu0
    %v626 = vadd.f32 %v528, %v625
    %v627 = vpop.f32.mrf.mxu0
    %628 = vmatprep.mubr.f32.mxu0 0.0
    %v629 = vand.u32 %v150, 4294901760
    %630 = vmatmul.mubr.f32.gmra.mxu0 %v629
    %v631 = vpop.f32.mrf.mxu0
    %v632 = vadd.f32 %v536, %v631
    %v633 = vpop.f32.mrf.mxu0
    %634 = vmatprep.mubr.f32.mxu0 0.0
    %v635 = vand.u32 %v153, 4294901760
    %636 = vmatmul.mubr.f32.gmra.mxu0 %v635
    %v637 = vpop.f32.mrf.mxu0
    %v638 = vadd.f32 %v544, %v637
    %v639 = vpop.f32.mrf.mxu0
    %640 = vmatprep.mubr.f32.mxu0 0.0
    %v641 = vand.u32 %v156, 4294901760
    %642 = vmatmul.mubr.f32.gmra.mxu0 %v641
    %v643 = vpop.f32.mrf.mxu0
    %v644 = vadd.f32 %v552, %v643
    %v645 = vpop.f32.mrf.mxu0
    %646 = vdwg.mxu0
    %647 = vmatprep.subr.mxu0 0.0
    %648 = vmatpush1.msra.mxu0 0.0
    %649 = vmatprep.subr.mxu0 0.0
    %650 = vmatpush1.msra.mxu0 0.0
    %651 = vmatprep.subr.mxu0 0.0
    %652 = vmatpush1.msra.mxu0 0.0
    %653 = vmatprep.subr.mxu0 0.0
    %654 = vmatpush1.msra.mxu0 0.0
    %655 = vmatprep.subr.mxu0 0.0
    %656 = vmatpush1.msra.mxu0 0.0
    %657 = vmatprep.subr.mxu0 0.0
    %658 = vmatpush1.msra.mxu0 0.0
    %659 = vmatprep.subr.mxu0 0.0
    %660 = vmatpush1.msra.mxu0 0.0
    %661 = vmatprep.subr.mxu0 0.0
    %662 = vmatpush1.msra.mxu0 0.0
    %663 = vmatprep.subr.mxu0 0.0
    %664 = vmatpush1.msra.mxu0 0.0
    %665 = vmatprep.subr.mxu0 0.0
    %666 = vmatpush1.msra.mxu0 0.0
    %667 = vmatprep.subr.mxu0 0.0
    %668 = vmatpush1.msra.mxu0 0.0
    %669 = vmatprep.subr.mxu0 0.0
    %670 = vmatpush1.msra.mxu0 0.0
    %671 = vmatprep.subr.mxu0 0.0
    %672 = vmatpush1.msra.mxu0 0.0
    %673 = vmatprep.subr.mxu0 0.0
    %674 = vmatpush1.msra.mxu0 0.0
    %675 = vmatprep.subr.mxu0 0.0
    %676 = vmatpush1.msra.mxu0 0.0
    %677 = vmatprep.subr.mxu0 0.0
    %v678 = vand.u32 %v160, 4294901760
    %679 = vmatpush1.msra.mxu0 %v678
    %680 = vmatprep.subr.mxu0 0.0
    %681 = vmatpush2.msra.mxu0 0.0
    %682 = vmatprep.subr.mxu0 0.0
    %683 = vmatpush2.msra.mxu0 0.0
    %684 = vmatprep.subr.mxu0 0.0
    %685 = vmatpush2.msra.mxu0 0.0
    %686 = vmatprep.subr.mxu0 0.0
    %687 = vmatpush2.msra.mxu0 0.0
    %688 = vmatprep.subr.mxu0 0.0
    %689 = vmatpush2.msra.mxu0 0.0
    %690 = vmatprep.subr.mxu0 0.0
    %691 = vmatpush2.msra.mxu0 0.0
    %692 = vmatprep.subr.mxu0 0.0
    %693 = vmatpush2.msra.mxu0 0.0
    %694 = vmatprep.subr.mxu0 0.0
    %695 = vmatpush2.msra.mxu0 0.0
    %696 = vmatprep.subr.mxu0 0.0
    %697 = vmatpush2.msra.mxu0 0.0
    %698 = vmatprep.subr.mxu0 0.0
    %699 = vmatpush2.msra.mxu0 0.0
    %700 = vmatprep.subr.mxu0 0.0
    %701 = vmatpush2.msra.mxu0 0.0
    %702 = vmatprep.subr.mxu0 0.0
    %703 = vmatpush2.msra.mxu0 0.0
    %704 = vmatprep.subr.mxu0 0.0
    %705 = vmatpush2.msra.mxu0 0.0
    %706 = vmatprep.subr.mxu0 0.0
    %707 = vmatpush2.msra.mxu0 0.0
    %708 = vmatprep.subr.mxu0 0.0
    %709 = vmatpush2.msra.mxu0 0.0
    %710 = vmatprep.subr.mxu0 0.0
    %711 = vmatpush2.msra.mxu0 0.0
    %712 = vmatprep.mubr.f32.mxu0 0.0
    %v713 = vand.u32 %v147, 4294901760
    %714 = vmatmul.mubr.f32.gmra.mxu0 %v713
    %v715 = vpop.f32.mrf.mxu0
    %v716 = vadd.f32 %v626, %v715
    %v717 = vpop.f32.mrf.mxu0
    %718 = vmatprep.mubr.f32.mxu0 0.0
    %v719 = vand.u32 %v150, 4294901760
    %720 = vmatmul.mubr.f32.gmra.mxu0 %v719
    %v721 = vpop.f32.mrf.mxu0
    %v722 = vadd.f32 %v632, %v721
    %v723 = vpop.f32.mrf.mxu0
    %724 = vmatprep.mubr.f32.mxu0 0.0
    %v725 = vand.u32 %v153, 4294901760
    %726 = vmatmul.mubr.f32.gmra.mxu0 %v725
    %v727 = vpop.f32.mrf.mxu0
    %v728 = vadd.f32 %v638, %v727
    %v729 = vpop.f32.mrf.mxu0
    %730 = vmatprep.mubr.f32.mxu0 0.0
    %v731 = vand.u32 %v156, 4294901760
    %732 = vmatmul.mubr.f32.gmra.mxu0 %v731
    %v733 = vpop.f32.mrf.mxu0
    %v734 = vadd.f32 %v644, %v733
    %v735 = vpop.f32.mrf.mxu0
    %736 = vdwg.mxu0
    %v737 = vmax.f32 %v716, 0.0
    %v738 = vmax.f32 %v722, 0.0
    %v739 = vmax.f32 %v728, 0.0
    %v740 = vmax.f32 %v734, 0.0
    %v741 = vld [vmem:[#allocation2] sm:$0x1]
    %743 = vset.pattern.permute.xlu0 0
    %744 = vperm.xlu0 %743, %v132
    %v745 = vpop.permute.xlu0 %744
    %v748 = vlaneseq
    %v749 = vshrl.u32 %v748, 7
    %v750 = vsub.s32 0, %v749
    %v751 = vrot.slane %v741, %v750
    %v753 = vmul.f32 %v745, %v751
    %v754 = vmul.f32 %v753, 6.2831855
    %v755 = vand.u32 2147483647, %v754
    %vm756 = vcmp.le.f32.partialorder %v755, 0.7853982
    %vm757 = vcmp.lt.s32.totalorder %v754, 0
    %v758 = vand.u32 %v754, 2139095040
    %v759 = vshrl.u32 %v758, 23
    %v760 = vsub.s32 %v759, 127
    %v761 = vand.u32 2147483647, %v754
    %v762 = vand.u32 %v761, 8388607
    %v763 = vor.u32 %v762, 8388608
    %v764 = vsub.s32 0, %v763
    %v765 = vadd.s32 %v760, 1
    %vm766 = vcmp.gt.s32.totalorder %v765, 0
    %v767 = vsel %vm766, %v765, 0
    %v768 = vshrl.u32 %v767, 5
    %v769 = vand.u32 %v767, 31
    %v770 = vsub.s32 32, %v769
    %v771 = vshrl.u32 683565275, %v770
    %v772 = vshll.u32 683565275, %v769
    %v773 = vshrl.u32 2475754826, %v770
    %v774 = vor.u32 %v772, %v773
    %v775 = vshll.u32 2475754826, %v769
    %v776 = vshrl.u32 2131351028, %v770
    %v777 = vor.u32 %v775, %v776
    %v778 = vshll.u32 2131351028, %v769
    %v779 = vshrl.u32 2102212464, %v770
    %v780 = vor.u32 %v778, %v779
    %v781 = vshll.u32 2102212464, %v769
    %v782 = vshrl.u32 920167782, %v770
    %v783 = vor.u32 %v781, %v782
    %v784 = vshll.u32 920167782, %v769
    %v785 = vshrl.u32 1326507024, %v770
    %v786 = vor.u32 %v784, %v785
    %vm787 = vcmp.lt.s32.totalorder %v768, 1
    %vm788 = vcmp.lt.s32.totalorder %v768, 2
    %vm789 = vcmp.lt.s32.totalorder %v768, 3
    %vm790 = vcmp.lt.s32.totalorder %v768, 4
    %v791 = vsel %vm787, %v771, %v774
    %v792 = vsel %vm790, %v780, 2102212464
    %v793 = vsel %vm789, %v777, %v792
    %v794 = vsel %vm788, %v791, %v793
    %v795 = vsel %vm787, %v774, %v777
    %v796 = vsel %vm790, %v783, 920167782
    %v797 = vsel %vm789, %v780, %v796
    %v798 = vsel %vm788, %v795, %v797
    %v799 = vsel %vm787, %v777, %v780
    %v800 = vsel %vm790, %v786, 1326507024
    %v801 = vsel %vm789, %v783, %v800
    %v802 = vsel %vm788, %v799, %v801
    %v803 = vshll.u32 %v763, 8
    %v804 = vmul.u32.u64.compose %v803, %v802
    %v805 = vextract.low.u32 %v804
    %v806 = vextract.high.u32 %v804
    %v807 = vmul.u32.u64.compose %v803, %v798
    %v808 = vextract.low.u32 %v807
    %v809 = vextract.high.u32 %v807
    %v810 = vmul.u32 %v803, %v794
    %v811 = vadd.s32 %v806, %v808
    %vm812 = vc.u32 %v806, %v808
    %v813 = vadd.s32 %v809, 1
    %v814 = vsel %vm812, %v813, %v809
    %v815 = vadd.s32 %v810, %v814
    %v816 = vadd.s32 %v815, 536870912
    %v817 = vshrl.u32 %v816, 30
    %v818 = vshll.u32 %v817, 30
    %v819 = vsub.s32 %v815, %v818
    %vm820 = vcmp.lt.s32.totalorder %v819, 0
    %v821 = vsub.s32 0, %v819
    %v822 = vsel %vm820, %v821, %v819
    %v823 = vclz %v822
    %v824 = vsub.s32 %v823, 2
    %vm825 = vcmp.gt.s32.totalorder 0, %v824
    %v826 = vsel %vm825, 0, %v824
    %v827 = vsub.s32 32, %v826
    %v828 = vshll.u32 %v819, %v826
    %v829 = vshrl.u32 %v811, %v827
    %v830 = vor.u32 %v828, %v829
    %v831 = vsub.s32 4294967266, %v826
    %v832 = vadd.s32 %v831, 127
    %v833 = vshll.u32 %v832, 23
    %v834 = vor.u32 4788187, %v833
    %v835 = vand.u32 2147483647, %v834
    %v837 = vcvt.s32.f32 %v830
    %v838 = vmul.f32 %v837, %v835
    %v839 = vxor.u32 %v838, 2147483648
    %v840 = vsel %vm757, %v839, %v838
    %v841 = vsub.s32 4, %v817
    %v842 = vsel %vm757, %v841, %v817
    %v843 = vsel %vm756, %v754, %v840
    %v844 = vsel %vm756, 0, %v842
    %v845 = vcosq.f32.pop %v843
    %v846 = vsinq.f32.pop %v843
    %vm847 = vweird.f32 %v754
    %v848 = vadd.s32 %v844, 3
    %v849 = vand.u32 %v848, 3
    %vm850 = vcmp.lt.s32.totalorder %v849, 2
    %vm851 = vcmp.eq.s32.totalorder %v849, 0
    %v852 = vxor.u32 %v846, 2147483648
    %v853 = vsel %vm851, %v845, %v852
    %vm854 = vcmp.eq.s32.totalorder %v849, 2
    %v855 = vxor.u32 %v845, 2147483648
    %v856 = vsel %vm854, %v855, %v846
    %v857 = vsel %vm850, %v853, %v856
    %v858 = vsel %vm847, nan, %v857
    %v859 = vld [vmem:[%s6] sm:$0xff]
    %v860 = vld [vmem:[%s6 + $0x8] sm:$0xff]
    %v861 = vand.u32 2147483647, %v754
    %vm862 = vcmp.le.f32.partialorder %v861, 0.7853982
    %vm863 = vcmp.lt.s32.totalorder %v754, 0
    %v864 = vand.u32 %v754, 2139095040
    %v865 = vshrl.u32 %v864, 23
    %v866 = vsub.s32 %v865, 127
    %v867 = vand.u32 2147483647, %v754
    %v868 = vand.u32 %v867, 8388607
    %v869 = vor.u32 %v868, 8388608
    %v870 = vsub.s32 0, %v869
    %v871 = vadd.s32 %v866, 1
    %vm872 = vcmp.gt.s32.totalorder %v871, 0
    %v873 = vsel %vm872, %v871, 0
    %v874 = vshrl.u32 %v873, 5
    %v875 = vand.u32 %v873, 31
    %v876 = vsub.s32 32, %v875
    %v877 = vshrl.u32 683565275, %v876
    %v878 = vshll.u32 683565275, %v875
    %v879 = vshrl.u32 2475754826, %v876
    %v880 = vor.u32 %v878, %v879
    %v881 = vshll.u32 2475754826, %v875
    %v882 = vshrl.u32 2131351028, %v876
    %v883 = vor.u32 %v881, %v882
    %v884 = vshll.u32 2131351028, %v875
    %v885 = vshrl.u32 2102212464, %v876
    %v886 = vor.u32 %v884, %v885
    %v887 = vshll.u32 2102212464, %v875
    %v888 = vshrl.u32 920167782, %v876
    %v889 = vor.u32 %v887, %v888
    %v890 = vshll.u32 920167782, %v875
    %v891 = vshrl.u32 1326507024, %v876
    %v892 = vor.u32 %v890, %v891
    %vm893 = vcmp.lt.s32.totalorder %v874, 1
    %vm894 = vcmp.lt.s32.totalorder %v874, 2
    %vm895 = vcmp.lt.s32.totalorder %v874, 3
    %vm896 = vcmp.lt.s32.totalorder %v874, 4
    %v897 = vsel %vm893, %v877, %v880
    %v898 = vsel %vm896, %v886, 2102212464
    %v899 = vsel %vm895, %v883, %v898
    %v900 = vsel %vm894, %v897, %v899
    %v901 = vsel %vm893, %v880, %v883
    %v902 = vsel %vm896, %v889, 920167782
    %v903 = vsel %vm895, %v886, %v902
    %v904 = vsel %vm894, %v901, %v903
    %v905 = vsel %vm893, %v883, %v886
    %v906 = vsel %vm896, %v892, 1326507024
    %v907 = vsel %vm895, %v889, %v906
    %v908 = vsel %vm894, %v905, %v907
    %v909 = vshll.u32 %v869, 8
    %v910 = vmul.u32.u64.compose %v909, %v908
    %v911 = vextract.low.u32 %v910
    %v912 = vextract.high.u32 %v910
    %v913 = vmul.u32.u64.compose %v909, %v904
    %v914 = vextract.low.u32 %v913
    %v915 = vextract.high.u32 %v913
    %v916 = vmul.u32 %v909, %v900
    %v917 = vadd.s32 %v912, %v914
    %vm918 = vc.u32 %v912, %v914
    %v919 = vadd.s32 %v915, 1
    %v920 = vsel %vm918, %v919, %v915
    %v921 = vadd.s32 %v916, %v920
    %v922 = vadd.s32 %v921, 536870912
    %v923 = vshrl.u32 %v922, 30
    %v924 = vshll.u32 %v923, 30
    %v925 = vsub.s32 %v921, %v924
    %vm926 = vcmp.lt.s32.totalorder %v925, 0
    %v927 = vsub.s32 0, %v925
    %v928 = vsel %vm926, %v927, %v925
    %v929 = vclz %v928
    %v930 = vsub.s32 %v929, 2
    %vm931 = vcmp.gt.s32.totalorder 0, %v930
    %v932 = vsel %vm931, 0, %v930
    %v933 = vsub.s32 32, %v932
    %v934 = vshll.u32 %v925, %v932
    %v935 = vshrl.u32 %v917, %v933
    %v936 = vor.u32 %v934, %v935
    %v937 = vsub.s32 4294967266, %v932
    %v938 = vadd.s32 %v937, 127
    %v939 = vshll.u32 %v938, 23
    %v940 = vor.u32 4788187, %v939
    %v941 = vand.u32 2147483647, %v940
    %v943 = vcvt.s32.f32 %v936
    %v944 = vmul.f32 %v943, %v941
    %v945 = vxor.u32 %v944, 2147483648
    %v946 = vsel %vm863, %v945, %v944
    %v947 = vsub.s32 4, %v923
    %v948 = vsel %vm863, %v947, %v923
    %v949 = vsel %vm862, %v754, %v946
    %v950 = vsel %vm862, 0, %v948
    %v951 = vcosq.f32.pop %v949
    %v952 = vsinq.f32.pop %v949
    %vm953 = vweird.f32 %v754
    %v954 = vand.u32 %v950, 3
    %vm955 = vcmp.lt.s32.totalorder %v954, 2
    %vm956 = vcmp.eq.s32.totalorder %v954, 0
    %v957 = vxor.u32 %v952, 2147483648
    %v958 = vsel %vm956, %v951, %v957
    %vm959 = vcmp.eq.s32.totalorder %v954, 2
    %v960 = vxor.u32 %v951, 2147483648
    %v961 = vsel %vm959, %v960, %v952
    %v962 = vsel %vm955, %v958, %v961
    %v963 = vsel %vm953, nan, %v962
    %v964 = vld [vmem:[#allocation8] sm:$0xff]
    %v965 = vld [vmem:[#allocation8 + $0x8] sm:$0xff]
    %vm966 = vcmask 130048
    %v968 = vsel %vm966, %v963, 0
    %970 = vmatprep.subr.mxu0 0.0
    %971 = vmatpush1.msra.mxu0 0.0
    %972 = vmatprep.subr.mxu0 0.0
    %973 = vmatpush1.msra.mxu0 0.0
    %974 = vmatprep.subr.mxu0 0.0
    %975 = vmatpush1.msra.mxu0 0.0
    %976 = vmatprep.subr.mxu0 0.0
    %977 = vmatpush1.msra.mxu0 0.0
    %978 = vmatprep.subr.mxu0 0.0
    %979 = vmatpush1.msra.mxu0 0.0
    %980 = vmatprep.subr.mxu0 0.0
    %981 = vmatpush1.msra.mxu0 0.0
    %982 = vmatprep.subr.mxu0 0.0
    %983 = vmatpush1.msra.mxu0 0.0
    %984 = vmatprep.subr.mxu0 0.0
    %985 = vmatpush1.msra.mxu0 0.0
    %986 = vmatprep.subr.mxu0 0.0
    %987 = vmatpush1.msra.mxu0 0.0
    %988 = vmatprep.subr.mxu0 0.0
    %989 = vmatpush1.msra.mxu0 0.0
    %990 = vmatprep.subr.mxu0 0.0
    %991 = vmatpush1.msra.mxu0 0.0
    %992 = vmatprep.subr.mxu0 0.0
    %993 = vmatpush1.msra.mxu0 0.0
    %994 = vmatprep.subr.mxu0 0.0
    %995 = vmatpush1.msra.mxu0 0.0
    %996 = vmatprep.subr.mxu0 0.0
    %997 = vmatpush1.msra.mxu0 0.0
    %998 = vmatprep.subr.mxu0 0.0
    %v999 = vand.u32 %v965, 4294901760
    %1000 = vmatpush1.msra.mxu0 %v999
    %1001 = vmatprep.subr.mxu0 0.0
    %v1002 = vand.u32 %v964, 4294901760
    %1003 = vmatpush1.msra.mxu0 %v1002
    %1004 = vmatprep.subr.mxu0 0.0
    %1005 = vmatpush2.msra.mxu0 0.0
    %1006 = vmatprep.subr.mxu0 0.0
    %1007 = vmatpush2.msra.mxu0 0.0
    %1008 = vmatprep.subr.mxu0 0.0
    %1009 = vmatpush2.msra.mxu0 0.0
    %1010 = vmatprep.subr.mxu0 0.0
    %1011 = vmatpush2.msra.mxu0 0.0
    %1012 = vmatprep.subr.mxu0 0.0
    %1013 = vmatpush2.msra.mxu0 0.0
    %1014 = vmatprep.subr.mxu0 0.0
    %1015 = vmatpush2.msra.mxu0 0.0
    %1016 = vmatprep.subr.mxu0 0.0
    %1017 = vmatpush2.msra.mxu0 0.0
    %1018 = vmatprep.subr.mxu0 0.0
    %1019 = vmatpush2.msra.mxu0 0.0
    %1020 = vmatprep.subr.mxu0 0.0
    %1021 = vmatpush2.msra.mxu0 0.0
    %1022 = vmatprep.subr.mxu0 0.0
    %1023 = vmatpush2.msra.mxu0 0.0
    %1024 = vmatprep.subr.mxu0 0.0
    %1025 = vmatpush2.msra.mxu0 0.0
    %1026 = vmatprep.subr.mxu0 0.0
    %1027 = vmatpush2.msra.mxu0 0.0
    %1028 = vmatprep.subr.mxu0 0.0
    %1029 = vmatpush2.msra.mxu0 0.0
    %1030 = vmatprep.subr.mxu0 0.0
    %1031 = vmatpush2.msra.mxu0 0.0
    %1032 = vmatprep.subr.mxu0 0.0
    %1033 = vmatpush2.msra.mxu0 0.0
    %1034 = vmatprep.subr.mxu0 0.0
    %1035 = vmatpush2.msra.mxu0 0.0
    %1036 = vmatprep.mubr.f32.mxu0 0.0
    %v1037 = vand.u32 %v968, 4294901760
    %v1038 = vsub.f32 %v968, %v1037
    %v1039 = vand.u32 %v1038, 4294901760
    %v1040 = vsub.f32 %v1038, %v1039
    %v1041 = vand.u32 %v1040, 4294901760
    %1042 = vmatmul.mubr.f32.gmra.mxu0 %v1041
    %v1043 = vpop.f32.mrf.mxu0
    %v1044 = vadd.f32 0.0, %v1043
    %v1045 = vpop.f32.mrf.mxu0
    %1046 = vdwg.mxu0
    %1047 = vmatprep.subr.mxu0 0.0
    %1048 = vmatpush1.msra.mxu0 0.0
    %1049 = vmatprep.subr.mxu0 0.0
    %1050 = vmatpush1.msra.mxu0 0.0
    %1051 = vmatprep.subr.mxu0 0.0
    %1052 = vmatpush1.msra.mxu0 0.0
    %1053 = vmatprep.subr.mxu0 0.0
    %1054 = vmatpush1.msra.mxu0 0.0
    %1055 = vmatprep.subr.mxu0 0.0
    %1056 = vmatpush1.msra.mxu0 0.0
    %1057 = vmatprep.subr.mxu0 0.0
    %1058 = vmatpush1.msra.mxu0 0.0
    %1059 = vmatprep.subr.mxu0 0.0
    %1060 = vmatpush1.msra.mxu0 0.0
    %1061 = vmatprep.subr.mxu0 0.0
    %1062 = vmatpush1.msra.mxu0 0.0
    %1063 = vmatprep.subr.mxu0 0.0
    %1064 = vmatpush1.msra.mxu0 0.0
    %1065 = vmatprep.subr.mxu0 0.0
    %1066 = vmatpush1.msra.mxu0 0.0
    %1067 = vmatprep.subr.mxu0 0.0
    %1068 = vmatpush1.msra.mxu0 0.0
    %1069 = vmatprep.subr.mxu0 0.0
    %1070 = vmatpush1.msra.mxu0 0.0
    %1071 = vmatprep.subr.mxu0 0.0
    %1072 = vmatpush1.msra.mxu0 0.0
    %1073 = vmatprep.subr.mxu0 0.0
    %1074 = vmatpush1.msra.mxu0 0.0
    %1075 = vmatprep.subr.mxu0 0.0
    %v1076 = vand.u32 %v965, 4294901760
    %v1077 = vsub.f32 %v965, %v1076
    %v1078 = vand.u32 %v1077, 4294901760
    %v1079 = vsub.f32 %v1077, %v1078
    %v1080 = vand.u32 %v1079, 4294901760
    %1081 = vmatpush1.msra.mxu0 %v1080
    %1082 = vmatprep.subr.mxu0 0.0
    %v1083 = vand.u32 %v964, 4294901760
    %v1084 = vsub.f32 %v964, %v1083
    %v1085 = vand.u32 %v1084, 4294901760
    %v1086 = vsub.f32 %v1084, %v1085
    %v1087 = vand.u32 %v1086, 4294901760
    %1088 = vmatpush1.msra.mxu0 %v1087
    %1089 = vmatprep.subr.mxu0 0.0
    %1090 = vmatpush2.msra.mxu0 0.0
    %1091 = vmatprep.subr.mxu0 0.0
    %1092 = vmatpush2.msra.mxu0 0.0
    %1093 = vmatprep.subr.mxu0 0.0
    %1094 = vmatpush2.msra.mxu0 0.0
    %1095 = vmatprep.subr.mxu0 0.0
    %1096 = vmatpush2.msra.mxu0 0.0
    %1097 = vmatprep.subr.mxu0 0.0
    %1098 = vmatpush2.msra.mxu0 0.0
    %1099 = vmatprep.subr.mxu0 0.0
    %1100 = vmatpush2.msra.mxu0 0.0
    %1101 = vmatprep.subr.mxu0 0.0
    %1102 = vmatpush2.msra.mxu0 0.0
    %1103 = vmatprep.subr.mxu0 0.0
    %1104 = vmatpush2.msra.mxu0 0.0
    %1105 = vmatprep.subr.mxu0 0.0
    %1106 = vmatpush2.msra.mxu0 0.0
    %1107 = vmatprep.subr.mxu0 0.0
    %1108 = vmatpush2.msra.mxu0 0.0
    %1109 = vmatprep.subr.mxu0 0.0
    %1110 = vmatpush2.msra.mxu0 0.0
    %1111 = vmatprep.subr.mxu0 0.0
    %1112 = vmatpush2.msra.mxu0 0.0
    %1113 = vmatprep.subr.mxu0 0.0
    %1114 = vmatpush2.msra.mxu0 0.0
    %1115 = vmatprep.subr.mxu0 0.0
    %1116 = vmatpush2.msra.mxu0 0.0
    %1117 = vmatprep.subr.mxu0 0.0
    %1118 = vmatpush2.msra.mxu0 0.0
    %1119 = vmatprep.subr.mxu0 0.0
    %1120 = vmatpush2.msra.mxu0 0.0
    %1121 = vmatprep.mubr.f32.mxu0 0.0
    %v1122 = vand.u32 %v968, 4294901760
    %1123 = vmatmul.mubr.f32.gmra.mxu0 %v1122
    %v1124 = vpop.f32.mrf.mxu0
    %v1125 = vadd.f32 %v1044, %v1124
    %v1126 = vpop.f32.mrf.mxu0
    %1127 = vdwg.mxu0
    %1128 = vmatprep.subr.mxu0 0.0
    %1129 = vmatpush1.msra.mxu0 0.0
    %1130 = vmatprep.subr.mxu0 0.0
    %1131 = vmatpush1.msra.mxu0 0.0
    %1132 = vmatprep.subr.mxu0 0.0
    %1133 = vmatpush1.msra.mxu0 0.0
    %1134 = vmatprep.subr.mxu0 0.0
    %1135 = vmatpush1.msra.mxu0 0.0
    %1136 = vmatprep.subr.mxu0 0.0
    %1137 = vmatpush1.msra.mxu0 0.0
    %1138 = vmatprep.subr.mxu0 0.0
    %1139 = vmatpush1.msra.mxu0 0.0
    %1140 = vmatprep.subr.mxu0 0.0
    %1141 = vmatpush1.msra.mxu0 0.0
    %1142 = vmatprep.subr.mxu0 0.0
    %1143 = vmatpush1.msra.mxu0 0.0
    %1144 = vmatprep.subr.mxu0 0.0
    %1145 = vmatpush1.msra.mxu0 0.0
    %1146 = vmatprep.subr.mxu0 0.0
    %1147 = vmatpush1.msra.mxu0 0.0
    %1148 = vmatprep.subr.mxu0 0.0
    %1149 = vmatpush1.msra.mxu0 0.0
    %1150 = vmatprep.subr.mxu0 0.0
    %1151 = vmatpush1.msra.mxu0 0.0
    %1152 = vmatprep.subr.mxu0 0.0
    %1153 = vmatpush1.msra.mxu0 0.0
    %1154 = vmatprep.subr.mxu0 0.0
    %1155 = vmatpush1.msra.mxu0 0.0
    %1156 = vmatprep.subr.mxu0 0.0
    %v1157 = vand.u32 %v965, 4294901760
    %v1158 = vsub.f32 %v965, %v1157
    %1159 = vmatpush1.msra.mxu0 %v1158
    %1160 = vmatprep.subr.mxu0 0.0
    %v1161 = vand.u32 %v964, 4294901760
    %v1162 = vsub.f32 %v964, %v1161
    %1163 = vmatpush1.msra.mxu0 %v1162
    %1164 = vmatprep.subr.mxu0 0.0
    %1165 = vmatpush2.msra.mxu0 0.0
    %1166 = vmatprep.subr.mxu0 0.0
    %1167 = vmatpush2.msra.mxu0 0.0
    %1168 = vmatprep.subr.mxu0 0.0
    %1169 = vmatpush2.msra.mxu0 0.0
    %1170 = vmatprep.subr.mxu0 0.0
    %1171 = vmatpush2.msra.mxu0 0.0
    %1172 = vmatprep.subr.mxu0 0.0
    %1173 = vmatpush2.msra.mxu0 0.0
    %1174 = vmatprep.subr.mxu0 0.0
    %1175 = vmatpush2.msra.mxu0 0.0
    %1176 = vmatprep.subr.mxu0 0.0
    %1177 = vmatpush2.msra.mxu0 0.0
    %1178 = vmatprep.subr.mxu0 0.0
    %1179 = vmatpush2.msra.mxu0 0.0
    %1180 = vmatprep.subr.mxu0 0.0
    %1181 = vmatpush2.msra.mxu0 0.0
    %1182 = vmatprep.subr.mxu0 0.0
    %1183 = vmatpush2.msra.mxu0 0.0
    %1184 = vmatprep.subr.mxu0 0.0
    %1185 = vmatpush2.msra.mxu0 0.0
    %1186 = vmatprep.subr.mxu0 0.0
    %1187 = vmatpush2.msra.mxu0 0.0
    %1188 = vmatprep.subr.mxu0 0.0
    %1189 = vmatpush2.msra.mxu0 0.0
    %1190 = vmatprep.subr.mxu0 0.0
    %1191 = vmatpush2.msra.mxu0 0.0
    %1192 = vmatprep.subr.mxu0 0.0
    %1193 = vmatpush2.msra.mxu0 0.0
    %1194 = vmatprep.subr.mxu0 0.0
    %1195 = vmatpush2.msra.mxu0 0.0
    %1196 = vmatprep.mubr.f32.mxu0 0.0
    %v1197 = vand.u32 %v968, 4294901760
    %v1198 = vsub.f32 %v968, %v1197
    %1199 = vmatmul.mubr.f32.gmra.mxu0 %v1198
    %v1200 = vpop.f32.mrf.mxu0
    %v1201 = vadd.f32 %v1125, %v1200
    %v1202 = vpop.f32.mrf.mxu0
    %1203 = vdwg.mxu0
    %1204 = vmatprep.subr.mxu0 0.0
    %1205 = vmatpush1.msra.mxu0 0.0
    %1206 = vmatprep.subr.mxu0 0.0
    %1207 = vmatpush1.msra.mxu0 0.0
    %1208 = vmatprep.subr.mxu0 0.0
    %1209 = vmatpush1.msra.mxu0 0.0
    %1210 = vmatprep.subr.mxu0 0.0
    %1211 = vmatpush1.msra.mxu0 0.0
    %1212 = vmatprep.subr.mxu0 0.0
    %1213 = vmatpush1.msra.mxu0 0.0
    %1214 = vmatprep.subr.mxu0 0.0
    %1215 = vmatpush1.msra.mxu0 0.0
    %1216 = vmatprep.subr.mxu0 0.0
    %1217 = vmatpush1.msra.mxu0 0.0
    %1218 = vmatprep.subr.mxu0 0.0
    %1219 = vmatpush1.msra.mxu0 0.0
    %1220 = vmatprep.subr.mxu0 0.0
    %1221 = vmatpush1.msra.mxu0 0.0
    %1222 = vmatprep.subr.mxu0 0.0
    %1223 = vmatpush1.msra.mxu0 0.0
    %1224 = vmatprep.subr.mxu0 0.0
    %1225 = vmatpush1.msra.mxu0 0.0
    %1226 = vmatprep.subr.mxu0 0.0
    %1227 = vmatpush1.msra.mxu0 0.0
    %1228 = vmatprep.subr.mxu0 0.0
    %1229 = vmatpush1.msra.mxu0 0.0
    %1230 = vmatprep.subr.mxu0 0.0
    %1231 = vmatpush1.msra.mxu0 0.0
    %1232 = vmatprep.subr.mxu0 0.0
    %v1233 = vand.u32 %v965, 4294901760
    %1234 = vmatpush1.msra.mxu0 %v1233
    %1235 = vmatprep.subr.mxu0 0.0
    %v1236 = vand.u32 %v964, 4294901760
    %1237 = vmatpush1.msra.mxu0 %v1236
    %1238 = vmatprep.subr.mxu0 0.0
    %1239 = vmatpush2.msra.mxu0 0.0
    %1240 = vmatprep.subr.mxu0 0.0
    %1241 = vmatpush2.msra.mxu0 0.0
    %1242 = vmatprep.subr.mxu0 0.0
    %1243 = vmatpush2.msra.mxu0 0.0
    %1244 = vmatprep.subr.mxu0 0.0
    %1245 = vmatpush2.msra.mxu0 0.0
    %1246 = vmatprep.subr.mxu0 0.0
    %1247 = vmatpush2.msra.mxu0 0.0
    %1248 = vmatprep.subr.mxu0 0.0
    %1249 = vmatpush2.msra.mxu0 0.0
    %1250 = vmatprep.subr.mxu0 0.0
    %1251 = vmatpush2.msra.mxu0 0.0
    %1252 = vmatprep.subr.mxu0 0.0
    %1253 = vmatpush2.msra.mxu0 0.0
    %1254 = vmatprep.subr.mxu0 0.0
    %1255 = vmatpush2.msra.mxu0 0.0
    %1256 = vmatprep.subr.mxu0 0.0
    %1257 = vmatpush2.msra.mxu0 0.0
    %1258 = vmatprep.subr.mxu0 0.0
    %1259 = vmatpush2.msra.mxu0 0.0
    %1260 = vmatprep.subr.mxu0 0.0
    %1261 = vmatpush2.msra.mxu0 0.0
    %1262 = vmatprep.subr.mxu0 0.0
    %1263 = vmatpush2.msra.mxu0 0.0
    %1264 = vmatprep.subr.mxu0 0.0
    %1265 = vmatpush2.msra.mxu0 0.0
    %1266 = vmatprep.subr.mxu0 0.0
    %1267 = vmatpush2.msra.mxu0 0.0
    %1268 = vmatprep.subr.mxu0 0.0
    %1269 = vmatpush2.msra.mxu0 0.0
    %1270 = vmatprep.mubr.f32.mxu0 0.0
    %v1271 = vand.u32 %v968, 4294901760
    %v1272 = vsub.f32 %v968, %v1271
    %v1273 = vand.u32 %v1272, 4294901760
    %1274 = vmatmul.mubr.f32.gmra.mxu0 %v1273
    %v1275 = vpop.f32.mrf.mxu0
    %v1276 = vadd.f32 %v1201, %v1275
    %v1277 = vpop.f32.mrf.mxu0
    %1278 = vdwg.mxu0
    %1279 = vmatprep.subr.mxu0 0.0
    %1280 = vmatpush1.msra.mxu0 0.0
    %1281 = vmatprep.subr.mxu0 0.0
    %1282 = vmatpush1.msra.mxu0 0.0
    %1283 = vmatprep.subr.mxu0 0.0
    %1284 = vmatpush1.msra.mxu0 0.0
    %1285 = vmatprep.subr.mxu0 0.0
    %1286 = vmatpush1.msra.mxu0 0.0
    %1287 = vmatprep.subr.mxu0 0.0
    %1288 = vmatpush1.msra.mxu0 0.0
    %1289 = vmatprep.subr.mxu0 0.0
    %1290 = vmatpush1.msra.mxu0 0.0
    %1291 = vmatprep.subr.mxu0 0.0
    %1292 = vmatpush1.msra.mxu0 0.0
    %1293 = vmatprep.subr.mxu0 0.0
    %1294 = vmatpush1.msra.mxu0 0.0
    %1295 = vmatprep.subr.mxu0 0.0
    %1296 = vmatpush1.msra.mxu0 0.0
    %1297 = vmatprep.subr.mxu0 0.0
    %1298 = vmatpush1.msra.mxu0 0.0
    %1299 = vmatprep.subr.mxu0 0.0
    %1300 = vmatpush1.msra.mxu0 0.0
    %1301 = vmatprep.subr.mxu0 0.0
    %1302 = vmatpush1.msra.mxu0 0.0
    %1303 = vmatprep.subr.mxu0 0.0
    %1304 = vmatpush1.msra.mxu0 0.0
    %1305 = vmatprep.subr.mxu0 0.0
    %1306 = vmatpush1.msra.mxu0 0.0
    %1307 = vmatprep.subr.mxu0 0.0
    %v1308 = vand.u32 %v965, 4294901760
    %v1309 = vsub.f32 %v965, %v1308
    %v1310 = vand.u32 %v1309, 4294901760
    %1311 = vmatpush1.msra.mxu0 %v1310
    %1312 = vmatprep.subr.mxu0 0.0
    %v1313 = vand.u32 %v964, 4294901760
    %v1314 = vsub.f32 %v964, %v1313
    %v1315 = vand.u32 %v1314, 4294901760
    %1316 = vmatpush1.msra.mxu0 %v1315
    %1317 = vmatprep.subr.mxu0 0.0
    %1318 = vmatpush2.msra.mxu0 0.0
    %1319 = vmatprep.subr.mxu0 0.0
    %1320 = vmatpush2.msra.mxu0 0.0
    %1321 = vmatprep.subr.mxu0 0.0
    %1322 = vmatpush2.msra.mxu0 0.0
    %1323 = vmatprep.subr.mxu0 0.0
    %1324 = vmatpush2.msra.mxu0 0.0
    %1325 = vmatprep.subr.mxu0 0.0
    %1326 = vmatpush2.msra.mxu0 0.0
    %1327 = vmatprep.subr.mxu0 0.0
    %1328 = vmatpush2.msra.mxu0 0.0
    %1329 = vmatprep.subr.mxu0 0.0
    %1330 = vmatpush2.msra.mxu0 0.0
    %1331 = vmatprep.subr.mxu0 0.0
    %1332 = vmatpush2.msra.mxu0 0.0
    %1333 = vmatprep.subr.mxu0 0.0
    %1334 = vmatpush2.msra.mxu0 0.0
    %1335 = vmatprep.subr.mxu0 0.0
    %1336 = vmatpush2.msra.mxu0 0.0
    %1337 = vmatprep.subr.mxu0 0.0
    %1338 = vmatpush2.msra.mxu0 0.0
    %1339 = vmatprep.subr.mxu0 0.0
    %1340 = vmatpush2.msra.mxu0 0.0
    %1341 = vmatprep.subr.mxu0 0.0
    %1342 = vmatpush2.msra.mxu0 0.0
    %1343 = vmatprep.subr.mxu0 0.0
    %1344 = vmatpush2.msra.mxu0 0.0
    %1345 = vmatprep.subr.mxu0 0.0
    %1346 = vmatpush2.msra.mxu0 0.0
    %1347 = vmatprep.subr.mxu0 0.0
    %1348 = vmatpush2.msra.mxu0 0.0
    %1349 = vmatprep.mubr.f32.mxu0 0.0
    %v1350 = vand.u32 %v968, 4294901760
    %1351 = vmatmul.mubr.f32.gmra.mxu0 %v1350
    %v1352 = vpop.f32.mrf.mxu0
    %v1353 = vadd.f32 %v1276, %v1352
    %v1354 = vpop.f32.mrf.mxu0
    %1355 = vdwg.mxu0
    %1356 = vmatprep.subr.mxu0 0.0
    %1357 = vmatpush1.msra.mxu0 0.0
    %1358 = vmatprep.subr.mxu0 0.0
    %1359 = vmatpush1.msra.mxu0 0.0
    %1360 = vmatprep.subr.mxu0 0.0
    %1361 = vmatpush1.msra.mxu0 0.0
    %1362 = vmatprep.subr.mxu0 0.0
    %1363 = vmatpush1.msra.mxu0 0.0
    %1364 = vmatprep.subr.mxu0 0.0
    %1365 = vmatpush1.msra.mxu0 0.0
    %1366 = vmatprep.subr.mxu0 0.0
    %1367 = vmatpush1.msra.mxu0 0.0
    %1368 = vmatprep.subr.mxu0 0.0
    %1369 = vmatpush1.msra.mxu0 0.0
    %1370 = vmatprep.subr.mxu0 0.0
    %1371 = vmatpush1.msra.mxu0 0.0
    %1372 = vmatprep.subr.mxu0 0.0
    %1373 = vmatpush1.msra.mxu0 0.0
    %1374 = vmatprep.subr.mxu0 0.0
    %1375 = vmatpush1.msra.mxu0 0.0
    %1376 = vmatprep.subr.mxu0 0.0
    %1377 = vmatpush1.msra.mxu0 0.0
    %1378 = vmatprep.subr.mxu0 0.0
    %1379 = vmatpush1.msra.mxu0 0.0
    %1380 = vmatprep.subr.mxu0 0.0
    %1381 = vmatpush1.msra.mxu0 0.0
    %1382 = vmatprep.subr.mxu0 0.0
    %1383 = vmatpush1.msra.mxu0 0.0
    %1384 = vmatprep.subr.mxu0 0.0
    %v1385 = vand.u32 %v965, 4294901760
    %1386 = vmatpush1.msra.mxu0 %v1385
    %1387 = vmatprep.subr.mxu0 0.0
    %v1388 = vand.u32 %v964, 4294901760
    %1389 = vmatpush1.msra.mxu0 %v1388
    %1390 = vmatprep.subr.mxu0 0.0
    %1391 = vmatpush2.msra.mxu0 0.0
    %1392 = vmatprep.subr.mxu0 0.0
    %1393 = vmatpush2.msra.mxu0 0.0
    %1394 = vmatprep.subr.mxu0 0.0
    %1395 = vmatpush2.msra.mxu0 0.0
    %1396 = vmatprep.subr.mxu0 0.0
    %1397 = vmatpush2.msra.mxu0 0.0
    %1398 = vmatprep.subr.mxu0 0.0
    %1399 = vmatpush2.msra.mxu0 0.0
    %1400 = vmatprep.subr.mxu0 0.0
    %1401 = vmatpush2.msra.mxu0 0.0
    %1402 = vmatprep.subr.mxu0 0.0
    %1403 = vmatpush2.msra.mxu0 0.0
    %1404 = vmatprep.subr.mxu0 0.0
    %1405 = vmatpush2.msra.mxu0 0.0
    %1406 = vmatprep.subr.mxu0 0.0
    %1407 = vmatpush2.msra.mxu0 0.0
    %1408 = vmatprep.subr.mxu0 0.0
    %1409 = vmatpush2.msra.mxu0 0.0
    %1410 = vmatprep.subr.mxu0 0.0
    %1411 = vmatpush2.msra.mxu0 0.0
    %1412 = vmatprep.subr.mxu0 0.0
    %1413 = vmatpush2.msra.mxu0 0.0
    %1414 = vmatprep.subr.mxu0 0.0
    %1415 = vmatpush2.msra.mxu0 0.0
    %1416 = vmatprep.subr.mxu0 0.0
    %1417 = vmatpush2.msra.mxu0 0.0
    %1418 = vmatprep.subr.mxu0 0.0
    %1419 = vmatpush2.msra.mxu0 0.0
    %1420 = vmatprep.subr.mxu0 0.0
    %1421 = vmatpush2.msra.mxu0 0.0
    %1422 = vmatprep.mubr.f32.mxu0 0.0
    %v1423 = vand.u32 %v968, 4294901760
    %1424 = vmatmul.mubr.f32.gmra.mxu0 %v1423
    %v1425 = vpop.f32.mrf.mxu0
    %v1426 = vadd.f32 %v1353, %v1425
    %v1427 = vpop.f32.mrf.mxu0
    %1428 = vdwg.mxu0
    %v1430 = vsel %vm966, %v858, 0
    %1432 = vmatprep.subr.mxu0 0.0
    %1433 = vmatpush1.msra.mxu0 0.0
    %1434 = vmatprep.subr.mxu0 0.0
    %1435 = vmatpush1.msra.mxu0 0.0
    %1436 = vmatprep.subr.mxu0 0.0
    %1437 = vmatpush1.msra.mxu0 0.0
    %1438 = vmatprep.subr.mxu0 0.0
    %1439 = vmatpush1.msra.mxu0 0.0
    %1440 = vmatprep.subr.mxu0 0.0
    %1441 = vmatpush1.msra.mxu0 0.0
    %1442 = vmatprep.subr.mxu0 0.0
    %1443 = vmatpush1.msra.mxu0 0.0
    %1444 = vmatprep.subr.mxu0 0.0
    %1445 = vmatpush1.msra.mxu0 0.0
    %1446 = vmatprep.subr.mxu0 0.0
    %1447 = vmatpush1.msra.mxu0 0.0
    %1448 = vmatprep.subr.mxu0 0.0
    %1449 = vmatpush1.msra.mxu0 0.0
    %1450 = vmatprep.subr.mxu0 0.0
    %1451 = vmatpush1.msra.mxu0 0.0
    %1452 = vmatprep.subr.mxu0 0.0
    %1453 = vmatpush1.msra.mxu0 0.0
    %1454 = vmatprep.subr.mxu0 0.0
    %1455 = vmatpush1.msra.mxu0 0.0
    %1456 = vmatprep.subr.mxu0 0.0
    %1457 = vmatpush1.msra.mxu0 0.0
    %1458 = vmatprep.subr.mxu0 0.0
    %1459 = vmatpush1.msra.mxu0 0.0
    %1460 = vmatprep.subr.mxu0 0.0
    %v1461 = vand.u32 %v860, 4294901760
    %1462 = vmatpush1.msra.mxu0 %v1461
    %1463 = vmatprep.subr.mxu0 0.0
    %v1464 = vand.u32 %v859, 4294901760
    %1465 = vmatpush1.msra.mxu0 %v1464
    %1466 = vmatprep.subr.mxu0 0.0
    %1467 = vmatpush2.msra.mxu0 0.0
    %1468 = vmatprep.subr.mxu0 0.0
    %1469 = vmatpush2.msra.mxu0 0.0
    %1470 = vmatprep.subr.mxu0 0.0
    %1471 = vmatpush2.msra.mxu0 0.0
    %1472 = vmatprep.subr.mxu0 0.0
    %1473 = vmatpush2.msra.mxu0 0.0
    %1474 = vmatprep.subr.mxu0 0.0
    %1475 = vmatpush2.msra.mxu0 0.0
    %1476 = vmatprep.subr.mxu0 0.0
    %1477 = vmatpush2.msra.mxu0 0.0
    %1478 = vmatprep.subr.mxu0 0.0
    %1479 = vmatpush2.msra.mxu0 0.0
    %1480 = vmatprep.subr.mxu0 0.0
    %1481 = vmatpush2.msra.mxu0 0.0
    %1482 = vmatprep.subr.mxu0 0.0
    %1483 = vmatpush2.msra.mxu0 0.0
    %1484 = vmatprep.subr.mxu0 0.0
    %1485 = vmatpush2.msra.mxu0 0.0
    %1486 = vmatprep.subr.mxu0 0.0
    %1487 = vmatpush2.msra.mxu0 0.0
    %1488 = vmatprep.subr.mxu0 0.0
    %1489 = vmatpush2.msra.mxu0 0.0
    %1490 = vmatprep.subr.mxu0 0.0
    %1491 = vmatpush2.msra.mxu0 0.0
    %1492 = vmatprep.subr.mxu0 0.0
    %1493 = vmatpush2.msra.mxu0 0.0
    %1494 = vmatprep.subr.mxu0 0.0
    %1495 = vmatpush2.msra.mxu0 0.0
    %1496 = vmatprep.subr.mxu0 0.0
    %1497 = vmatpush2.msra.mxu0 0.0
    %1498 = vmatprep.mubr.f32.mxu0 0.0
    %v1499 = vand.u32 %v1430, 4294901760
    %v1500 = vsub.f32 %v1430, %v1499
    %v1501 = vand.u32 %v1500, 4294901760
    %v1502 = vsub.f32 %v1500, %v1501
    %v1503 = vand.u32 %v1502, 4294901760
    %1504 = vmatmul.mubr.f32.gmra.mxu0 %v1503
    %v1505 = vpop.f32.mrf.mxu0
    %v1506 = vadd.f32 %v1426, %v1505
    %v1507 = vpop.f32.mrf.mxu0
    %1508 = vdwg.mxu0
    %1509 = vmatprep.subr.mxu0 0.0
    %1510 = vmatpush1.msra.mxu0 0.0
    %1511 = vmatprep.subr.mxu0 0.0
    %1512 = vmatpush1.msra.mxu0 0.0
    %1513 = vmatprep.subr.mxu0 0.0
    %1514 = vmatpush1.msra.mxu0 0.0
    %1515 = vmatprep.subr.mxu0 0.0
    %1516 = vmatpush1.msra.mxu0 0.0
    %1517 = vmatprep.subr.mxu0 0.0
    %1518 = vmatpush1.msra.mxu0 0.0
    %1519 = vmatprep.subr.mxu0 0.0
    %1520 = vmatpush1.msra.mxu0 0.0
    %1521 = vmatprep.subr.mxu0 0.0
    %1522 = vmatpush1.msra.mxu0 0.0
    %1523 = vmatprep.subr.mxu0 0.0
    %1524 = vmatpush1.msra.mxu0 0.0
    %1525 = vmatprep.subr.mxu0 0.0
    %1526 = vmatpush1.msra.mxu0 0.0
    %1527 = vmatprep.subr.mxu0 0.0
    %1528 = vmatpush1.msra.mxu0 0.0
    %1529 = vmatprep.subr.mxu0 0.0
    %1530 = vmatpush1.msra.mxu0 0.0
    %1531 = vmatprep.subr.mxu0 0.0
    %1532 = vmatpush1.msra.mxu0 0.0
    %1533 = vmatprep.subr.mxu0 0.0
    %1534 = vmatpush1.msra.mxu0 0.0
    %1535 = vmatprep.subr.mxu0 0.0
    %1536 = vmatpush1.msra.mxu0 0.0
    %1537 = vmatprep.subr.mxu0 0.0
    %v1538 = vand.u32 %v860, 4294901760
    %v1539 = vsub.f32 %v860, %v1538
    %v1540 = vand.u32 %v1539, 4294901760
    %v1541 = vsub.f32 %v1539, %v1540
    %v1542 = vand.u32 %v1541, 4294901760
    %1543 = vmatpush1.msra.mxu0 %v1542
    %1544 = vmatprep.subr.mxu0 0.0
    %v1545 = vand.u32 %v859, 4294901760
    %v1546 = vsub.f32 %v859, %v1545
    %v1547 = vand.u32 %v1546, 4294901760
    %v1548 = vsub.f32 %v1546, %v1547
    %v1549 = vand.u32 %v1548, 4294901760
    %1550 = vmatpush1.msra.mxu0 %v1549
    %1551 = vmatprep.subr.mxu0 0.0
    %1552 = vmatpush2.msra.mxu0 0.0
    %1553 = vmatprep.subr.mxu0 0.0
    %1554 = vmatpush2.msra.mxu0 0.0
    %1555 = vmatprep.subr.mxu0 0.0
    %1556 = vmatpush2.msra.mxu0 0.0
    %1557 = vmatprep.subr.mxu0 0.0
    %1558 = vmatpush2.msra.mxu0 0.0
    %1559 = vmatprep.subr.mxu0 0.0
    %1560 = vmatpush2.msra.mxu0 0.0
    %1561 = vmatprep.subr.mxu0 0.0
    %1562 = vmatpush2.msra.mxu0 0.0
    %1563 = vmatprep.subr.mxu0 0.0
    %1564 = vmatpush2.msra.mxu0 0.0
    %1565 = vmatprep.subr.mxu0 0.0
    %1566 = vmatpush2.msra.mxu0 0.0
    %1567 = vmatprep.subr.mxu0 0.0
    %1568 = vmatpush2.msra.mxu0 0.0
    %1569 = vmatprep.subr.mxu0 0.0
    %1570 = vmatpush2.msra.mxu0 0.0
    %1571 = vmatprep.subr.mxu0 0.0
    %1572 = vmatpush2.msra.mxu0 0.0
    %1573 = vmatprep.subr.mxu0 0.0
    %1574 = vmatpush2.msra.mxu0 0.0
    %1575 = vmatprep.subr.mxu0 0.0
    %1576 = vmatpush2.msra.mxu0 0.0
    %1577 = vmatprep.subr.mxu0 0.0
    %1578 = vmatpush2.msra.mxu0 0.0
    %1579 = vmatprep.subr.mxu0 0.0
    %1580 = vmatpush2.msra.mxu0 0.0
    %1581 = vmatprep.subr.mxu0 0.0
    %1582 = vmatpush2.msra.mxu0 0.0
    %1583 = vmatprep.mubr.f32.mxu0 0.0
    %v1584 = vand.u32 %v1430, 4294901760
    %1585 = vmatmul.mubr.f32.gmra.mxu0 %v1584
    %v1586 = vpop.f32.mrf.mxu0
    %v1587 = vadd.f32 %v1506, %v1586
    %v1588 = vpop.f32.mrf.mxu0
    %1589 = vdwg.mxu0
    %1590 = vmatprep.subr.mxu0 0.0
    %1591 = vmatpush1.msra.mxu0 0.0
    %1592 = vmatprep.subr.mxu0 0.0
    %1593 = vmatpush1.msra.mxu0 0.0
    %1594 = vmatprep.subr.mxu0 0.0
    %1595 = vmatpush1.msra.mxu0 0.0
    %1596 = vmatprep.subr.mxu0 0.0
    %1597 = vmatpush1.msra.mxu0 0.0
    %1598 = vmatprep.subr.mxu0 0.0
    %1599 = vmatpush1.msra.mxu0 0.0
    %1600 = vmatprep.subr.mxu0 0.0
    %1601 = vmatpush1.msra.mxu0 0.0
    %1602 = vmatprep.subr.mxu0 0.0
    %1603 = vmatpush1.msra.mxu0 0.0
    %1604 = vmatprep.subr.mxu0 0.0
    %1605 = vmatpush1.msra.mxu0 0.0
    %1606 = vmatprep.subr.mxu0 0.0
    %1607 = vmatpush1.msra.mxu0 0.0
    %1608 = vmatprep.subr.mxu0 0.0
    %1609 = vmatpush1.msra.mxu0 0.0
    %1610 = vmatprep.subr.mxu0 0.0
    %1611 = vmatpush1.msra.mxu0 0.0
    %1612 = vmatprep.subr.mxu0 0.0
    %1613 = vmatpush1.msra.mxu0 0.0
    %1614 = vmatprep.subr.mxu0 0.0
    %1615 = vmatpush1.msra.mxu0 0.0
    %1616 = vmatprep.subr.mxu0 0.0
    %1617 = vmatpush1.msra.mxu0 0.0
    %1618 = vmatprep.subr.mxu0 0.0
    %v1619 = vand.u32 %v860, 4294901760
    %v1620 = vsub.f32 %v860, %v1619
    %1621 = vmatpush1.msra.mxu0 %v1620
    %1622 = vmatprep.subr.mxu0 0.0
    %v1623 = vand.u32 %v859, 4294901760
    %v1624 = vsub.f32 %v859, %v1623
    %1625 = vmatpush1.msra.mxu0 %v1624
    %1626 = vmatprep.subr.mxu0 0.0
    %1627 = vmatpush2.msra.mxu0 0.0
    %1628 = vmatprep.subr.mxu0 0.0
    %1629 = vmatpush2.msra.mxu0 0.0
    %1630 = vmatprep.subr.mxu0 0.0
    %1631 = vmatpush2.msra.mxu0 0.0
    %1632 = vmatprep.subr.mxu0 0.0
    %1633 = vmatpush2.msra.mxu0 0.0
    %1634 = vmatprep.subr.mxu0 0.0
    %1635 = vmatpush2.msra.mxu0 0.0
    %1636 = vmatprep.subr.mxu0 0.0
    %1637 = vmatpush2.msra.mxu0 0.0
    %1638 = vmatprep.subr.mxu0 0.0
    %1639 = vmatpush2.msra.mxu0 0.0
    %1640 = vmatprep.subr.mxu0 0.0
    %1641 = vmatpush2.msra.mxu0 0.0
    %1642 = vmatprep.subr.mxu0 0.0
    %1643 = vmatpush2.msra.mxu0 0.0
    %1644 = vmatprep.subr.mxu0 0.0
    %1645 = vmatpush2.msra.mxu0 0.0
    %1646 = vmatprep.subr.mxu0 0.0
    %1647 = vmatpush2.msra.mxu0 0.0
    %1648 = vmatprep.subr.mxu0 0.0
    %1649 = vmatpush2.msra.mxu0 0.0
    %1650 = vmatprep.subr.mxu0 0.0
    %1651 = vmatpush2.msra.mxu0 0.0
    %1652 = vmatprep.subr.mxu0 0.0
    %1653 = vmatpush2.msra.mxu0 0.0
    %1654 = vmatprep.subr.mxu0 0.0
    %1655 = vmatpush2.msra.mxu0 0.0
    %1656 = vmatprep.subr.mxu0 0.0
    %1657 = vmatpush2.msra.mxu0 0.0
    %1658 = vmatprep.mubr.f32.mxu0 0.0
    %v1659 = vand.u32 %v1430, 4294901760
    %v1660 = vsub.f32 %v1430, %v1659
    %1661 = vmatmul.mubr.f32.gmra.mxu0 %v1660
    %v1662 = vpop.f32.mrf.mxu0
    %v1663 = vadd.f32 %v1587, %v1662
    %v1664 = vpop.f32.mrf.mxu0
    %1665 = vdwg.mxu0
    %1666 = vmatprep.subr.mxu0 0.0
    %1667 = vmatpush1.msra.mxu0 0.0
    %1668 = vmatprep.subr.mxu0 0.0
    %1669 = vmatpush1.msra.mxu0 0.0
    %1670 = vmatprep.subr.mxu0 0.0
    %1671 = vmatpush1.msra.mxu0 0.0
    %1672 = vmatprep.subr.mxu0 0.0
    %1673 = vmatpush1.msra.mxu0 0.0
    %1674 = vmatprep.subr.mxu0 0.0
    %1675 = vmatpush1.msra.mxu0 0.0
    %1676 = vmatprep.subr.mxu0 0.0
    %1677 = vmatpush1.msra.mxu0 0.0
    %1678 = vmatprep.subr.mxu0 0.0
    %1679 = vmatpush1.msra.mxu0 0.0
    %1680 = vmatprep.subr.mxu0 0.0
    %1681 = vmatpush1.msra.mxu0 0.0
    %1682 = vmatprep.subr.mxu0 0.0
    %1683 = vmatpush1.msra.mxu0 0.0
    %1684 = vmatprep.subr.mxu0 0.0
    %1685 = vmatpush1.msra.mxu0 0.0
    %1686 = vmatprep.subr.mxu0 0.0
    %1687 = vmatpush1.msra.mxu0 0.0
    %1688 = vmatprep.subr.mxu0 0.0
    %1689 = vmatpush1.msra.mxu0 0.0
    %1690 = vmatprep.subr.mxu0 0.0
    %1691 = vmatpush1.msra.mxu0 0.0
    %1692 = vmatprep.subr.mxu0 0.0
    %1693 = vmatpush1.msra.mxu0 0.0
    %1694 = vmatprep.subr.mxu0 0.0
    %v1695 = vand.u32 %v860, 4294901760
    %1696 = vmatpush1.msra.mxu0 %v1695
    %1697 = vmatprep.subr.mxu0 0.0
    %v1698 = vand.u32 %v859, 4294901760
    %1699 = vmatpush1.msra.mxu0 %v1698
    %1700 = vmatprep.subr.mxu0 0.0
    %1701 = vmatpush2.msra.mxu0 0.0
    %1702 = vmatprep.subr.mxu0 0.0
    %1703 = vmatpush2.msra.mxu0 0.0
    %1704 = vmatprep.subr.mxu0 0.0
    %1705 = vmatpush2.msra.mxu0 0.0
    %1706 = vmatprep.subr.mxu0 0.0
    %1707 = vmatpush2.msra.mxu0 0.0
    %1708 = vmatprep.subr.mxu0 0.0
    %1709 = vmatpush2.msra.mxu0 0.0
    %1710 = vmatprep.subr.mxu0 0.0
    %1711 = vmatpush2.msra.mxu0 0.0
    %1712 = vmatprep.subr.mxu0 0.0
    %1713 = vmatpush2.msra.mxu0 0.0
    %1714 = vmatprep.subr.mxu0 0.0
    %1715 = vmatpush2.msra.mxu0 0.0
    %1716 = vmatprep.subr.mxu0 0.0
    %1717 = vmatpush2.msra.mxu0 0.0
    %1718 = vmatprep.subr.mxu0 0.0
    %1719 = vmatpush2.msra.mxu0 0.0
    %1720 = vmatprep.subr.mxu0 0.0
    %1721 = vmatpush2.msra.mxu0 0.0
    %1722 = vmatprep.subr.mxu0 0.0
    %1723 = vmatpush2.msra.mxu0 0.0
    %1724 = vmatprep.subr.mxu0 0.0
    %1725 = vmatpush2.msra.mxu0 0.0
    %1726 = vmatprep.subr.mxu0 0.0
    %1727 = vmatpush2.msra.mxu0 0.0
    %1728 = vmatprep.subr.mxu0 0.0
    %1729 = vmatpush2.msra.mxu0 0.0
    %1730 = vmatprep.subr.mxu0 0.0
    %1731 = vmatpush2.msra.mxu0 0.0
    %1732 = vmatprep.mubr.f32.mxu0 0.0
    %v1733 = vand.u32 %v1430, 4294901760
    %v1734 = vsub.f32 %v1430, %v1733
    %v1735 = vand.u32 %v1734, 4294901760
    %1736 = vmatmul.mubr.f32.gmra.mxu0 %v1735
    %v1737 = vpop.f32.mrf.mxu0
    %v1738 = vadd.f32 %v1663, %v1737
    %v1739 = vpop.f32.mrf.mxu0
    %1740 = vdwg.mxu0
    %1741 = vmatprep.subr.mxu0 0.0
    %1742 = vmatpush1.msra.mxu0 0.0
    %1743 = vmatprep.subr.mxu0 0.0
    %1744 = vmatpush1.msra.mxu0 0.0
    %1745 = vmatprep.subr.mxu0 0.0
    %1746 = vmatpush1.msra.mxu0 0.0
    %1747 = vmatprep.subr.mxu0 0.0
    %1748 = vmatpush1.msra.mxu0 0.0
    %1749 = vmatprep.subr.mxu0 0.0
    %1750 = vmatpush1.msra.mxu0 0.0
    %1751 = vmatprep.subr.mxu0 0.0
    %1752 = vmatpush1.msra.mxu0 0.0
    %1753 = vmatprep.subr.mxu0 0.0
    %1754 = vmatpush1.msra.mxu0 0.0
    %1755 = vmatprep.subr.mxu0 0.0
    %1756 = vmatpush1.msra.mxu0 0.0
    %1757 = vmatprep.subr.mxu0 0.0
    %1758 = vmatpush1.msra.mxu0 0.0
    %1759 = vmatprep.subr.mxu0 0.0
    %1760 = vmatpush1.msra.mxu0 0.0
    %1761 = vmatprep.subr.mxu0 0.0
    %1762 = vmatpush1.msra.mxu0 0.0
    %1763 = vmatprep.subr.mxu0 0.0
    %1764 = vmatpush1.msra.mxu0 0.0
    %1765 = vmatprep.subr.mxu0 0.0
    %1766 = vmatpush1.msra.mxu0 0.0
    %1767 = vmatprep.subr.mxu0 0.0
    %1768 = vmatpush1.msra.mxu0 0.0
    %1769 = vmatprep.subr.mxu0 0.0
    %v1770 = vand.u32 %v860, 4294901760
    %v1771 = vsub.f32 %v860, %v1770
    %v1772 = vand.u32 %v1771, 4294901760
    %1773 = vmatpush1.msra.mxu0 %v1772
    %1774 = vmatprep.subr.mxu0 0.0
    %v1775 = vand.u32 %v859, 4294901760
    %v1776 = vsub.f32 %v859, %v1775
    %v1777 = vand.u32 %v1776, 4294901760
    %1778 = vmatpush1.msra.mxu0 %v1777
    %1779 = vmatprep.subr.mxu0 0.0
    %1780 = vmatpush2.msra.mxu0 0.0
    %1781 = vmatprep.subr.mxu0 0.0
    %1782 = vmatpush2.msra.mxu0 0.0
    %1783 = vmatprep.subr.mxu0 0.0
    %1784 = vmatpush2.msra.mxu0 0.0
    %1785 = vmatprep.subr.mxu0 0.0
    %1786 = vmatpush2.msra.mxu0 0.0
    %1787 = vmatprep.subr.mxu0 0.0
    %1788 = vmatpush2.msra.mxu0 0.0
    %1789 = vmatprep.subr.mxu0 0.0
    %1790 = vmatpush2.msra.mxu0 0.0
    %1791 = vmatprep.subr.mxu0 0.0
    %1792 = vmatpush2.msra.mxu0 0.0
    %1793 = vmatprep.subr.mxu0 0.0
    %1794 = vmatpush2.msra.mxu0 0.0
    %1795 = vmatprep.subr.mxu0 0.0
    %1796 = vmatpush2.msra.mxu0 0.0
    %1797 = vmatprep.subr.mxu0 0.0
    %1798 = vmatpush2.msra.mxu0 0.0
    %1799 = vmatprep.subr.mxu0 0.0
    %1800 = vmatpush2.msra.mxu0 0.0
    %1801 = vmatprep.subr.mxu0 0.0
    %1802 = vmatpush2.msra.mxu0 0.0
    %1803 = vmatprep.subr.mxu0 0.0
    %1804 = vmatpush2.msra.mxu0 0.0
    %1805 = vmatprep.subr.mxu0 0.0
    %1806 = vmatpush2.msra.mxu0 0.0
    %1807 = vmatprep.subr.mxu0 0.0
    %1808 = vmatpush2.msra.mxu0 0.0
    %1809 = vmatprep.subr.mxu0 0.0
    %1810 = vmatpush2.msra.mxu0 0.0
    %1811 = vmatprep.mubr.f32.mxu0 0.0
    %v1812 = vand.u32 %v1430, 4294901760
    %1813 = vmatmul.mubr.f32.gmra.mxu0 %v1812
    %v1814 = vpop.f32.mrf.mxu0
    %v1815 = vadd.f32 %v1738, %v1814
    %v1816 = vpop.f32.mrf.mxu0
    %1817 = vdwg.mxu0
    %1818 = vmatprep.subr.mxu0 0.0
    %1819 = vmatpush1.msra.mxu0 0.0
    %1820 = vmatprep.subr.mxu0 0.0
    %1821 = vmatpush1.msra.mxu0 0.0
    %1822 = vmatprep.subr.mxu0 0.0
    %1823 = vmatpush1.msra.mxu0 0.0
    %1824 = vmatprep.subr.mxu0 0.0
    %1825 = vmatpush1.msra.mxu0 0.0
    %1826 = vmatprep.subr.mxu0 0.0
    %1827 = vmatpush1.msra.mxu0 0.0
    %1828 = vmatprep.subr.mxu0 0.0
    %1829 = vmatpush1.msra.mxu0 0.0
    %1830 = vmatprep.subr.mxu0 0.0
    %1831 = vmatpush1.msra.mxu0 0.0
    %1832 = vmatprep.subr.mxu0 0.0
    %1833 = vmatpush1.msra.mxu0 0.0
    %1834 = vmatprep.subr.mxu0 0.0
    %1835 = vmatpush1.msra.mxu0 0.0
    %1836 = vmatprep.subr.mxu0 0.0
    %1837 = vmatpush1.msra.mxu0 0.0
    %1838 = vmatprep.subr.mxu0 0.0
    %1839 = vmatpush1.msra.mxu0 0.0
    %1840 = vmatprep.subr.mxu0 0.0
    %1841 = vmatpush1.msra.mxu0 0.0
    %1842 = vmatprep.subr.mxu0 0.0
    %1843 = vmatpush1.msra.mxu0 0.0
    %1844 = vmatprep.subr.mxu0 0.0
    %1845 = vmatpush1.msra.mxu0 0.0
    %1846 = vmatprep.subr.mxu0 0.0
    %v1847 = vand.u32 %v860, 4294901760
    %1848 = vmatpush1.msra.mxu0 %v1847
    %1849 = vmatprep.subr.mxu0 0.0
    %v1850 = vand.u32 %v859, 4294901760
    %1851 = vmatpush1.msra.mxu0 %v1850
    %1852 = vmatprep.subr.mxu0 0.0
    %1853 = vmatpush2.msra.mxu0 0.0
    %1854 = vmatprep.subr.mxu0 0.0
    %1855 = vmatpush2.msra.mxu0 0.0
    %1856 = vmatprep.subr.mxu0 0.0
    %1857 = vmatpush2.msra.mxu0 0.0
    %1858 = vmatprep.subr.mxu0 0.0
    %1859 = vmatpush2.msra.mxu0 0.0
    %1860 = vmatprep.subr.mxu0 0.0
    %1861 = vmatpush2.msra.mxu0 0.0
    %1862 = vmatprep.subr.mxu0 0.0
    %1863 = vmatpush2.msra.mxu0 0.0
    %1864 = vmatprep.subr.mxu0 0.0
    %1865 = vmatpush2.msra.mxu0 0.0
    %1866 = vmatprep.subr.mxu0 0.0
    %1867 = vmatpush2.msra.mxu0 0.0
    %1868 = vmatprep.subr.mxu0 0.0
    %1869 = vmatpush2.msra.mxu0 0.0
    %1870 = vmatprep.subr.mxu0 0.0
    %1871 = vmatpush2.msra.mxu0 0.0
    %1872 = vmatprep.subr.mxu0 0.0
    %1873 = vmatpush2.msra.mxu0 0.0
    %1874 = vmatprep.subr.mxu0 0.0
    %1875 = vmatpush2.msra.mxu0 0.0
    %1876 = vmatprep.subr.mxu0 0.0
    %1877 = vmatpush2.msra.mxu0 0.0
    %1878 = vmatprep.subr.mxu0 0.0
    %1879 = vmatpush2.msra.mxu0 0.0
    %1880 = vmatprep.subr.mxu0 0.0
    %1881 = vmatpush2.msra.mxu0 0.0
    %1882 = vmatprep.subr.mxu0 0.0
    %1883 = vmatpush2.msra.mxu0 0.0
    %1884 = vmatprep.mubr.f32.mxu0 0.0
    %v1885 = vand.u32 %v1430, 4294901760
    %1886 = vmatmul.mubr.f32.gmra.mxu0 %v1885
    %v1887 = vpop.f32.mrf.mxu0
    %v1888 = vadd.f32 %v1815, %v1887
    %v1889 = vpop.f32.mrf.mxu0
    %1890 = vdwg.mxu0
    %v1891 = vld [vmem:[%s8] sm:$0x1]
    %v1893 = vlaneseq
    %v1894 = vshrl.u32 %v1893, 7
    %v1895 = vsub.s32 0, %v1894
    %v1896 = vrot.slane %v1891, %v1895
    %v1898 = vadd.f32 %v1888, %v1896
    %v1899 = vmax.f32 %v1898, 0.0
    %v1901 = vsel %vm145, %v133, 0
    %v1904 = vsel %vm145, %v134, 0
    %v1907 = vsel %vm145, %v135, 0
    %v1910 = vsel %vm145, %v136, 0
    %v1913 = vsel %vm158, %v1899, 0
    %1915 = vmatprep.subr.mxu0 0.0
    %1916 = vmatpush1.msra.mxu0 0.0
    %1917 = vmatprep.subr.mxu0 0.0
    %1918 = vmatpush1.msra.mxu0 0.0
    %1919 = vmatprep.subr.mxu0 0.0
    %1920 = vmatpush1.msra.mxu0 0.0
    %1921 = vmatprep.subr.mxu0 0.0
    %1922 = vmatpush1.msra.mxu0 0.0
    %1923 = vmatprep.subr.mxu0 0.0
    %1924 = vmatpush1.msra.mxu0 0.0
    %1925 = vmatprep.subr.mxu0 0.0
    %1926 = vmatpush1.msra.mxu0 0.0
    %1927 = vmatprep.subr.mxu0 0.0
    %1928 = vmatpush1.msra.mxu0 0.0
    %1929 = vmatprep.subr.mxu0 0.0
    %1930 = vmatpush1.msra.mxu0 0.0
    %1931 = vmatprep.subr.mxu0 0.0
    %1932 = vmatpush1.msra.mxu0 0.0
    %1933 = vmatprep.subr.mxu0 0.0
    %1934 = vmatpush1.msra.mxu0 0.0
    %1935 = vmatprep.subr.mxu0 0.0
    %1936 = vmatpush1.msra.mxu0 0.0
    %1937 = vmatprep.subr.mxu0 0.0
    %1938 = vmatpush1.msra.mxu0 0.0
    %1939 = vmatprep.subr.mxu0 0.0
    %1940 = vmatpush1.msra.mxu0 0.0
    %1941 = vmatprep.subr.mxu0 0.0
    %1942 = vmatpush1.msra.mxu0 0.0
    %1943 = vmatprep.subr.mxu0 0.0
    %1944 = vmatpush1.msra.mxu0 0.0
    %1945 = vmatprep.subr.mxu0 0.0
    %v1946 = vand.u32 %v1913, 4294901760
    %1947 = vmatpush1.msra.mxu0 %v1946
    %1948 = vmatprep.subr.mxu0 0.0
    %1949 = vmatpush2.msra.mxu0 0.0
    %1950 = vmatprep.subr.mxu0 0.0
    %1951 = vmatpush2.msra.mxu0 0.0
    %1952 = vmatprep.subr.mxu0 0.0
    %1953 = vmatpush2.msra.mxu0 0.0
    %1954 = vmatprep.subr.mxu0 0.0
    %1955 = vmatpush2.msra.mxu0 0.0
    %1956 = vmatprep.subr.mxu0 0.0
    %1957 = vmatpush2.msra.mxu0 0.0
    %1958 = vmatprep.subr.mxu0 0.0
    %1959 = vmatpush2.msra.mxu0 0.0
    %1960 = vmatprep.subr.mxu0 0.0
    %1961 = vmatpush2.msra.mxu0 0.0
    %1962 = vmatprep.subr.mxu0 0.0
    %1963 = vmatpush2.msra.mxu0 0.0
    %1964 = vmatprep.subr.mxu0 0.0
    %1965 = vmatpush2.msra.mxu0 0.0
    %1966 = vmatprep.subr.mxu0 0.0
    %1967 = vmatpush2.msra.mxu0 0.0
    %1968 = vmatprep.subr.mxu0 0.0
    %1969 = vmatpush2.msra.mxu0 0.0
    %1970 = vmatprep.subr.mxu0 0.0
    %1971 = vmatpush2.msra.mxu0 0.0
    %1972 = vmatprep.subr.mxu0 0.0
    %1973 = vmatpush2.msra.mxu0 0.0
    %1974 = vmatprep.subr.mxu0 0.0
    %1975 = vmatpush2.msra.mxu0 0.0
    %1976 = vmatprep.subr.mxu0 0.0
    %1977 = vmatpush2.msra.mxu0 0.0
    %1978 = vmatprep.subr.mxu0 0.0
    %1979 = vmatpush2.msra.mxu0 0.0
    %1980 = vmatprep.mubr.f32.mxu0 0.0
    %v1981 = vand.u32 %v1901, 4294901760
    %v1982 = vsub.f32 %v1901, %v1981
    %v1983 = vand.u32 %v1982, 4294901760
    %v1984 = vsub.f32 %v1982, %v1983
    %v1985 = vand.u32 %v1984, 4294901760
    %1986 = vmatmul.mubr.f32.gmra.mxu0 %v1985
    %v1987 = vpop.f32.mrf.mxu0
    %v1988 = vadd.f32 0.0, %v1987
    %v1989 = vpop.f32.mrf.mxu0
    %1990 = vmatprep.mubr.f32.mxu0 0.0
    %v1991 = vand.u32 %v1904, 4294901760
    %v1992 = vsub.f32 %v1904, %v1991
    %v1993 = vand.u32 %v1992, 4294901760
    %v1994 = vsub.f32 %v1992, %v1993
    %v1995 = vand.u32 %v1994, 4294901760
    %1996 = vmatmul.mubr.f32.gmra.mxu0 %v1995
    %v1997 = vpop.f32.mrf.mxu0
    %v1998 = vadd.f32 0.0, %v1997
    %v1999 = vpop.f32.mrf.mxu0
    %2000 = vmatprep.mubr.f32.mxu0 0.0
    %v2001 = vand.u32 %v1907, 4294901760
    %v2002 = vsub.f32 %v1907, %v2001
    %v2003 = vand.u32 %v2002, 4294901760
    %v2004 = vsub.f32 %v2002, %v2003
    %v2005 = vand.u32 %v2004, 4294901760
    %2006 = vmatmul.mubr.f32.gmra.mxu0 %v2005
    %v2007 = vpop.f32.mrf.mxu0
    %v2008 = vadd.f32 0.0, %v2007
    %v2009 = vpop.f32.mrf.mxu0
    %2010 = vmatprep.mubr.f32.mxu0 0.0
    %v2011 = vand.u32 %v1910, 4294901760
    %v2012 = vsub.f32 %v1910, %v2011
    %v2013 = vand.u32 %v2012, 4294901760
    %v2014 = vsub.f32 %v2012, %v2013
    %v2015 = vand.u32 %v2014, 4294901760
    %2016 = vmatmul.mubr.f32.gmra.mxu0 %v2015
    %v2017 = vpop.f32.mrf.mxu0
    %v2018 = vadd.f32 0.0, %v2017
    %v2019 = vpop.f32.mrf.mxu0
    %2020 = vdwg.mxu0
    %2021 = vmatprep.subr.mxu0 0.0
    %2022 = vmatpush1.msra.mxu0 0.0
    %2023 = vmatprep.subr.mxu0 0.0
    %2024 = vmatpush1.msra.mxu0 0.0
    %2025 = vmatprep.subr.mxu0 0.0
    %2026 = vmatpush1.msra.mxu0 0.0
    %2027 = vmatprep.subr.mxu0 0.0
    %2028 = vmatpush1.msra.mxu0 0.0
    %2029 = vmatprep.subr.mxu0 0.0
    %2030 = vmatpush1.msra.mxu0 0.0
    %2031 = vmatprep.subr.mxu0 0.0
    %2032 = vmatpush1.msra.mxu0 0.0
    %2033 = vmatprep.subr.mxu0 0.0
    %2034 = vmatpush1.msra.mxu0 0.0
    %2035 = vmatprep.subr.mxu0 0.0
    %2036 = vmatpush1.msra.mxu0 0.0
    %2037 = vmatprep.subr.mxu0 0.0
    %2038 = vmatpush1.msra.mxu0 0.0
    %2039 = vmatprep.subr.mxu0 0.0
    %2040 = vmatpush1.msra.mxu0 0.0
    %2041 = vmatprep.subr.mxu0 0.0
    %2042 = vmatpush1.msra.mxu0 0.0
    %2043 = vmatprep.subr.mxu0 0.0
    %2044 = vmatpush1.msra.mxu0 0.0
    %2045 = vmatprep.subr.mxu0 0.0
    %2046 = vmatpush1.msra.mxu0 0.0
    %2047 = vmatprep.subr.mxu0 0.0
    %2048 = vmatpush1.msra.mxu0 0.0
    %2049 = vmatprep.subr.mxu0 0.0
    %2050 = vmatpush1.msra.mxu0 0.0
    %2051 = vmatprep.subr.mxu0 0.0
    %v2052 = vand.u32 %v1913, 4294901760
    %v2053 = vsub.f32 %v1913, %v2052
    %v2054 = vand.u32 %v2053, 4294901760
    %v2055 = vsub.f32 %v2053, %v2054
    %v2056 = vand.u32 %v2055, 4294901760
    %2057 = vmatpush1.msra.mxu0 %v2056
    %2058 = vmatprep.subr.mxu0 0.0
    %2059 = vmatpush2.msra.mxu0 0.0
    %2060 = vmatprep.subr.mxu0 0.0
    %2061 = vmatpush2.msra.mxu0 0.0
    %2062 = vmatprep.subr.mxu0 0.0
    %2063 = vmatpush2.msra.mxu0 0.0
    %2064 = vmatprep.subr.mxu0 0.0
    %2065 = vmatpush2.msra.mxu0 0.0
    %2066 = vmatprep.subr.mxu0 0.0
    %2067 = vmatpush2.msra.mxu0 0.0
    %2068 = vmatprep.subr.mxu0 0.0
    %2069 = vmatpush2.msra.mxu0 0.0
    %2070 = vmatprep.subr.mxu0 0.0
    %2071 = vmatpush2.msra.mxu0 0.0
    %2072 = vmatprep.subr.mxu0 0.0
    %2073 = vmatpush2.msra.mxu0 0.0
    %2074 = vmatprep.subr.mxu0 0.0
    %2075 = vmatpush2.msra.mxu0 0.0
    %2076 = vmatprep.subr.mxu0 0.0
    %2077 = vmatpush2.msra.mxu0 0.0
    %2078 = vmatprep.subr.mxu0 0.0
    %2079 = vmatpush2.msra.mxu0 0.0
    %2080 = vmatprep.subr.mxu0 0.0
    %2081 = vmatpush2.msra.mxu0 0.0
    %2082 = vmatprep.subr.mxu0 0.0
    %2083 = vmatpush2.msra.mxu0 0.0
    %2084 = vmatprep.subr.mxu0 0.0
    %2085 = vmatpush2.msra.mxu0 0.0
    %2086 = vmatprep.subr.mxu0 0.0
    %2087 = vmatpush2.msra.mxu0 0.0
    %2088 = vmatprep.subr.mxu0 0.0
    %2089 = vmatpush2.msra.mxu0 0.0
    %2090 = vmatprep.mubr.f32.mxu0 0.0
    %v2091 = vand.u32 %v1901, 4294901760
    %2092 = vmatmul.mubr.f32.gmra.mxu0 %v2091
    %v2093 = vpop.f32.mrf.mxu0
    %v2094 = vadd.f32 %v1988, %v2093
    %v2095 = vpop.f32.mrf.mxu0
    %2096 = vmatprep.mubr.f32.mxu0 0.0
    %v2097 = vand.u32 %v1904, 4294901760
    %2098 = vmatmul.mubr.f32.gmra.mxu0 %v2097
    %v2099 = vpop.f32.mrf.mxu0
    %v2100 = vadd.f32 %v1998, %v2099
    %v2101 = vpop.f32.mrf.mxu0
    %2102 = vmatprep.mubr.f32.mxu0 0.0
    %v2103 = vand.u32 %v1907, 4294901760
    %2104 = vmatmul.mubr.f32.gmra.mxu0 %v2103
    %v2105 = vpop.f32.mrf.mxu0
    %v2106 = vadd.f32 %v2008, %v2105
    %v2107 = vpop.f32.mrf.mxu0
    %2108 = vmatprep.mubr.f32.mxu0 0.0
    %v2109 = vand.u32 %v1910, 4294901760
    %2110 = vmatmul.mubr.f32.gmra.mxu0 %v2109
    %v2111 = vpop.f32.mrf.mxu0
    %v2112 = vadd.f32 %v2018, %v2111
    %v2113 = vpop.f32.mrf.mxu0
    %2114 = vdwg.mxu0
    %2115 = vmatprep.subr.mxu0 0.0
    %2116 = vmatpush1.msra.mxu0 0.0
    %2117 = vmatprep.subr.mxu0 0.0
    %2118 = vmatpush1.msra.mxu0 0.0
    %2119 = vmatprep.subr.mxu0 0.0
    %2120 = vmatpush1.msra.mxu0 0.0
    %2121 = vmatprep.subr.mxu0 0.0
    %2122 = vmatpush1.msra.mxu0 0.0
    %2123 = vmatprep.subr.mxu0 0.0
    %2124 = vmatpush1.msra.mxu0 0.0
    %2125 = vmatprep.subr.mxu0 0.0
    %2126 = vmatpush1.msra.mxu0 0.0
    %2127 = vmatprep.subr.mxu0 0.0
    %2128 = vmatpush1.msra.mxu0 0.0
    %2129 = vmatprep.subr.mxu0 0.0
    %2130 = vmatpush1.msra.mxu0 0.0
    %2131 = vmatprep.subr.mxu0 0.0
    %2132 = vmatpush1.msra.mxu0 0.0
    %2133 = vmatprep.subr.mxu0 0.0
    %2134 = vmatpush1.msra.mxu0 0.0
    %2135 = vmatprep.subr.mxu0 0.0
    %2136 = vmatpush1.msra.mxu0 0.0
    %2137 = vmatprep.subr.mxu0 0.0
    %2138 = vmatpush1.msra.mxu0 0.0
    %2139 = vmatprep.subr.mxu0 0.0
    %2140 = vmatpush1.msra.mxu0 0.0
    %2141 = vmatprep.subr.mxu0 0.0
    %2142 = vmatpush1.msra.mxu0 0.0
    %2143 = vmatprep.subr.mxu0 0.0
    %2144 = vmatpush1.msra.mxu0 0.0
    %2145 = vmatprep.subr.mxu0 0.0
    %v2146 = vand.u32 %v1913, 4294901760
    %v2147 = vsub.f32 %v1913, %v2146
    %2148 = vmatpush1.msra.mxu0 %v2147
    %2149 = vmatprep.subr.mxu0 0.0
    %2150 = vmatpush2.msra.mxu0 0.0
    %2151 = vmatprep.subr.mxu0 0.0
    %2152 = vmatpush2.msra.mxu0 0.0
    %2153 = vmatprep.subr.mxu0 0.0
    %2154 = vmatpush2.msra.mxu0 0.0
    %2155 = vmatprep.subr.mxu0 0.0
    %2156 = vmatpush2.msra.mxu0 0.0
    %2157 = vmatprep.subr.mxu0 0.0
    %2158 = vmatpush2.msra.mxu0 0.0
    %2159 = vmatprep.subr.mxu0 0.0
    %2160 = vmatpush2.msra.mxu0 0.0
    %2161 = vmatprep.subr.mxu0 0.0
    %2162 = vmatpush2.msra.mxu0 0.0
    %2163 = vmatprep.subr.mxu0 0.0
    %2164 = vmatpush2.msra.mxu0 0.0
    %2165 = vmatprep.subr.mxu0 0.0
    %2166 = vmatpush2.msra.mxu0 0.0
    %2167 = vmatprep.subr.mxu0 0.0
    %2168 = vmatpush2.msra.mxu0 0.0
    %2169 = vmatprep.subr.mxu0 0.0
    %2170 = vmatpush2.msra.mxu0 0.0
    %2171 = vmatprep.subr.mxu0 0.0
    %2172 = vmatpush2.msra.mxu0 0.0
    %2173 = vmatprep.subr.mxu0 0.0
    %2174 = vmatpush2.msra.mxu0 0.0
    %2175 = vmatprep.subr.mxu0 0.0
    %2176 = vmatpush2.msra.mxu0 0.0
    %2177 = vmatprep.subr.mxu0 0.0
    %2178 = vmatpush2.msra.mxu0 0.0
    %2179 = vmatprep.subr.mxu0 0.0
    %2180 = vmatpush2.msra.mxu0 0.0
    %2181 = vmatprep.mubr.f32.mxu0 0.0
    %v2182 = vand.u32 %v1901, 4294901760
    %v2183 = vsub.f32 %v1901, %v2182
    %2184 = vmatmul.mubr.f32.gmra.mxu0 %v2183
    %v2185 = vpop.f32.mrf.mxu0
    %v2186 = vadd.f32 %v2094, %v2185
    %v2187 = vpop.f32.mrf.mxu0
    %2188 = vmatprep.mubr.f32.mxu0 0.0
    %v2189 = vand.u32 %v1904, 4294901760
    %v2190 = vsub.f32 %v1904, %v2189
    %2191 = vmatmul.mubr.f32.gmra.mxu0 %v2190
    %v2192 = vpop.f32.mrf.mxu0
    %v2193 = vadd.f32 %v2100, %v2192
    %v2194 = vpop.f32.mrf.mxu0
    %2195 = vmatprep.mubr.f32.mxu0 0.0
    %v2196 = vand.u32 %v1907, 4294901760
    %v2197 = vsub.f32 %v1907, %v2196
    %2198 = vmatmul.mubr.f32.gmra.mxu0 %v2197
    %v2199 = vpop.f32.mrf.mxu0
    %v2200 = vadd.f32 %v2106, %v2199
    %v2201 = vpop.f32.mrf.mxu0
    %2202 = vmatprep.mubr.f32.mxu0 0.0
    %v2203 = vand.u32 %v1910, 4294901760
    %v2204 = vsub.f32 %v1910, %v2203
    %2205 = vmatmul.mubr.f32.gmra.mxu0 %v2204
    %v2206 = vpop.f32.mrf.mxu0
    %v2207 = vadd.f32 %v2112, %v2206
    %v2208 = vpop.f32.mrf.mxu0
    %2209 = vdwg.mxu0
    %2210 = vmatprep.subr.mxu0 0.0
    %2211 = vmatpush1.msra.mxu0 0.0
    %2212 = vmatprep.subr.mxu0 0.0
    %2213 = vmatpush1.msra.mxu0 0.0
    %2214 = vmatprep.subr.mxu0 0.0
    %2215 = vmatpush1.msra.mxu0 0.0
    %2216 = vmatprep.subr.mxu0 0.0
    %2217 = vmatpush1.msra.mxu0 0.0
    %2218 = vmatprep.subr.mxu0 0.0
    %2219 = vmatpush1.msra.mxu0 0.0
    %2220 = vmatprep.subr.mxu0 0.0
    %2221 = vmatpush1.msra.mxu0 0.0
    %2222 = vmatprep.subr.mxu0 0.0
    %2223 = vmatpush1.msra.mxu0 0.0
    %2224 = vmatprep.subr.mxu0 0.0
    %2225 = vmatpush1.msra.mxu0 0.0
    %2226 = vmatprep.subr.mxu0 0.0
    %2227 = vmatpush1.msra.mxu0 0.0
    %2228 = vmatprep.subr.mxu0 0.0
    %2229 = vmatpush1.msra.mxu0 0.0
    %2230 = vmatprep.subr.mxu0 0.0
    %2231 = vmatpush1.msra.mxu0 0.0
    %2232 = vmatprep.subr.mxu0 0.0
    %2233 = vmatpush1.msra.mxu0 0.0
    %2234 = vmatprep.subr.mxu0 0.0
    %2235 = vmatpush1.msra.mxu0 0.0
    %2236 = vmatprep.subr.mxu0 0.0
    %2237 = vmatpush1.msra.mxu0 0.0
    %2238 = vmatprep.subr.mxu0 0.0
    %2239 = vmatpush1.msra.mxu0 0.0
    %2240 = vmatprep.subr.mxu0 0.0
    %v2241 = vand.u32 %v1913, 4294901760
    %2242 = vmatpush1.msra.mxu0 %v2241
    %2243 = vmatprep.subr.mxu0 0.0
    %2244 = vmatpush2.msra.mxu0 0.0
    %2245 = vmatprep.subr.mxu0 0.0
    %2246 = vmatpush2.msra.mxu0 0.0
    %2247 = vmatprep.subr.mxu0 0.0
    %2248 = vmatpush2.msra.mxu0 0.0
    %2249 = vmatprep.subr.mxu0 0.0
    %2250 = vmatpush2.msra.mxu0 0.0
    %2251 = vmatprep.subr.mxu0 0.0
    %2252 = vmatpush2.msra.mxu0 0.0
    %2253 = vmatprep.subr.mxu0 0.0
    %2254 = vmatpush2.msra.mxu0 0.0
    %2255 = vmatprep.subr.mxu0 0.0
    %2256 = vmatpush2.msra.mxu0 0.0
    %2257 = vmatprep.subr.mxu0 0.0
    %2258 = vmatpush2.msra.mxu0 0.0
    %2259 = vmatprep.subr.mxu0 0.0
    %2260 = vmatpush2.msra.mxu0 0.0
    %2261 = vmatprep.subr.mxu0 0.0
    %2262 = vmatpush2.msra.mxu0 0.0
    %2263 = vmatprep.subr.mxu0 0.0
    %2264 = vmatpush2.msra.mxu0 0.0
    %2265 = vmatprep.subr.mxu0 0.0
    %2266 = vmatpush2.msra.mxu0 0.0
    %2267 = vmatprep.subr.mxu0 0.0
    %2268 = vmatpush2.msra.mxu0 0.0
    %2269 = vmatprep.subr.mxu0 0.0
    %2270 = vmatpush2.msra.mxu0 0.0
    %2271 = vmatprep.subr.mxu0 0.0
    %2272 = vmatpush2.msra.mxu0 0.0
    %2273 = vmatprep.subr.mxu0 0.0
    %2274 = vmatpush2.msra.mxu0 0.0
    %2275 = vmatprep.mubr.f32.mxu0 0.0
    %v2276 = vand.u32 %v1901, 4294901760
    %v2277 = vsub.f32 %v1901, %v2276
    %v2278 = vand.u32 %v2277, 4294901760
    %2279 = vmatmul.mubr.f32.gmra.mxu0 %v2278
    %v2280 = vpop.f32.mrf.mxu0
    %v2281 = vadd.f32 %v2186, %v2280
    %v2282 = vpop.f32.mrf.mxu0
    %2283 = vmatprep.mubr.f32.mxu0 0.0
    %v2284 = vand.u32 %v1904, 4294901760
    %v2285 = vsub.f32 %v1904, %v2284
    %v2286 = vand.u32 %v2285, 4294901760
    %2287 = vmatmul.mubr.f32.gmra.mxu0 %v2286
    %v2288 = vpop.f32.mrf.mxu0
    %v2289 = vadd.f32 %v2193, %v2288
    %v2290 = vpop.f32.mrf.mxu0
    %2291 = vmatprep.mubr.f32.mxu0 0.0
    %v2292 = vand.u32 %v1907, 4294901760
    %v2293 = vsub.f32 %v1907, %v2292
    %v2294 = vand.u32 %v2293, 4294901760
    %2295 = vmatmul.mubr.f32.gmra.mxu0 %v2294
    %v2296 = vpop.f32.mrf.mxu0
    %v2297 = vadd.f32 %v2200, %v2296
    %v2298 = vpop.f32.mrf.mxu0
    %2299 = vmatprep.mubr.f32.mxu0 0.0
    %v2300 = vand.u32 %v1910, 4294901760
    %v2301 = vsub.f32 %v1910, %v2300
    %v2302 = vand.u32 %v2301, 4294901760
    %2303 = vmatmul.mubr.f32.gmra.mxu0 %v2302
    %v2304 = vpop.f32.mrf.mxu0
    %v2305 = vadd.f32 %v2207, %v2304
    %v2306 = vpop.f32.mrf.mxu0
    %2307 = vdwg.mxu0
    %2308 = vmatprep.subr.mxu0 0.0
    %2309 = vmatpush1.msra.mxu0 0.0
    %2310 = vmatprep.subr.mxu0 0.0
    %2311 = vmatpush1.msra.mxu0 0.0
    %2312 = vmatprep.subr.mxu0 0.0
    %2313 = vmatpush1.msra.mxu0 0.0
    %2314 = vmatprep.subr.mxu0 0.0
    %2315 = vmatpush1.msra.mxu0 0.0
    %2316 = vmatprep.subr.mxu0 0.0
    %2317 = vmatpush1.msra.mxu0 0.0
    %2318 = vmatprep.subr.mxu0 0.0
    %2319 = vmatpush1.msra.mxu0 0.0
    %2320 = vmatprep.subr.mxu0 0.0
    %2321 = vmatpush1.msra.mxu0 0.0
    %2322 = vmatprep.subr.mxu0 0.0
    %2323 = vmatpush1.msra.mxu0 0.0
    %2324 = vmatprep.subr.mxu0 0.0
    %2325 = vmatpush1.msra.mxu0 0.0
    %2326 = vmatprep.subr.mxu0 0.0
    %2327 = vmatpush1.msra.mxu0 0.0
    %2328 = vmatprep.subr.mxu0 0.0
    %2329 = vmatpush1.msra.mxu0 0.0
    %2330 = vmatprep.subr.mxu0 0.0
    %2331 = vmatpush1.msra.mxu0 0.0
    %2332 = vmatprep.subr.mxu0 0.0
    %2333 = vmatpush1.msra.mxu0 0.0
    %2334 = vmatprep.subr.mxu0 0.0
    %2335 = vmatpush1.msra.mxu0 0.0
    %2336 = vmatprep.subr.mxu0 0.0
    %2337 = vmatpush1.msra.mxu0 0.0
    %2338 = vmatprep.subr.mxu0 0.0
    %v2339 = vand.u32 %v1913, 4294901760
    %v2340 = vsub.f32 %v1913, %v2339
    %v2341 = vand.u32 %v2340, 4294901760
    %2342 = vmatpush1.msra.mxu0 %v2341
    %2343 = vmatprep.subr.mxu0 0.0
    %2344 = vmatpush2.msra.mxu0 0.0
    %2345 = vmatprep.subr.mxu0 0.0
    %2346 = vmatpush2.msra.mxu0 0.0
    %2347 = vmatprep.subr.mxu0 0.0
    %2348 = vmatpush2.msra.mxu0 0.0
    %2349 = vmatprep.subr.mxu0 0.0
    %2350 = vmatpush2.msra.mxu0 0.0
    %2351 = vmatprep.subr.mxu0 0.0
    %2352 = vmatpush2.msra.mxu0 0.0
    %2353 = vmatprep.subr.mxu0 0.0
    %2354 = vmatpush2.msra.mxu0 0.0
    %2355 = vmatprep.subr.mxu0 0.0
    %2356 = vmatpush2.msra.mxu0 0.0
    %2357 = vmatprep.subr.mxu0 0.0
    %2358 = vmatpush2.msra.mxu0 0.0
    %2359 = vmatprep.subr.mxu0 0.0
    %2360 = vmatpush2.msra.mxu0 0.0
    %2361 = vmatprep.subr.mxu0 0.0
    %2362 = vmatpush2.msra.mxu0 0.0
    %2363 = vmatprep.subr.mxu0 0.0
    %2364 = vmatpush2.msra.mxu0 0.0
    %2365 = vmatprep.subr.mxu0 0.0
    %2366 = vmatpush2.msra.mxu0 0.0
    %2367 = vmatprep.subr.mxu0 0.0
    %2368 = vmatpush2.msra.mxu0 0.0
    %2369 = vmatprep.subr.mxu0 0.0
    %2370 = vmatpush2.msra.mxu0 0.0
    %2371 = vmatprep.subr.mxu0 0.0
    %2372 = vmatpush2.msra.mxu0 0.0
    %2373 = vmatprep.subr.mxu0 0.0
    %2374 = vmatpush2.msra.mxu0 0.0
    %2375 = vmatprep.mubr.f32.mxu0 0.0
    %v2376 = vand.u32 %v1901, 4294901760
    %2377 = vmatmul.mubr.f32.gmra.mxu0 %v2376
    %v2378 = vpop.f32.mrf.mxu0
    %v2379 = vadd.f32 %v2281, %v2378
    %v2380 = vpop.f32.mrf.mxu0
    %2381 = vmatprep.mubr.f32.mxu0 0.0
    %v2382 = vand.u32 %v1904, 4294901760
    %2383 = vmatmul.mubr.f32.gmra.mxu0 %v2382
    %v2384 = vpop.f32.mrf.mxu0
    %v2385 = vadd.f32 %v2289, %v2384
    %v2386 = vpop.f32.mrf.mxu0
    %2387 = vmatprep.mubr.f32.mxu0 0.0
    %v2388 = vand.u32 %v1907, 4294901760
    %2389 = vmatmul.mubr.f32.gmra.mxu0 %v2388
    %v2390 = vpop.f32.mrf.mxu0
    %v2391 = vadd.f32 %v2297, %v2390
    %v2392 = vpop.f32.mrf.mxu0
    %2393 = vmatprep.mubr.f32.mxu0 0.0
    %v2394 = vand.u32 %v1910, 4294901760
    %2395 = vmatmul.mubr.f32.gmra.mxu0 %v2394
    %v2396 = vpop.f32.mrf.mxu0
    %v2397 = vadd.f32 %v2305, %v2396
    %v2398 = vpop.f32.mrf.mxu0
    %2399 = vdwg.mxu0
    %2400 = vmatprep.subr.mxu0 0.0
    %2401 = vmatpush1.msra.mxu0 0.0
    %2402 = vmatprep.subr.mxu0 0.0
    %2403 = vmatpush1.msra.mxu0 0.0
    %2404 = vmatprep.subr.mxu0 0.0
    %2405 = vmatpush1.msra.mxu0 0.0
    %2406 = vmatprep.subr.mxu0 0.0
    %2407 = vmatpush1.msra.mxu0 0.0
    %2408 = vmatprep.subr.mxu0 0.0
    %2409 = vmatpush1.msra.mxu0 0.0
    %2410 = vmatprep.subr.mxu0 0.0
    %2411 = vmatpush1.msra.mxu0 0.0
    %2412 = vmatprep.subr.mxu0 0.0
    %2413 = vmatpush1.msra.mxu0 0.0
    %2414 = vmatprep.subr.mxu0 0.0
    %2415 = vmatpush1.msra.mxu0 0.0
    %2416 = vmatprep.subr.mxu0 0.0
    %2417 = vmatpush1.msra.mxu0 0.0
    %2418 = vmatprep.subr.mxu0 0.0
    %2419 = vmatpush1.msra.mxu0 0.0
    %2420 = vmatprep.subr.mxu0 0.0
    %2421 = vmatpush1.msra.mxu0 0.0
    %2422 = vmatprep.subr.mxu0 0.0
    %2423 = vmatpush1.msra.mxu0 0.0
    %2424 = vmatprep.subr.mxu0 0.0
    %2425 = vmatpush1.msra.mxu0 0.0
    %2426 = vmatprep.subr.mxu0 0.0
    %2427 = vmatpush1.msra.mxu0 0.0
    %2428 = vmatprep.subr.mxu0 0.0
    %2429 = vmatpush1.msra.mxu0 0.0
    %2430 = vmatprep.subr.mxu0 0.0
    %v2431 = vand.u32 %v1913, 4294901760
    %2432 = vmatpush1.msra.mxu0 %v2431
    %2433 = vmatprep.subr.mxu0 0.0
    %2434 = vmatpush2.msra.mxu0 0.0
    %2435 = vmatprep.subr.mxu0 0.0
    %2436 = vmatpush2.msra.mxu0 0.0
    %2437 = vmatprep.subr.mxu0 0.0
    %2438 = vmatpush2.msra.mxu0 0.0
    %2439 = vmatprep.subr.mxu0 0.0
    %2440 = vmatpush2.msra.mxu0 0.0
    %2441 = vmatprep.subr.mxu0 0.0
    %2442 = vmatpush2.msra.mxu0 0.0
    %2443 = vmatprep.subr.mxu0 0.0
    %2444 = vmatpush2.msra.mxu0 0.0
    %2445 = vmatprep.subr.mxu0 0.0
    %2446 = vmatpush2.msra.mxu0 0.0
    %2447 = vmatprep.subr.mxu0 0.0
    %2448 = vmatpush2.msra.mxu0 0.0
    %2449 = vmatprep.subr.mxu0 0.0
    %2450 = vmatpush2.msra.mxu0 0.0
    %2451 = vmatprep.subr.mxu0 0.0
    %2452 = vmatpush2.msra.mxu0 0.0
    %2453 = vmatprep.subr.mxu0 0.0
    %2454 = vmatpush2.msra.mxu0 0.0
    %2455 = vmatprep.subr.mxu0 0.0
    %2456 = vmatpush2.msra.mxu0 0.0
    %2457 = vmatprep.subr.mxu0 0.0
    %2458 = vmatpush2.msra.mxu0 0.0
    %2459 = vmatprep.subr.mxu0 0.0
    %2460 = vmatpush2.msra.mxu0 0.0
    %2461 = vmatprep.subr.mxu0 0.0
    %2462 = vmatpush2.msra.mxu0 0.0
    %2463 = vmatprep.subr.mxu0 0.0
    %2464 = vmatpush2.msra.mxu0 0.0
    %2465 = vmatprep.mubr.f32.mxu0 0.0
    %v2466 = vand.u32 %v1901, 4294901760
    %2467 = vmatmul.mubr.f32.gmra.mxu0 %v2466
    %v2468 = vpop.f32.mrf.mxu0
    %v2469 = vadd.f32 %v2379, %v2468
    %v2470 = vpop.f32.mrf.mxu0
    %2471 = vmatprep.mubr.f32.mxu0 0.0
    %v2472 = vand.u32 %v1904, 4294901760
    %2473 = vmatmul.mubr.f32.gmra.mxu0 %v2472
    %v2474 = vpop.f32.mrf.mxu0
    %v2475 = vadd.f32 %v2385, %v2474
    %v2476 = vpop.f32.mrf.mxu0
    %2477 = vmatprep.mubr.f32.mxu0 0.0
    %v2478 = vand.u32 %v1907, 4294901760
    %2479 = vmatmul.mubr.f32.gmra.mxu0 %v2478
    %v2480 = vpop.f32.mrf.mxu0
    %v2481 = vadd.f32 %v2391, %v2480
    %v2482 = vpop.f32.mrf.mxu0
    %2483 = vmatprep.mubr.f32.mxu0 0.0
    %v2484 = vand.u32 %v1910, 4294901760
    %2485 = vmatmul.mubr.f32.gmra.mxu0 %v2484
    %v2486 = vpop.f32.mrf.mxu0
    %v2487 = vadd.f32 %v2397, %v2486
    %v2488 = vpop.f32.mrf.mxu0
    %2489 = vdwg.mxu0
    %v2490 = vld [vmem:[%s9] sm:$0xff]
    %v2491 = vld [vmem:[%s9 + $0x8] sm:$0xff]
    %v2492 = vld [vmem:[%s9 + $0x10] sm:$0xff]
    %v2493 = vld [vmem:[%s9 + $0x18] sm:$0xff]
    %v2494 = vld [vmem:[%s10] sm:$0xff]
    %v2495 = vld [vmem:[%s10 + $0x8] sm:$0xff]
    %v2496 = vld [vmem:[%s10 + $0x10] sm:$0xff]
    %v2497 = vld [vmem:[%s10 + $0x18] sm:$0xff]
    %vm2498 = vcmask 261120
    %v2500 = vsel %vm2498, %v2469, 0
    %v2503 = vsel %vm2498, %v2475, 0
    %v2506 = vsel %vm2498, %v2481, 0
    %v2509 = vsel %vm2498, %v2487, 0
    %2511 = vmatprep.subr.mxu0 0.0
    %2512 = vmatpush1.msra.mxu0 0.0
    %2513 = vmatprep.subr.mxu0 0.0
    %2514 = vmatpush1.msra.mxu0 0.0
    %2515 = vmatprep.subr.mxu0 0.0
    %2516 = vmatpush1.msra.mxu0 0.0
    %2517 = vmatprep.subr.mxu0 0.0
    %2518 = vmatpush1.msra.mxu0 0.0
    %2519 = vmatprep.subr.mxu0 0.0
    %2520 = vmatpush1.msra.mxu0 0.0
    %2521 = vmatprep.subr.mxu0 0.0
    %2522 = vmatpush1.msra.mxu0 0.0
    %2523 = vmatprep.subr.mxu0 0.0
    %2524 = vmatpush1.msra.mxu0 0.0
    %2525 = vmatprep.subr.mxu0 0.0
    %2526 = vmatpush1.msra.mxu0 0.0
    %2527 = vmatprep.subr.mxu0 0.0
    %2528 = vmatpush1.msra.mxu0 0.0
    %2529 = vmatprep.subr.mxu0 0.0
    %2530 = vmatpush1.msra.mxu0 0.0
    %2531 = vmatprep.subr.mxu0 0.0
    %2532 = vmatpush1.msra.mxu0 0.0
    %2533 = vmatprep.subr.mxu0 0.0
    %2534 = vmatpush1.msra.mxu0 0.0
    %2535 = vmatprep.subr.mxu0 0.0
    %v2536 = vand.u32 %v2497, 4294901760
    %2537 = vmatpush1.msra.mxu0 %v2536
    %2538 = vmatprep.subr.mxu0 0.0
    %v2539 = vand.u32 %v2496, 4294901760
    %2540 = vmatpush1.msra.mxu0 %v2539
    %2541 = vmatprep.subr.mxu0 0.0
    %v2542 = vand.u32 %v2495, 4294901760
    %2543 = vmatpush1.msra.mxu0 %v2542
    %2544 = vmatprep.subr.mxu0 0.0
    %v2545 = vand.u32 %v2494, 4294901760
    %2546 = vmatpush1.msra.mxu0 %v2545
    %2547 = vmatprep.subr.mxu0 0.0
    %2548 = vmatpush2.msra.mxu0 0.0
    %2549 = vmatprep.subr.mxu0 0.0
    %2550 = vmatpush2.msra.mxu0 0.0
    %2551 = vmatprep.subr.mxu0 0.0
    %2552 = vmatpush2.msra.mxu0 0.0
    %2553 = vmatprep.subr.mxu0 0.0
    %2554 = vmatpush2.msra.mxu0 0.0
    %2555 = vmatprep.subr.mxu0 0.0
    %2556 = vmatpush2.msra.mxu0 0.0
    %2557 = vmatprep.subr.mxu0 0.0
    %2558 = vmatpush2.msra.mxu0 0.0
    %2559 = vmatprep.subr.mxu0 0.0
    %2560 = vmatpush2.msra.mxu0 0.0
    %2561 = vmatprep.subr.mxu0 0.0
    %2562 = vmatpush2.msra.mxu0 0.0
    %2563 = vmatprep.subr.mxu0 0.0
    %2564 = vmatpush2.msra.mxu0 0.0
    %2565 = vmatprep.subr.mxu0 0.0
    %2566 = vmatpush2.msra.mxu0 0.0
    %2567 = vmatprep.subr.mxu0 0.0
    %2568 = vmatpush2.msra.mxu0 0.0
    %2569 = vmatprep.subr.mxu0 0.0
    %2570 = vmatpush2.msra.mxu0 0.0
    %2571 = vmatprep.subr.mxu0 0.0
    %2572 = vmatpush2.msra.mxu0 0.0
    %2573 = vmatprep.subr.mxu0 0.0
    %2574 = vmatpush2.msra.mxu0 0.0
    %2575 = vmatprep.subr.mxu0 0.0
    %2576 = vmatpush2.msra.mxu0 0.0
    %2577 = vmatprep.subr.mxu0 0.0
    %2578 = vmatpush2.msra.mxu0 0.0
    %2579 = vmatprep.mubr.f32.mxu0 0.0
    %v2580 = vand.u32 %v2500, 4294901760
    %v2581 = vsub.f32 %v2500, %v2580
    %v2582 = vand.u32 %v2581, 4294901760
    %v2583 = vsub.f32 %v2581, %v2582
    %v2584 = vand.u32 %v2583, 4294901760
    %2585 = vmatmul.mubr.f32.gmra.mxu0 %v2584
    %v2586 = vpop.f32.mrf.mxu0
    %v2587 = vadd.f32 0.0, %v2586
    %v2588 = vpop.f32.mrf.mxu0
    %2589 = vmatprep.mubr.f32.mxu0 0.0
    %v2590 = vand.u32 %v2503, 4294901760
    %v2591 = vsub.f32 %v2503, %v2590
    %v2592 = vand.u32 %v2591, 4294901760
    %v2593 = vsub.f32 %v2591, %v2592
    %v2594 = vand.u32 %v2593, 4294901760
    %2595 = vmatmul.mubr.f32.gmra.mxu0 %v2594
    %v2596 = vpop.f32.mrf.mxu0
    %v2597 = vadd.f32 0.0, %v2596
    %v2598 = vpop.f32.mrf.mxu0
    %2599 = vmatprep.mubr.f32.mxu0 0.0
    %v2600 = vand.u32 %v2506, 4294901760
    %v2601 = vsub.f32 %v2506, %v2600
    %v2602 = vand.u32 %v2601, 4294901760
    %v2603 = vsub.f32 %v2601, %v2602
    %v2604 = vand.u32 %v2603, 4294901760
    %2605 = vmatmul.mubr.f32.gmra.mxu0 %v2604
    %v2606 = vpop.f32.mrf.mxu0
    %v2607 = vadd.f32 0.0, %v2606
    %v2608 = vpop.f32.mrf.mxu0
    %2609 = vmatprep.mubr.f32.mxu0 0.0
    %v2610 = vand.u32 %v2509, 4294901760
    %v2611 = vsub.f32 %v2509, %v2610
    %v2612 = vand.u32 %v2611, 4294901760
    %v2613 = vsub.f32 %v2611, %v2612
    %v2614 = vand.u32 %v2613, 4294901760
    %2615 = vmatmul.mubr.f32.gmra.mxu0 %v2614
    %v2616 = vpop.f32.mrf.mxu0
    %v2617 = vadd.f32 0.0, %v2616
    %v2618 = vpop.f32.mrf.mxu0
    %2619 = vdwg.mxu0
    %2620 = vmatprep.subr.mxu0 0.0
    %2621 = vmatpush1.msra.mxu0 0.0
    %2622 = vmatprep.subr.mxu0 0.0
    %2623 = vmatpush1.msra.mxu0 0.0
    %2624 = vmatprep.subr.mxu0 0.0
    %2625 = vmatpush1.msra.mxu0 0.0
    %2626 = vmatprep.subr.mxu0 0.0
    %2627 = vmatpush1.msra.mxu0 0.0
    %2628 = vmatprep.subr.mxu0 0.0
    %2629 = vmatpush1.msra.mxu0 0.0
    %2630 = vmatprep.subr.mxu0 0.0
    %2631 = vmatpush1.msra.mxu0 0.0
    %2632 = vmatprep.subr.mxu0 0.0
    %2633 = vmatpush1.msra.mxu0 0.0
    %2634 = vmatprep.subr.mxu0 0.0
    %2635 = vmatpush1.msra.mxu0 0.0
    %2636 = vmatprep.subr.mxu0 0.0
    %2637 = vmatpush1.msra.mxu0 0.0
    %2638 = vmatprep.subr.mxu0 0.0
    %2639 = vmatpush1.msra.mxu0 0.0
    %2640 = vmatprep.subr.mxu0 0.0
    %2641 = vmatpush1.msra.mxu0 0.0
    %2642 = vmatprep.subr.mxu0 0.0
    %2643 = vmatpush1.msra.mxu0 0.0
    %2644 = vmatprep.subr.mxu0 0.0
    %v2645 = vand.u32 %v2497, 4294901760
    %v2646 = vsub.f32 %v2497, %v2645
    %v2647 = vand.u32 %v2646, 4294901760
    %v2648 = vsub.f32 %v2646, %v2647
    %v2649 = vand.u32 %v2648, 4294901760
    %2650 = vmatpush1.msra.mxu0 %v2649
    %2651 = vmatprep.subr.mxu0 0.0
    %v2652 = vand.u32 %v2496, 4294901760
    %v2653 = vsub.f32 %v2496, %v2652
    %v2654 = vand.u32 %v2653, 4294901760
    %v2655 = vsub.f32 %v2653, %v2654
    %v2656 = vand.u32 %v2655, 4294901760
    %2657 = vmatpush1.msra.mxu0 %v2656
    %2658 = vmatprep.subr.mxu0 0.0
    %v2659 = vand.u32 %v2495, 4294901760
    %v2660 = vsub.f32 %v2495, %v2659
    %v2661 = vand.u32 %v2660, 4294901760
    %v2662 = vsub.f32 %v2660, %v2661
    %v2663 = vand.u32 %v2662, 4294901760
    %2664 = vmatpush1.msra.mxu0 %v2663
    %2665 = vmatprep.subr.mxu0 0.0
    %v2666 = vand.u32 %v2494, 4294901760
    %v2667 = vsub.f32 %v2494, %v2666
    %v2668 = vand.u32 %v2667, 4294901760
    %v2669 = vsub.f32 %v2667, %v2668
    %v2670 = vand.u32 %v2669, 4294901760
    %2671 = vmatpush1.msra.mxu0 %v2670
    %2672 = vmatprep.subr.mxu0 0.0
    %2673 = vmatpush2.msra.mxu0 0.0
    %2674 = vmatprep.subr.mxu0 0.0
    %2675 = vmatpush2.msra.mxu0 0.0
    %2676 = vmatprep.subr.mxu0 0.0
    %2677 = vmatpush2.msra.mxu0 0.0
    %2678 = vmatprep.subr.mxu0 0.0
    %2679 = vmatpush2.msra.mxu0 0.0
    %2680 = vmatprep.subr.mxu0 0.0
    %2681 = vmatpush2.msra.mxu0 0.0
    %2682 = vmatprep.subr.mxu0 0.0
    %2683 = vmatpush2.msra.mxu0 0.0
    %2684 = vmatprep.subr.mxu0 0.0
    %2685 = vmatpush2.msra.mxu0 0.0
    %2686 = vmatprep.subr.mxu0 0.0
    %2687 = vmatpush2.msra.mxu0 0.0
    %2688 = vmatprep.subr.mxu0 0.0
    %2689 = vmatpush2.msra.mxu0 0.0
    %2690 = vmatprep.subr.mxu0 0.0
    %2691 = vmatpush2.msra.mxu0 0.0
    %2692 = vmatprep.subr.mxu0 0.0
    %2693 = vmatpush2.msra.mxu0 0.0
    %2694 = vmatprep.subr.mxu0 0.0
    %2695 = vmatpush2.msra.mxu0 0.0
    %2696 = vmatprep.subr.mxu0 0.0
    %2697 = vmatpush2.msra.mxu0 0.0
    %2698 = vmatprep.subr.mxu0 0.0
    %2699 = vmatpush2.msra.mxu0 0.0
    %2700 = vmatprep.subr.mxu0 0.0
    %2701 = vmatpush2.msra.mxu0 0.0
    %2702 = vmatprep.subr.mxu0 0.0
    %2703 = vmatpush2.msra.mxu0 0.0
    %2704 = vmatprep.mubr.f32.mxu0 0.0
    %v2705 = vand.u32 %v2500, 4294901760
    %2706 = vmatmul.mubr.f32.gmra.mxu0 %v2705
    %v2707 = vpop.f32.mrf.mxu0
    %v2708 = vadd.f32 %v2587, %v2707
    %v2709 = vpop.f32.mrf.mxu0
    %2710 = vmatprep.mubr.f32.mxu0 0.0
    %v2711 = vand.u32 %v2503, 4294901760
    %2712 = vmatmul.mubr.f32.gmra.mxu0 %v2711
    %v2713 = vpop.f32.mrf.mxu0
    %v2714 = vadd.f32 %v2597, %v2713
    %v2715 = vpop.f32.mrf.mxu0
    %2716 = vmatprep.mubr.f32.mxu0 0.0
    %v2717 = vand.u32 %v2506, 4294901760
    %2718 = vmatmul.mubr.f32.gmra.mxu0 %v2717
    %v2719 = vpop.f32.mrf.mxu0
    %v2720 = vadd.f32 %v2607, %v2719
    %v2721 = vpop.f32.mrf.mxu0
    %2722 = vmatprep.mubr.f32.mxu0 0.0
    %v2723 = vand.u32 %v2509, 4294901760
    %2724 = vmatmul.mubr.f32.gmra.mxu0 %v2723
    %v2725 = vpop.f32.mrf.mxu0
    %v2726 = vadd.f32 %v2617, %v2725
    %v2727 = vpop.f32.mrf.mxu0
    %2728 = vdwg.mxu0
    %2729 = vmatprep.subr.mxu0 0.0
    %2730 = vmatpush1.msra.mxu0 0.0
    %2731 = vmatprep.subr.mxu0 0.0
    %2732 = vmatpush1.msra.mxu0 0.0
    %2733 = vmatprep.subr.mxu0 0.0
    %2734 = vmatpush1.msra.mxu0 0.0
    %2735 = vmatprep.subr.mxu0 0.0
    %2736 = vmatpush1.msra.mxu0 0.0
    %2737 = vmatprep.subr.mxu0 0.0
    %2738 = vmatpush1.msra.mxu0 0.0
    %2739 = vmatprep.subr.mxu0 0.0
    %2740 = vmatpush1.msra.mxu0 0.0
    %2741 = vmatprep.subr.mxu0 0.0
    %2742 = vmatpush1.msra.mxu0 0.0
    %2743 = vmatprep.subr.mxu0 0.0
    %2744 = vmatpush1.msra.mxu0 0.0
    %2745 = vmatprep.subr.mxu0 0.0
    %2746 = vmatpush1.msra.mxu0 0.0
    %2747 = vmatprep.subr.mxu0 0.0
    %2748 = vmatpush1.msra.mxu0 0.0
    %2749 = vmatprep.subr.mxu0 0.0
    %2750 = vmatpush1.msra.mxu0 0.0
    %2751 = vmatprep.subr.mxu0 0.0
    %2752 = vmatpush1.msra.mxu0 0.0
    %2753 = vmatprep.subr.mxu0 0.0
    %v2754 = vand.u32 %v2497, 4294901760
    %v2755 = vsub.f32 %v2497, %v2754
    %2756 = vmatpush1.msra.mxu0 %v2755
    %2757 = vmatprep.subr.mxu0 0.0
    %v2758 = vand.u32 %v2496, 4294901760
    %v2759 = vsub.f32 %v2496, %v2758
    %2760 = vmatpush1.msra.mxu0 %v2759
    %2761 = vmatprep.subr.mxu0 0.0
    %v2762 = vand.u32 %v2495, 4294901760
    %v2763 = vsub.f32 %v2495, %v2762
    %2764 = vmatpush1.msra.mxu0 %v2763
    %2765 = vmatprep.subr.mxu0 0.0
    %v2766 = vand.u32 %v2494, 4294901760
    %v2767 = vsub.f32 %v2494, %v2766
    %2768 = vmatpush1.msra.mxu0 %v2767
    %2769 = vmatprep.subr.mxu0 0.0
    %2770 = vmatpush2.msra.mxu0 0.0
    %2771 = vmatprep.subr.mxu0 0.0
    %2772 = vmatpush2.msra.mxu0 0.0
    %2773 = vmatprep.subr.mxu0 0.0
    %2774 = vmatpush2.msra.mxu0 0.0
    %2775 = vmatprep.subr.mxu0 0.0
    %2776 = vmatpush2.msra.mxu0 0.0
    %2777 = vmatprep.subr.mxu0 0.0
    %2778 = vmatpush2.msra.mxu0 0.0
    %2779 = vmatprep.subr.mxu0 0.0
    %2780 = vmatpush2.msra.mxu0 0.0
    %2781 = vmatprep.subr.mxu0 0.0
    %2782 = vmatpush2.msra.mxu0 0.0
    %2783 = vmatprep.subr.mxu0 0.0
    %2784 = vmatpush2.msra.mxu0 0.0
    %2785 = vmatprep.subr.mxu0 0.0
    %2786 = vmatpush2.msra.mxu0 0.0
    %2787 = vmatprep.subr.mxu0 0.0
    %2788 = vmatpush2.msra.mxu0 0.0
    %2789 = vmatprep.subr.mxu0 0.0
    %2790 = vmatpush2.msra.mxu0 0.0
    %2791 = vmatprep.subr.mxu0 0.0
    %2792 = vmatpush2.msra.mxu0 0.0
    %2793 = vmatprep.subr.mxu0 0.0
    %2794 = vmatpush2.msra.mxu0 0.0
    %2795 = vmatprep.subr.mxu0 0.0
    %2796 = vmatpush2.msra.mxu0 0.0
    %2797 = vmatprep.subr.mxu0 0.0
    %2798 = vmatpush2.msra.mxu0 0.0
    %2799 = vmatprep.subr.mxu0 0.0
    %2800 = vmatpush2.msra.mxu0 0.0
    %2801 = vmatprep.mubr.f32.mxu0 0.0
    %v2802 = vand.u32 %v2500, 4294901760
    %v2803 = vsub.f32 %v2500, %v2802
    %2804 = vmatmul.mubr.f32.gmra.mxu0 %v2803
    %v2805 = vpop.f32.mrf.mxu0
    %v2806 = vadd.f32 %v2708, %v2805
    %v2807 = vpop.f32.mrf.mxu0
    %2808 = vmatprep.mubr.f32.mxu0 0.0
    %v2809 = vand.u32 %v2503, 4294901760
    %v2810 = vsub.f32 %v2503, %v2809
    %2811 = vmatmul.mubr.f32.gmra.mxu0 %v2810
    %v2812 = vpop.f32.mrf.mxu0
    %v2813 = vadd.f32 %v2714, %v2812
    %v2814 = vpop.f32.mrf.mxu0
    %2815 = vmatprep.mubr.f32.mxu0 0.0
    %v2816 = vand.u32 %v2506, 4294901760
    %v2817 = vsub.f32 %v2506, %v2816
    %2818 = vmatmul.mubr.f32.gmra.mxu0 %v2817
    %v2819 = vpop.f32.mrf.mxu0
    %v2820 = vadd.f32 %v2720, %v2819
    %v2821 = vpop.f32.mrf.mxu0
    %2822 = vmatprep.mubr.f32.mxu0 0.0
    %v2823 = vand.u32 %v2509, 4294901760
    %v2824 = vsub.f32 %v2509, %v2823
    %2825 = vmatmul.mubr.f32.gmra.mxu0 %v2824
    %v2826 = vpop.f32.mrf.mxu0
    %v2827 = vadd.f32 %v2726, %v2826
    %v2828 = vpop.f32.mrf.mxu0
    %2829 = vdwg.mxu0
    %2830 = vmatprep.subr.mxu0 0.0
    %2831 = vmatpush1.msra.mxu0 0.0
    %2832 = vmatprep.subr.mxu0 0.0
    %2833 = vmatpush1.msra.mxu0 0.0
    %2834 = vmatprep.subr.mxu0 0.0
    %2835 = vmatpush1.msra.mxu0 0.0
    %2836 = vmatprep.subr.mxu0 0.0
    %2837 = vmatpush1.msra.mxu0 0.0
    %2838 = vmatprep.subr.mxu0 0.0
    %2839 = vmatpush1.msra.mxu0 0.0
    %2840 = vmatprep.subr.mxu0 0.0
    %2841 = vmatpush1.msra.mxu0 0.0
    %2842 = vmatprep.subr.mxu0 0.0
    %2843 = vmatpush1.msra.mxu0 0.0
    %2844 = vmatprep.subr.mxu0 0.0
    %2845 = vmatpush1.msra.mxu0 0.0
    %2846 = vmatprep.subr.mxu0 0.0
    %2847 = vmatpush1.msra.mxu0 0.0
    %2848 = vmatprep.subr.mxu0 0.0
    %2849 = vmatpush1.msra.mxu0 0.0
    %2850 = vmatprep.subr.mxu0 0.0
    %2851 = vmatpush1.msra.mxu0 0.0
    %2852 = vmatprep.subr.mxu0 0.0
    %2853 = vmatpush1.msra.mxu0 0.0
    %2854 = vmatprep.subr.mxu0 0.0
    %v2855 = vand.u32 %v2497, 4294901760
    %2856 = vmatpush1.msra.mxu0 %v2855
    %2857 = vmatprep.subr.mxu0 0.0
    %v2858 = vand.u32 %v2496, 4294901760
    %2859 = vmatpush1.msra.mxu0 %v2858
    %2860 = vmatprep.subr.mxu0 0.0
    %v2861 = vand.u32 %v2495, 4294901760
    %2862 = vmatpush1.msra.mxu0 %v2861
    %2863 = vmatprep.subr.mxu0 0.0
    %v2864 = vand.u32 %v2494, 4294901760
    %2865 = vmatpush1.msra.mxu0 %v2864
    %2866 = vmatprep.subr.mxu0 0.0
    %2867 = vmatpush2.msra.mxu0 0.0
    %2868 = vmatprep.subr.mxu0 0.0
    %2869 = vmatpush2.msra.mxu0 0.0
    %2870 = vmatprep.subr.mxu0 0.0
    %2871 = vmatpush2.msra.mxu0 0.0
    %2872 = vmatprep.subr.mxu0 0.0
    %2873 = vmatpush2.msra.mxu0 0.0
    %2874 = vmatprep.subr.mxu0 0.0
    %2875 = vmatpush2.msra.mxu0 0.0
    %2876 = vmatprep.subr.mxu0 0.0
    %2877 = vmatpush2.msra.mxu0 0.0
    %2878 = vmatprep.subr.mxu0 0.0
    %2879 = vmatpush2.msra.mxu0 0.0
    %2880 = vmatprep.subr.mxu0 0.0
    %2881 = vmatpush2.msra.mxu0 0.0
    %2882 = vmatprep.subr.mxu0 0.0
    %2883 = vmatpush2.msra.mxu0 0.0
    %2884 = vmatprep.subr.mxu0 0.0
    %2885 = vmatpush2.msra.mxu0 0.0
    %2886 = vmatprep.subr.mxu0 0.0
    %2887 = vmatpush2.msra.mxu0 0.0
    %2888 = vmatprep.subr.mxu0 0.0
    %2889 = vmatpush2.msra.mxu0 0.0
    %2890 = vmatprep.subr.mxu0 0.0
    %2891 = vmatpush2.msra.mxu0 0.0
    %2892 = vmatprep.subr.mxu0 0.0
    %2893 = vmatpush2.msra.mxu0 0.0
    %2894 = vmatprep.subr.mxu0 0.0
    %2895 = vmatpush2.msra.mxu0 0.0
    %2896 = vmatprep.subr.mxu0 0.0
    %2897 = vmatpush2.msra.mxu0 0.0
    %2898 = vmatprep.mubr.f32.mxu0 0.0
    %v2899 = vand.u32 %v2500, 4294901760
    %v2900 = vsub.f32 %v2500, %v2899
    %v2901 = vand.u32 %v2900, 4294901760
    %2902 = vmatmul.mubr.f32.gmra.mxu0 %v2901
    %v2903 = vpop.f32.mrf.mxu0
    %v2904 = vadd.f32 %v2806, %v2903
    %v2905 = vpop.f32.mrf.mxu0
    %2906 = vmatprep.mubr.f32.mxu0 0.0
    %v2907 = vand.u32 %v2503, 4294901760
    %v2908 = vsub.f32 %v2503, %v2907
    %v2909 = vand.u32 %v2908, 4294901760
    %2910 = vmatmul.mubr.f32.gmra.mxu0 %v2909
    %v2911 = vpop.f32.mrf.mxu0
    %v2912 = vadd.f32 %v2813, %v2911
    %v2913 = vpop.f32.mrf.mxu0
    %2914 = vmatprep.mubr.f32.mxu0 0.0
    %v2915 = vand.u32 %v2506, 4294901760
    %v2916 = vsub.f32 %v2506, %v2915
    %v2917 = vand.u32 %v2916, 4294901760
    %2918 = vmatmul.mubr.f32.gmra.mxu0 %v2917
    %v2919 = vpop.f32.mrf.mxu0
    %v2920 = vadd.f32 %v2820, %v2919
    %v2921 = vpop.f32.mrf.mxu0
    %2922 = vmatprep.mubr.f32.mxu0 0.0
    %v2923 = vand.u32 %v2509, 4294901760
    %v2924 = vsub.f32 %v2509, %v2923
    %v2925 = vand.u32 %v2924, 4294901760
    %2926 = vmatmul.mubr.f32.gmra.mxu0 %v2925
    %v2927 = vpop.f32.mrf.mxu0
    %v2928 = vadd.f32 %v2827, %v2927
    %v2929 = vpop.f32.mrf.mxu0
    %2930 = vdwg.mxu0
    %2931 = vmatprep.subr.mxu0 0.0
    %2932 = vmatpush1.msra.mxu0 0.0
    %2933 = vmatprep.subr.mxu0 0.0
    %2934 = vmatpush1.msra.mxu0 0.0
    %2935 = vmatprep.subr.mxu0 0.0
    %2936 = vmatpush1.msra.mxu0 0.0
    %2937 = vmatprep.subr.mxu0 0.0
    %2938 = vmatpush1.msra.mxu0 0.0
    %2939 = vmatprep.subr.mxu0 0.0
    %2940 = vmatpush1.msra.mxu0 0.0
    %2941 = vmatprep.subr.mxu0 0.0
    %2942 = vmatpush1.msra.mxu0 0.0
    %2943 = vmatprep.subr.mxu0 0.0
    %2944 = vmatpush1.msra.mxu0 0.0
    %2945 = vmatprep.subr.mxu0 0.0
    %2946 = vmatpush1.msra.mxu0 0.0
    %2947 = vmatprep.subr.mxu0 0.0
    %2948 = vmatpush1.msra.mxu0 0.0
    %2949 = vmatprep.subr.mxu0 0.0
    %2950 = vmatpush1.msra.mxu0 0.0
    %2951 = vmatprep.subr.mxu0 0.0
    %2952 = vmatpush1.msra.mxu0 0.0
    %2953 = vmatprep.subr.mxu0 0.0
    %2954 = vmatpush1.msra.mxu0 0.0
    %2955 = vmatprep.subr.mxu0 0.0
    %v2956 = vand.u32 %v2497, 4294901760
    %v2957 = vsub.f32 %v2497, %v2956
    %v2958 = vand.u32 %v2957, 4294901760
    %2959 = vmatpush1.msra.mxu0 %v2958
    %2960 = vmatprep.subr.mxu0 0.0
    %v2961 = vand.u32 %v2496, 4294901760
    %v2962 = vsub.f32 %v2496, %v2961
    %v2963 = vand.u32 %v2962, 4294901760
    %2964 = vmatpush1.msra.mxu0 %v2963
    %2965 = vmatprep.subr.mxu0 0.0
    %v2966 = vand.u32 %v2495, 4294901760
    %v2967 = vsub.f32 %v2495, %v2966
    %v2968 = vand.u32 %v2967, 4294901760
    %2969 = vmatpush1.msra.mxu0 %v2968
    %2970 = vmatprep.subr.mxu0 0.0
    %v2971 = vand.u32 %v2494, 4294901760
    %v2972 = vsub.f32 %v2494, %v2971
    %v2973 = vand.u32 %v2972, 4294901760
    %2974 = vmatpush1.msra.mxu0 %v2973
    %2975 = vmatprep.subr.mxu0 0.0
    %2976 = vmatpush2.msra.mxu0 0.0
    %2977 = vmatprep.subr.mxu0 0.0
    %2978 = vmatpush2.msra.mxu0 0.0
    %2979 = vmatprep.subr.mxu0 0.0
    %2980 = vmatpush2.msra.mxu0 0.0
    %2981 = vmatprep.subr.mxu0 0.0
    %2982 = vmatpush2.msra.mxu0 0.0
    %2983 = vmatprep.subr.mxu0 0.0
    %2984 = vmatpush2.msra.mxu0 0.0
    %2985 = vmatprep.subr.mxu0 0.0
    %2986 = vmatpush2.msra.mxu0 0.0
    %2987 = vmatprep.subr.mxu0 0.0
    %2988 = vmatpush2.msra.mxu0 0.0
    %2989 = vmatprep.subr.mxu0 0.0
    %2990 = vmatpush2.msra.mxu0 0.0
    %2991 = vmatprep.subr.mxu0 0.0
    %2992 = vmatpush2.msra.mxu0 0.0
    %2993 = vmatprep.subr.mxu0 0.0
    %2994 = vmatpush2.msra.mxu0 0.0
    %2995 = vmatprep.subr.mxu0 0.0
    %2996 = vmatpush2.msra.mxu0 0.0
    %2997 = vmatprep.subr.mxu0 0.0
    %2998 = vmatpush2.msra.mxu0 0.0
    %2999 = vmatprep.subr.mxu0 0.0
    %3000 = vmatpush2.msra.mxu0 0.0
    %3001 = vmatprep.subr.mxu0 0.0
    %3002 = vmatpush2.msra.mxu0 0.0
    %3003 = vmatprep.subr.mxu0 0.0
    %3004 = vmatpush2.msra.mxu0 0.0
    %3005 = vmatprep.subr.mxu0 0.0
    %3006 = vmatpush2.msra.mxu0 0.0
    %3007 = vmatprep.mubr.f32.mxu0 0.0
    %v3008 = vand.u32 %v2500, 4294901760
    %3009 = vmatmul.mubr.f32.gmra.mxu0 %v3008
    %v3010 = vpop.f32.mrf.mxu0
    %v3011 = vadd.f32 %v2904, %v3010
    %v3012 = vpop.f32.mrf.mxu0
    %3013 = vmatprep.mubr.f32.mxu0 0.0
    %v3014 = vand.u32 %v2503, 4294901760
    %3015 = vmatmul.mubr.f32.gmra.mxu0 %v3014
    %v3016 = vpop.f32.mrf.mxu0
    %v3017 = vadd.f32 %v2912, %v3016
    %v3018 = vpop.f32.mrf.mxu0
    %3019 = vmatprep.mubr.f32.mxu0 0.0
    %v3020 = vand.u32 %v2506, 4294901760
    %3021 = vmatmul.mubr.f32.gmra.mxu0 %v3020
    %v3022 = vpop.f32.mrf.mxu0
    %v3023 = vadd.f32 %v2920, %v3022
    %v3024 = vpop.f32.mrf.mxu0
    %3025 = vmatprep.mubr.f32.mxu0 0.0
    %v3026 = vand.u32 %v2509, 4294901760
    %3027 = vmatmul.mubr.f32.gmra.mxu0 %v3026
    %v3028 = vpop.f32.mrf.mxu0
    %v3029 = vadd.f32 %v2928, %v3028
    %v3030 = vpop.f32.mrf.mxu0
    %3031 = vdwg.mxu0
    %3032 = vmatprep.subr.mxu0 0.0
    %3033 = vmatpush1.msra.mxu0 0.0
    %3034 = vmatprep.subr.mxu0 0.0
    %3035 = vmatpush1.msra.mxu0 0.0
    %3036 = vmatprep.subr.mxu0 0.0
    %3037 = vmatpush1.msra.mxu0 0.0
    %3038 = vmatprep.subr.mxu0 0.0
    %3039 = vmatpush1.msra.mxu0 0.0
    %3040 = vmatprep.subr.mxu0 0.0
    %3041 = vmatpush1.msra.mxu0 0.0
    %3042 = vmatprep.subr.mxu0 0.0
    %3043 = vmatpush1.msra.mxu0 0.0
    %3044 = vmatprep.subr.mxu0 0.0
    %3045 = vmatpush1.msra.mxu0 0.0
    %3046 = vmatprep.subr.mxu0 0.0
    %3047 = vmatpush1.msra.mxu0 0.0
    %3048 = vmatprep.subr.mxu0 0.0
    %3049 = vmatpush1.msra.mxu0 0.0
    %3050 = vmatprep.subr.mxu0 0.0
    %3051 = vmatpush1.msra.mxu0 0.0
    %3052 = vmatprep.subr.mxu0 0.0
    %3053 = vmatpush1.msra.mxu0 0.0
    %3054 = vmatprep.subr.mxu0 0.0
    %3055 = vmatpush1.msra.mxu0 0.0
    %3056 = vmatprep.subr.mxu0 0.0
    %v3057 = vand.u32 %v2497, 4294901760
    %3058 = vmatpush1.msra.mxu0 %v3057
    %3059 = vmatprep.subr.mxu0 0.0
    %v3060 = vand.u32 %v2496, 4294901760
    %3061 = vmatpush1.msra.mxu0 %v3060
    %3062 = vmatprep.subr.mxu0 0.0
    %v3063 = vand.u32 %v2495, 4294901760
    %3064 = vmatpush1.msra.mxu0 %v3063
    %3065 = vmatprep.subr.mxu0 0.0
    %v3066 = vand.u32 %v2494, 4294901760
    %3067 = vmatpush1.msra.mxu0 %v3066
    %3068 = vmatprep.subr.mxu0 0.0
    %3069 = vmatpush2.msra.mxu0 0.0
    %3070 = vmatprep.subr.mxu0 0.0
    %3071 = vmatpush2.msra.mxu0 0.0
    %3072 = vmatprep.subr.mxu0 0.0
    %3073 = vmatpush2.msra.mxu0 0.0
    %3074 = vmatprep.subr.mxu0 0.0
    %3075 = vmatpush2.msra.mxu0 0.0
    %3076 = vmatprep.subr.mxu0 0.0
    %3077 = vmatpush2.msra.mxu0 0.0
    %3078 = vmatprep.subr.mxu0 0.0
    %3079 = vmatpush2.msra.mxu0 0.0
    %3080 = vmatprep.subr.mxu0 0.0
    %3081 = vmatpush2.msra.mxu0 0.0
    %3082 = vmatprep.subr.mxu0 0.0
    %3083 = vmatpush2.msra.mxu0 0.0
    %3084 = vmatprep.subr.mxu0 0.0
    %3085 = vmatpush2.msra.mxu0 0.0
    %3086 = vmatprep.subr.mxu0 0.0
    %3087 = vmatpush2.msra.mxu0 0.0
    %3088 = vmatprep.subr.mxu0 0.0
    %3089 = vmatpush2.msra.mxu0 0.0
    %3090 = vmatprep.subr.mxu0 0.0
    %3091 = vmatpush2.msra.mxu0 0.0
    %3092 = vmatprep.subr.mxu0 0.0
    %3093 = vmatpush2.msra.mxu0 0.0
    %3094 = vmatprep.subr.mxu0 0.0
    %3095 = vmatpush2.msra.mxu0 0.0
    %3096 = vmatprep.subr.mxu0 0.0
    %3097 = vmatpush2.msra.mxu0 0.0
    %3098 = vmatprep.subr.mxu0 0.0
    %3099 = vmatpush2.msra.mxu0 0.0
    %3100 = vmatprep.mubr.f32.mxu0 0.0
    %v3101 = vand.u32 %v2500, 4294901760
    %3102 = vmatmul.mubr.f32.gmra.mxu0 %v3101
    %v3103 = vpop.f32.mrf.mxu0
    %v3104 = vadd.f32 %v3011, %v3103
    %v3105 = vpop.f32.mrf.mxu0
    %3106 = vmatprep.mubr.f32.mxu0 0.0
    %v3107 = vand.u32 %v2503, 4294901760
    %3108 = vmatmul.mubr.f32.gmra.mxu0 %v3107
    %v3109 = vpop.f32.mrf.mxu0
    %v3110 = vadd.f32 %v3017, %v3109
    %v3111 = vpop.f32.mrf.mxu0
    %3112 = vmatprep.mubr.f32.mxu0 0.0
    %v3113 = vand.u32 %v2506, 4294901760
    %3114 = vmatmul.mubr.f32.gmra.mxu0 %v3113
    %v3115 = vpop.f32.mrf.mxu0
    %v3116 = vadd.f32 %v3023, %v3115
    %v3117 = vpop.f32.mrf.mxu0
    %3118 = vmatprep.mubr.f32.mxu0 0.0
    %v3119 = vand.u32 %v2509, 4294901760
    %3120 = vmatmul.mubr.f32.gmra.mxu0 %v3119
    %v3121 = vpop.f32.mrf.mxu0
    %v3122 = vadd.f32 %v3029, %v3121
    %v3123 = vpop.f32.mrf.mxu0
    %3124 = vdwg.mxu0
    %v3126 = vsel %vm2498, %v737, 0
    %v3129 = vsel %vm2498, %v738, 0
    %v3132 = vsel %vm2498, %v739, 0
    %v3135 = vsel %vm2498, %v740, 0
    %3137 = vmatprep.subr.mxu0 0.0
    %3138 = vmatpush1.msra.mxu0 0.0
    %3139 = vmatprep.subr.mxu0 0.0
    %3140 = vmatpush1.msra.mxu0 0.0
    %3141 = vmatprep.subr.mxu0 0.0
    %3142 = vmatpush1.msra.mxu0 0.0
    %3143 = vmatprep.subr.mxu0 0.0
    %3144 = vmatpush1.msra.mxu0 0.0
    %3145 = vmatprep.subr.mxu0 0.0
    %3146 = vmatpush1.msra.mxu0 0.0
    %3147 = vmatprep.subr.mxu0 0.0
    %3148 = vmatpush1.msra.mxu0 0.0
    %3149 = vmatprep.subr.mxu0 0.0
    %3150 = vmatpush1.msra.mxu0 0.0
    %3151 = vmatprep.subr.mxu0 0.0
    %3152 = vmatpush1.msra.mxu0 0.0
    %3153 = vmatprep.subr.mxu0 0.0
    %3154 = vmatpush1.msra.mxu0 0.0
    %3155 = vmatprep.subr.mxu0 0.0
    %3156 = vmatpush1.msra.mxu0 0.0
    %3157 = vmatprep.subr.mxu0 0.0
    %3158 = vmatpush1.msra.mxu0 0.0
    %3159 = vmatprep.subr.mxu0 0.0
    %3160 = vmatpush1.msra.mxu0 0.0
    %3161 = vmatprep.subr.mxu0 0.0
    %v3162 = vand.u32 %v2493, 4294901760
    %3163 = vmatpush1.msra.mxu0 %v3162
    %3164 = vmatprep.subr.mxu0 0.0
    %v3165 = vand.u32 %v2492, 4294901760
    %3166 = vmatpush1.msra.mxu0 %v3165
    %3167 = vmatprep.subr.mxu0 0.0
    %v3168 = vand.u32 %v2491, 4294901760
    %3169 = vmatpush1.msra.mxu0 %v3168
    %3170 = vmatprep.subr.mxu0 0.0
    %v3171 = vand.u32 %v2490, 4294901760
    %3172 = vmatpush1.msra.mxu0 %v3171
    %3173 = vmatprep.subr.mxu0 0.0
    %3174 = vmatpush2.msra.mxu0 0.0
    %3175 = vmatprep.subr.mxu0 0.0
    %3176 = vmatpush2.msra.mxu0 0.0
    %3177 = vmatprep.subr.mxu0 0.0
    %3178 = vmatpush2.msra.mxu0 0.0
    %3179 = vmatprep.subr.mxu0 0.0
    %3180 = vmatpush2.msra.mxu0 0.0
    %3181 = vmatprep.subr.mxu0 0.0
    %3182 = vmatpush2.msra.mxu0 0.0
    %3183 = vmatprep.subr.mxu0 0.0
    %3184 = vmatpush2.msra.mxu0 0.0
    %3185 = vmatprep.subr.mxu0 0.0
    %3186 = vmatpush2.msra.mxu0 0.0
    %3187 = vmatprep.subr.mxu0 0.0
    %3188 = vmatpush2.msra.mxu0 0.0
    %3189 = vmatprep.subr.mxu0 0.0
    %3190 = vmatpush2.msra.mxu0 0.0
    %3191 = vmatprep.subr.mxu0 0.0
    %3192 = vmatpush2.msra.mxu0 0.0
    %3193 = vmatprep.subr.mxu0 0.0
    %3194 = vmatpush2.msra.mxu0 0.0
    %3195 = vmatprep.subr.mxu0 0.0
    %3196 = vmatpush2.msra.mxu0 0.0
    %3197 = vmatprep.subr.mxu0 0.0
    %3198 = vmatpush2.msra.mxu0 0.0
    %3199 = vmatprep.subr.mxu0 0.0
    %3200 = vmatpush2.msra.mxu0 0.0
    %3201 = vmatprep.subr.mxu0 0.0
    %3202 = vmatpush2.msra.mxu0 0.0
    %3203 = vmatprep.subr.mxu0 0.0
    %3204 = vmatpush2.msra.mxu0 0.0
    %3205 = vmatprep.mubr.f32.mxu0 0.0
    %v3206 = vand.u32 %v3126, 4294901760
    %v3207 = vsub.f32 %v3126, %v3206
    %v3208 = vand.u32 %v3207, 4294901760
    %v3209 = vsub.f32 %v3207, %v3208
    %v3210 = vand.u32 %v3209, 4294901760
    %3211 = vmatmul.mubr.f32.gmra.mxu0 %v3210
    %v3212 = vpop.f32.mrf.mxu0
    %v3213 = vadd.f32 %v3104, %v3212
    %v3214 = vpop.f32.mrf.mxu0
    %3215 = vmatprep.mubr.f32.mxu0 0.0
    %v3216 = vand.u32 %v3129, 4294901760
    %v3217 = vsub.f32 %v3129, %v3216
    %v3218 = vand.u32 %v3217, 4294901760
    %v3219 = vsub.f32 %v3217, %v3218
    %v3220 = vand.u32 %v3219, 4294901760
    %3221 = vmatmul.mubr.f32.gmra.mxu0 %v3220
    %v3222 = vpop.f32.mrf.mxu0
    %v3223 = vadd.f32 %v3110, %v3222
    %v3224 = vpop.f32.mrf.mxu0
    %3225 = vmatprep.mubr.f32.mxu0 0.0
    %v3226 = vand.u32 %v3132, 4294901760
    %v3227 = vsub.f32 %v3132, %v3226
    %v3228 = vand.u32 %v3227, 4294901760
    %v3229 = vsub.f32 %v3227, %v3228
    %v3230 = vand.u32 %v3229, 4294901760
    %3231 = vmatmul.mubr.f32.gmra.mxu0 %v3230
    %v3232 = vpop.f32.mrf.mxu0
    %v3233 = vadd.f32 %v3116, %v3232
    %v3234 = vpop.f32.mrf.mxu0
    %3235 = vmatprep.mubr.f32.mxu0 0.0
    %v3236 = vand.u32 %v3135, 4294901760
    %v3237 = vsub.f32 %v3135, %v3236
    %v3238 = vand.u32 %v3237, 4294901760
    %v3239 = vsub.f32 %v3237, %v3238
    %v3240 = vand.u32 %v3239, 4294901760
    %3241 = vmatmul.mubr.f32.gmra.mxu0 %v3240
    %v3242 = vpop.f32.mrf.mxu0
    %v3243 = vadd.f32 %v3122, %v3242
    %v3244 = vpop.f32.mrf.mxu0
    %3245 = vdwg.mxu0
    %3246 = vmatprep.subr.mxu0 0.0
    %3247 = vmatpush1.msra.mxu0 0.0
    %3248 = vmatprep.subr.mxu0 0.0
    %3249 = vmatpush1.msra.mxu0 0.0
    %3250 = vmatprep.subr.mxu0 0.0
    %3251 = vmatpush1.msra.mxu0 0.0
    %3252 = vmatprep.subr.mxu0 0.0
    %3253 = vmatpush1.msra.mxu0 0.0
    %3254 = vmatprep.subr.mxu0 0.0
    %3255 = vmatpush1.msra.mxu0 0.0
    %3256 = vmatprep.subr.mxu0 0.0
    %3257 = vmatpush1.msra.mxu0 0.0
    %3258 = vmatprep.subr.mxu0 0.0
    %3259 = vmatpush1.msra.mxu0 0.0
    %3260 = vmatprep.subr.mxu0 0.0
    %3261 = vmatpush1.msra.mxu0 0.0
    %3262 = vmatprep.subr.mxu0 0.0
    %3263 = vmatpush1.msra.mxu0 0.0
    %3264 = vmatprep.subr.mxu0 0.0
    %3265 = vmatpush1.msra.mxu0 0.0
    %3266 = vmatprep.subr.mxu0 0.0
    %3267 = vmatpush1.msra.mxu0 0.0
    %3268 = vmatprep.subr.mxu0 0.0
    %3269 = vmatpush1.msra.mxu0 0.0
    %3270 = vmatprep.subr.mxu0 0.0
    %v3271 = vand.u32 %v2493, 4294901760
    %v3272 = vsub.f32 %v2493, %v3271
    %v3273 = vand.u32 %v3272, 4294901760
    %v3274 = vsub.f32 %v3272, %v3273
    %v3275 = vand.u32 %v3274, 4294901760
    %3276 = vmatpush1.msra.mxu0 %v3275
    %3277 = vmatprep.subr.mxu0 0.0
    %v3278 = vand.u32 %v2492, 4294901760
    %v3279 = vsub.f32 %v2492, %v3278
    %v3280 = vand.u32 %v3279, 4294901760
    %v3281 = vsub.f32 %v3279, %v3280
    %v3282 = vand.u32 %v3281, 4294901760
    %3283 = vmatpush1.msra.mxu0 %v3282
    %3284 = vmatprep.subr.mxu0 0.0
    %v3285 = vand.u32 %v2491, 4294901760
    %v3286 = vsub.f32 %v2491, %v3285
    %v3287 = vand.u32 %v3286, 4294901760
    %v3288 = vsub.f32 %v3286, %v3287
    %v3289 = vand.u32 %v3288, 4294901760
    %3290 = vmatpush1.msra.mxu0 %v3289
    %3291 = vmatprep.subr.mxu0 0.0
    %v3292 = vand.u32 %v2490, 4294901760
    %v3293 = vsub.f32 %v2490, %v3292
    %v3294 = vand.u32 %v3293, 4294901760
    %v3295 = vsub.f32 %v3293, %v3294
    %v3296 = vand.u32 %v3295, 4294901760
    %3297 = vmatpush1.msra.mxu0 %v3296
    %3298 = vmatprep.subr.mxu0 0.0
    %3299 = vmatpush2.msra.mxu0 0.0
    %3300 = vmatprep.subr.mxu0 0.0
    %3301 = vmatpush2.msra.mxu0 0.0
    %3302 = vmatprep.subr.mxu0 0.0
    %3303 = vmatpush2.msra.mxu0 0.0
    %3304 = vmatprep.subr.mxu0 0.0
    %3305 = vmatpush2.msra.mxu0 0.0
    %3306 = vmatprep.subr.mxu0 0.0
    %3307 = vmatpush2.msra.mxu0 0.0
    %3308 = vmatprep.subr.mxu0 0.0
    %3309 = vmatpush2.msra.mxu0 0.0
    %3310 = vmatprep.subr.mxu0 0.0
    %3311 = vmatpush2.msra.mxu0 0.0
    %3312 = vmatprep.subr.mxu0 0.0
    %3313 = vmatpush2.msra.mxu0 0.0
    %3314 = vmatprep.subr.mxu0 0.0
    %3315 = vmatpush2.msra.mxu0 0.0
    %3316 = vmatprep.subr.mxu0 0.0
    %3317 = vmatpush2.msra.mxu0 0.0
    %3318 = vmatprep.subr.mxu0 0.0
    %3319 = vmatpush2.msra.mxu0 0.0
    %3320 = vmatprep.subr.mxu0 0.0
    %3321 = vmatpush2.msra.mxu0 0.0
    %3322 = vmatprep.subr.mxu0 0.0
    %3323 = vmatpush2.msra.mxu0 0.0
    %3324 = vmatprep.subr.mxu0 0.0
    %3325 = vmatpush2.msra.mxu0 0.0
    %3326 = vmatprep.subr.mxu0 0.0
    %3327 = vmatpush2.msra.mxu0 0.0
    %3328 = vmatprep.subr.mxu0 0.0
    %3329 = vmatpush2.msra.mxu0 0.0
    %3330 = vmatprep.mubr.f32.mxu0 0.0
    %v3331 = vand.u32 %v3126, 4294901760
    %3332 = vmatmul.mubr.f32.gmra.mxu0 %v3331
    %v3333 = vpop.f32.mrf.mxu0
    %v3334 = vadd.f32 %v3213, %v3333
    %v3335 = vpop.f32.mrf.mxu0
    %3336 = vmatprep.mubr.f32.mxu0 0.0
    %v3337 = vand.u32 %v3129, 4294901760
    %3338 = vmatmul.mubr.f32.gmra.mxu0 %v3337
    %v3339 = vpop.f32.mrf.mxu0
    %v3340 = vadd.f32 %v3223, %v3339
    %v3341 = vpop.f32.mrf.mxu0
    %3342 = vmatprep.mubr.f32.mxu0 0.0
    %v3343 = vand.u32 %v3132, 4294901760
    %3344 = vmatmul.mubr.f32.gmra.mxu0 %v3343
    %v3345 = vpop.f32.mrf.mxu0
    %v3346 = vadd.f32 %v3233, %v3345
    %v3347 = vpop.f32.mrf.mxu0
    %3348 = vmatprep.mubr.f32.mxu0 0.0
    %v3349 = vand.u32 %v3135, 4294901760
    %3350 = vmatmul.mubr.f32.gmra.mxu0 %v3349
    %v3351 = vpop.f32.mrf.mxu0
    %v3352 = vadd.f32 %v3243, %v3351
    %v3353 = vpop.f32.mrf.mxu0
    %3354 = vdwg.mxu0
    %3355 = vmatprep.subr.mxu0 0.0
    %3356 = vmatpush1.msra.mxu0 0.0
    %3357 = vmatprep.subr.mxu0 0.0
    %3358 = vmatpush1.msra.mxu0 0.0
    %3359 = vmatprep.subr.mxu0 0.0
    %3360 = vmatpush1.msra.mxu0 0.0
    %3361 = vmatprep.subr.mxu0 0.0
    %3362 = vmatpush1.msra.mxu0 0.0
    %3363 = vmatprep.subr.mxu0 0.0
    %3364 = vmatpush1.msra.mxu0 0.0
    %3365 = vmatprep.subr.mxu0 0.0
    %3366 = vmatpush1.msra.mxu0 0.0
    %3367 = vmatprep.subr.mxu0 0.0
    %3368 = vmatpush1.msra.mxu0 0.0
    %3369 = vmatprep.subr.mxu0 0.0
    %3370 = vmatpush1.msra.mxu0 0.0
    %3371 = vmatprep.subr.mxu0 0.0
    %3372 = vmatpush1.msra.mxu0 0.0
    %3373 = vmatprep.subr.mxu0 0.0
    %3374 = vmatpush1.msra.mxu0 0.0
    %3375 = vmatprep.subr.mxu0 0.0
    %3376 = vmatpush1.msra.mxu0 0.0
    %3377 = vmatprep.subr.mxu0 0.0
    %3378 = vmatpush1.msra.mxu0 0.0
    %3379 = vmatprep.subr.mxu0 0.0
    %v3380 = vand.u32 %v2493, 4294901760
    %v3381 = vsub.f32 %v2493, %v3380
    %3382 = vmatpush1.msra.mxu0 %v3381
    %3383 = vmatprep.subr.mxu0 0.0
    %v3384 = vand.u32 %v2492, 4294901760
    %v3385 = vsub.f32 %v2492, %v3384
    %3386 = vmatpush1.msra.mxu0 %v3385
    %3387 = vmatprep.subr.mxu0 0.0
    %v3388 = vand.u32 %v2491, 4294901760
    %v3389 = vsub.f32 %v2491, %v3388
    %3390 = vmatpush1.msra.mxu0 %v3389
    %3391 = vmatprep.subr.mxu0 0.0
    %v3392 = vand.u32 %v2490, 4294901760
    %v3393 = vsub.f32 %v2490, %v3392
    %3394 = vmatpush1.msra.mxu0 %v3393
    %3395 = vmatprep.subr.mxu0 0.0
    %3396 = vmatpush2.msra.mxu0 0.0
    %3397 = vmatprep.subr.mxu0 0.0
    %3398 = vmatpush2.msra.mxu0 0.0
    %3399 = vmatprep.subr.mxu0 0.0
    %3400 = vmatpush2.msra.mxu0 0.0
    %3401 = vmatprep.subr.mxu0 0.0
    %3402 = vmatpush2.msra.mxu0 0.0
    %3403 = vmatprep.subr.mxu0 0.0
    %3404 = vmatpush2.msra.mxu0 0.0
    %3405 = vmatprep.subr.mxu0 0.0
    %3406 = vmatpush2.msra.mxu0 0.0
    %3407 = vmatprep.subr.mxu0 0.0
    %3408 = vmatpush2.msra.mxu0 0.0
    %3409 = vmatprep.subr.mxu0 0.0
    %3410 = vmatpush2.msra.mxu0 0.0
    %3411 = vmatprep.subr.mxu0 0.0
    %3412 = vmatpush2.msra.mxu0 0.0
    %3413 = vmatprep.subr.mxu0 0.0
    %3414 = vmatpush2.msra.mxu0 0.0
    %3415 = vmatprep.subr.mxu0 0.0
    %3416 = vmatpush2.msra.mxu0 0.0
    %3417 = vmatprep.subr.mxu0 0.0
    %3418 = vmatpush2.msra.mxu0 0.0
    %3419 = vmatprep.subr.mxu0 0.0
    %3420 = vmatpush2.msra.mxu0 0.0
    %3421 = vmatprep.subr.mxu0 0.0
    %3422 = vmatpush2.msra.mxu0 0.0
    %3423 = vmatprep.subr.mxu0 0.0
    %3424 = vmatpush2.msra.mxu0 0.0
    %3425 = vmatprep.subr.mxu0 0.0
    %3426 = vmatpush2.msra.mxu0 0.0
    %3427 = vmatprep.mubr.f32.mxu0 0.0
    %v3428 = vand.u32 %v3126, 4294901760
    %v3429 = vsub.f32 %v3126, %v3428
    %3430 = vmatmul.mubr.f32.gmra.mxu0 %v3429
    %v3431 = vpop.f32.mrf.mxu0
    %v3432 = vadd.f32 %v3334, %v3431
    %v3433 = vpop.f32.mrf.mxu0
    %3434 = vmatprep.mubr.f32.mxu0 0.0
    %v3435 = vand.u32 %v3129, 4294901760
    %v3436 = vsub.f32 %v3129, %v3435
    %3437 = vmatmul.mubr.f32.gmra.mxu0 %v3436
    %v3438 = vpop.f32.mrf.mxu0
    %v3439 = vadd.f32 %v3340, %v3438
    %v3440 = vpop.f32.mrf.mxu0
    %3441 = vmatprep.mubr.f32.mxu0 0.0
    %v3442 = vand.u32 %v3132, 4294901760
    %v3443 = vsub.f32 %v3132, %v3442
    %3444 = vmatmul.mubr.f32.gmra.mxu0 %v3443
    %v3445 = vpop.f32.mrf.mxu0
    %v3446 = vadd.f32 %v3346, %v3445
    %v3447 = vpop.f32.mrf.mxu0
    %3448 = vmatprep.mubr.f32.mxu0 0.0
    %v3449 = vand.u32 %v3135, 4294901760
    %v3450 = vsub.f32 %v3135, %v3449
    %3451 = vmatmul.mubr.f32.gmra.mxu0 %v3450
    %v3452 = vpop.f32.mrf.mxu0
    %v3453 = vadd.f32 %v3352, %v3452
    %v3454 = vpop.f32.mrf.mxu0
    %3455 = vdwg.mxu0
    %3456 = vmatprep.subr.mxu0 0.0
    %3457 = vmatpush1.msra.mxu0 0.0
    %3458 = vmatprep.subr.mxu0 0.0
    %3459 = vmatpush1.msra.mxu0 0.0
    %3460 = vmatprep.subr.mxu0 0.0
    %3461 = vmatpush1.msra.mxu0 0.0
    %3462 = vmatprep.subr.mxu0 0.0
    %3463 = vmatpush1.msra.mxu0 0.0
    %3464 = vmatprep.subr.mxu0 0.0
    %3465 = vmatpush1.msra.mxu0 0.0
    %3466 = vmatprep.subr.mxu0 0.0
    %3467 = vmatpush1.msra.mxu0 0.0
    %3468 = vmatprep.subr.mxu0 0.0
    %3469 = vmatpush1.msra.mxu0 0.0
    %3470 = vmatprep.subr.mxu0 0.0
    %3471 = vmatpush1.msra.mxu0 0.0
    %3472 = vmatprep.subr.mxu0 0.0
    %3473 = vmatpush1.msra.mxu0 0.0
    %3474 = vmatprep.subr.mxu0 0.0
    %3475 = vmatpush1.msra.mxu0 0.0
    %3476 = vmatprep.subr.mxu0 0.0
    %3477 = vmatpush1.msra.mxu0 0.0
    %3478 = vmatprep.subr.mxu0 0.0
    %3479 = vmatpush1.msra.mxu0 0.0
    %3480 = vmatprep.subr.mxu0 0.0
    %v3481 = vand.u32 %v2493, 4294901760
    %3482 = vmatpush1.msra.mxu0 %v3481
    %3483 = vmatprep.subr.mxu0 0.0
    %v3484 = vand.u32 %v2492, 4294901760
    %3485 = vmatpush1.msra.mxu0 %v3484
    %3486 = vmatprep.subr.mxu0 0.0
    %v3487 = vand.u32 %v2491, 4294901760
    %3488 = vmatpush1.msra.mxu0 %v3487
    %3489 = vmatprep.subr.mxu0 0.0
    %v3490 = vand.u32 %v2490, 4294901760
    %3491 = vmatpush1.msra.mxu0 %v3490
    %3492 = vmatprep.subr.mxu0 0.0
    %3493 = vmatpush2.msra.mxu0 0.0
    %3494 = vmatprep.subr.mxu0 0.0
    %3495 = vmatpush2.msra.mxu0 0.0
    %3496 = vmatprep.subr.mxu0 0.0
    %3497 = vmatpush2.msra.mxu0 0.0
    %3498 = vmatprep.subr.mxu0 0.0
    %3499 = vmatpush2.msra.mxu0 0.0
    %3500 = vmatprep.subr.mxu0 0.0
    %3501 = vmatpush2.msra.mxu0 0.0
    %3502 = vmatprep.subr.mxu0 0.0
    %3503 = vmatpush2.msra.mxu0 0.0
    %3504 = vmatprep.subr.mxu0 0.0
    %3505 = vmatpush2.msra.mxu0 0.0
    %3506 = vmatprep.subr.mxu0 0.0
    %3507 = vmatpush2.msra.mxu0 0.0
    %3508 = vmatprep.subr.mxu0 0.0
    %3509 = vmatpush2.msra.mxu0 0.0
    %3510 = vmatprep.subr.mxu0 0.0
    %3511 = vmatpush2.msra.mxu0 0.0
    %3512 = vmatprep.subr.mxu0 0.0
    %3513 = vmatpush2.msra.mxu0 0.0
    %3514 = vmatprep.subr.mxu0 0.0
    %3515 = vmatpush2.msra.mxu0 0.0
    %3516 = vmatprep.subr.mxu0 0.0
    %3517 = vmatpush2.msra.mxu0 0.0
    %3518 = vmatprep.subr.mxu0 0.0
    %3519 = vmatpush2.msra.mxu0 0.0
    %3520 = vmatprep.subr.mxu0 0.0
    %3521 = vmatpush2.msra.mxu0 0.0
    %3522 = vmatprep.subr.mxu0 0.0
    %3523 = vmatpush2.msra.mxu0 0.0
    %3524 = vmatprep.mubr.f32.mxu0 0.0
    %v3525 = vand.u32 %v3126, 4294901760
    %v3526 = vsub.f32 %v3126, %v3525
    %v3527 = vand.u32 %v3526, 4294901760
    %3528 = vmatmul.mubr.f32.gmra.mxu0 %v3527
    %v3529 = vpop.f32.mrf.mxu0
    %v3530 = vadd.f32 %v3432, %v3529
    %v3531 = vpop.f32.mrf.mxu0
    %3532 = vmatprep.mubr.f32.mxu0 0.0
    %v3533 = vand.u32 %v3129, 4294901760
    %v3534 = vsub.f32 %v3129, %v3533
    %v3535 = vand.u32 %v3534, 4294901760
    %3536 = vmatmul.mubr.f32.gmra.mxu0 %v3535
    %v3537 = vpop.f32.mrf.mxu0
    %v3538 = vadd.f32 %v3439, %v3537
    %v3539 = vpop.f32.mrf.mxu0
    %3540 = vmatprep.mubr.f32.mxu0 0.0
    %v3541 = vand.u32 %v3132, 4294901760
    %v3542 = vsub.f32 %v3132, %v3541
    %v3543 = vand.u32 %v3542, 4294901760
    %3544 = vmatmul.mubr.f32.gmra.mxu0 %v3543
    %v3545 = vpop.f32.mrf.mxu0
    %v3546 = vadd.f32 %v3446, %v3545
    %v3547 = vpop.f32.mrf.mxu0
    %3548 = vmatprep.mubr.f32.mxu0 0.0
    %v3549 = vand.u32 %v3135, 4294901760
    %v3550 = vsub.f32 %v3135, %v3549
    %v3551 = vand.u32 %v3550, 4294901760
    %3552 = vmatmul.mubr.f32.gmra.mxu0 %v3551
    %v3553 = vpop.f32.mrf.mxu0
    %v3554 = vadd.f32 %v3453, %v3553
    %v3555 = vpop.f32.mrf.mxu0
    %3556 = vdwg.mxu0
    %3557 = vmatprep.subr.mxu0 0.0
    %3558 = vmatpush1.msra.mxu0 0.0
    %3559 = vmatprep.subr.mxu0 0.0
    %3560 = vmatpush1.msra.mxu0 0.0
    %3561 = vmatprep.subr.mxu0 0.0
    %3562 = vmatpush1.msra.mxu0 0.0
    %3563 = vmatprep.subr.mxu0 0.0
    %3564 = vmatpush1.msra.mxu0 0.0
    %3565 = vmatprep.subr.mxu0 0.0
    %3566 = vmatpush1.msra.mxu0 0.0
    %3567 = vmatprep.subr.mxu0 0.0
    %3568 = vmatpush1.msra.mxu0 0.0
    %3569 = vmatprep.subr.mxu0 0.0
    %3570 = vmatpush1.msra.mxu0 0.0
    %3571 = vmatprep.subr.mxu0 0.0
    %3572 = vmatpush1.msra.mxu0 0.0
    %3573 = vmatprep.subr.mxu0 0.0
    %3574 = vmatpush1.msra.mxu0 0.0
    %3575 = vmatprep.subr.mxu0 0.0
    %3576 = vmatpush1.msra.mxu0 0.0
    %3577 = vmatprep.subr.mxu0 0.0
    %3578 = vmatpush1.msra.mxu0 0.0
    %3579 = vmatprep.subr.mxu0 0.0
    %3580 = vmatpush1.msra.mxu0 0.0
    %3581 = vmatprep.subr.mxu0 0.0
    %v3582 = vand.u32 %v2493, 4294901760
    %v3583 = vsub.f32 %v2493, %v3582
    %v3584 = vand.u32 %v3583, 4294901760
    %3585 = vmatpush1.msra.mxu0 %v3584
    %3586 = vmatprep.subr.mxu0 0.0
    %v3587 = vand.u32 %v2492, 4294901760
    %v3588 = vsub.f32 %v2492, %v3587
    %v3589 = vand.u32 %v3588, 4294901760
    %3590 = vmatpush1.msra.mxu0 %v3589
    %3591 = vmatprep.subr.mxu0 0.0
    %v3592 = vand.u32 %v2491, 4294901760
    %v3593 = vsub.f32 %v2491, %v3592
    %v3594 = vand.u32 %v3593, 4294901760
    %3595 = vmatpush1.msra.mxu0 %v3594
    %3596 = vmatprep.subr.mxu0 0.0
    %v3597 = vand.u32 %v2490, 4294901760
    %v3598 = vsub.f32 %v2490, %v3597
    %v3599 = vand.u32 %v3598, 4294901760
    %3600 = vmatpush1.msra.mxu0 %v3599
    %3601 = vmatprep.subr.mxu0 0.0
    %3602 = vmatpush2.msra.mxu0 0.0
    %3603 = vmatprep.subr.mxu0 0.0
    %3604 = vmatpush2.msra.mxu0 0.0
    %3605 = vmatprep.subr.mxu0 0.0
    %3606 = vmatpush2.msra.mxu0 0.0
    %3607 = vmatprep.subr.mxu0 0.0
    %3608 = vmatpush2.msra.mxu0 0.0
    %3609 = vmatprep.subr.mxu0 0.0
    %3610 = vmatpush2.msra.mxu0 0.0
    %3611 = vmatprep.subr.mxu0 0.0
    %3612 = vmatpush2.msra.mxu0 0.0
    %3613 = vmatprep.subr.mxu0 0.0
    %3614 = vmatpush2.msra.mxu0 0.0
    %3615 = vmatprep.subr.mxu0 0.0
    %3616 = vmatpush2.msra.mxu0 0.0
    %3617 = vmatprep.subr.mxu0 0.0
    %3618 = vmatpush2.msra.mxu0 0.0
    %3619 = vmatprep.subr.mxu0 0.0
    %3620 = vmatpush2.msra.mxu0 0.0
    %3621 = vmatprep.subr.mxu0 0.0
    %3622 = vmatpush2.msra.mxu0 0.0
    %3623 = vmatprep.subr.mxu0 0.0
    %3624 = vmatpush2.msra.mxu0 0.0
    %3625 = vmatprep.subr.mxu0 0.0
    %3626 = vmatpush2.msra.mxu0 0.0
    %3627 = vmatprep.subr.mxu0 0.0
    %3628 = vmatpush2.msra.mxu0 0.0
    %3629 = vmatprep.subr.mxu0 0.0
    %3630 = vmatpush2.msra.mxu0 0.0
    %3631 = vmatprep.subr.mxu0 0.0
    %3632 = vmatpush2.msra.mxu0 0.0
    %3633 = vmatprep.mubr.f32.mxu0 0.0
    %v3634 = vand.u32 %v3126, 4294901760
    %3635 = vmatmul.mubr.f32.gmra.mxu0 %v3634
    %v3636 = vpop.f32.mrf.mxu0
    %v3637 = vadd.f32 %v3530, %v3636
    %v3638 = vpop.f32.mrf.mxu0
    %3639 = vmatprep.mubr.f32.mxu0 0.0
    %v3640 = vand.u32 %v3129, 4294901760
    %3641 = vmatmul.mubr.f32.gmra.mxu0 %v3640
    %v3642 = vpop.f32.mrf.mxu0
    %v3643 = vadd.f32 %v3538, %v3642
    %v3644 = vpop.f32.mrf.mxu0
    %3645 = vmatprep.mubr.f32.mxu0 0.0
    %v3646 = vand.u32 %v3132, 4294901760
    %3647 = vmatmul.mubr.f32.gmra.mxu0 %v3646
    %v3648 = vpop.f32.mrf.mxu0
    %v3649 = vadd.f32 %v3546, %v3648
    %v3650 = vpop.f32.mrf.mxu0
    %3651 = vmatprep.mubr.f32.mxu0 0.0
    %v3652 = vand.u32 %v3135, 4294901760
    %3653 = vmatmul.mubr.f32.gmra.mxu0 %v3652
    %v3654 = vpop.f32.mrf.mxu0
    %v3655 = vadd.f32 %v3554, %v3654
    %v3656 = vpop.f32.mrf.mxu0
    %3657 = vdwg.mxu0
    %3658 = vmatprep.subr.mxu0 0.0
    %3659 = vmatpush1.msra.mxu0 0.0
    %3660 = vmatprep.subr.mxu0 0.0
    %3661 = vmatpush1.msra.mxu0 0.0
    %3662 = vmatprep.subr.mxu0 0.0
    %3663 = vmatpush1.msra.mxu0 0.0
    %3664 = vmatprep.subr.mxu0 0.0
    %3665 = vmatpush1.msra.mxu0 0.0
    %3666 = vmatprep.subr.mxu0 0.0
    %3667 = vmatpush1.msra.mxu0 0.0
    %3668 = vmatprep.subr.mxu0 0.0
    %3669 = vmatpush1.msra.mxu0 0.0
    %3670 = vmatprep.subr.mxu0 0.0
    %3671 = vmatpush1.msra.mxu0 0.0
    %3672 = vmatprep.subr.mxu0 0.0
    %3673 = vmatpush1.msra.mxu0 0.0
    %3674 = vmatprep.subr.mxu0 0.0
    %3675 = vmatpush1.msra.mxu0 0.0
    %3676 = vmatprep.subr.mxu0 0.0
    %3677 = vmatpush1.msra.mxu0 0.0
    %3678 = vmatprep.subr.mxu0 0.0
    %3679 = vmatpush1.msra.mxu0 0.0
    %3680 = vmatprep.subr.mxu0 0.0
    %3681 = vmatpush1.msra.mxu0 0.0
    %3682 = vmatprep.subr.mxu0 0.0
    %v3683 = vand.u32 %v2493, 4294901760
    %3684 = vmatpush1.msra.mxu0 %v3683
    %3685 = vmatprep.subr.mxu0 0.0
    %v3686 = vand.u32 %v2492, 4294901760
    %3687 = vmatpush1.msra.mxu0 %v3686
    %3688 = vmatprep.subr.mxu0 0.0
    %v3689 = vand.u32 %v2491, 4294901760
    %3690 = vmatpush1.msra.mxu0 %v3689
    %3691 = vmatprep.subr.mxu0 0.0
    %v3692 = vand.u32 %v2490, 4294901760
    %3693 = vmatpush1.msra.mxu0 %v3692
    %3694 = vmatprep.subr.mxu0 0.0
    %3695 = vmatpush2.msra.mxu0 0.0
    %3696 = vmatprep.subr.mxu0 0.0
    %3697 = vmatpush2.msra.mxu0 0.0
    %3698 = vmatprep.subr.mxu0 0.0
    %3699 = vmatpush2.msra.mxu0 0.0
    %3700 = vmatprep.subr.mxu0 0.0
    %3701 = vmatpush2.msra.mxu0 0.0
    %3702 = vmatprep.subr.mxu0 0.0
    %3703 = vmatpush2.msra.mxu0 0.0
    %3704 = vmatprep.subr.mxu0 0.0
    %3705 = vmatpush2.msra.mxu0 0.0
    %3706 = vmatprep.subr.mxu0 0.0
    %3707 = vmatpush2.msra.mxu0 0.0
    %3708 = vmatprep.subr.mxu0 0.0
    %3709 = vmatpush2.msra.mxu0 0.0
    %3710 = vmatprep.subr.mxu0 0.0
    %3711 = vmatpush2.msra.mxu0 0.0
    %3712 = vmatprep.subr.mxu0 0.0
    %3713 = vmatpush2.msra.mxu0 0.0
    %3714 = vmatprep.subr.mxu0 0.0
    %3715 = vmatpush2.msra.mxu0 0.0
    %3716 = vmatprep.subr.mxu0 0.0
    %3717 = vmatpush2.msra.mxu0 0.0
    %3718 = vmatprep.subr.mxu0 0.0
    %3719 = vmatpush2.msra.mxu0 0.0
    %3720 = vmatprep.subr.mxu0 0.0
    %3721 = vmatpush2.msra.mxu0 0.0
    %3722 = vmatprep.subr.mxu0 0.0
    %3723 = vmatpush2.msra.mxu0 0.0
    %3724 = vmatprep.subr.mxu0 0.0
    %3725 = vmatpush2.msra.mxu0 0.0
    %3726 = vmatprep.mubr.f32.mxu0 0.0
    %v3727 = vand.u32 %v3126, 4294901760
    %3728 = vmatmul.mubr.f32.gmra.mxu0 %v3727
    %v3729 = vpop.f32.mrf.mxu0
    %v3730 = vadd.f32 %v3637, %v3729
    %v3731 = vpop.f32.mrf.mxu0
    %3732 = vmatprep.mubr.f32.mxu0 0.0
    %v3733 = vand.u32 %v3129, 4294901760
    %3734 = vmatmul.mubr.f32.gmra.mxu0 %v3733
    %v3735 = vpop.f32.mrf.mxu0
    %v3736 = vadd.f32 %v3643, %v3735
    %v3737 = vpop.f32.mrf.mxu0
    %3738 = vmatprep.mubr.f32.mxu0 0.0
    %v3739 = vand.u32 %v3132, 4294901760
    %3740 = vmatmul.mubr.f32.gmra.mxu0 %v3739
    %v3741 = vpop.f32.mrf.mxu0
    %v3742 = vadd.f32 %v3649, %v3741
    %v3743 = vpop.f32.mrf.mxu0
    %3744 = vmatprep.mubr.f32.mxu0 0.0
    %v3745 = vand.u32 %v3135, 4294901760
    %3746 = vmatmul.mubr.f32.gmra.mxu0 %v3745
    %v3747 = vpop.f32.mrf.mxu0
    %v3748 = vadd.f32 %v3655, %v3747
    %v3749 = vpop.f32.mrf.mxu0
    %3750 = vdwg.mxu0
    %v3751 = vld [vmem:[%s13] sm:$0x1]
    %v3753 = vlaneseq
    %v3754 = vshrl.u32 %v3753, 7
    %v3755 = vsub.s32 0, %v3754
    %v3756 = vrot.slane %v3751, %v3755
    %v3758 = vadd.f32 %v3730, %v3756
    %v3759 = vadd.f32 %v3736, %v3756
    %v3760 = vadd.f32 %v3742, %v3756
    %v3761 = vadd.f32 %v3748, %v3756
    %3762 = vst.msk [vmem:[#allocation13] sm:$0xff] %vm2498, %v3758
    %3763 = vst.msk [vmem:[#allocation13 + $0x8] sm:$0xff] %vm2498, %v3759
    %3764 = vst.msk [vmem:[#allocation13 + $0x10] sm:$0xff] %vm2498, %v3760
    %3765 = vst.msk [vmem:[#allocation13 + $0x18] sm:$0xff] %vm2498, %v3761
    %v3766 = vld [vmem:[#allocation10] sm:$0xff]
    %v3767 = vld [vmem:[#allocation10 + $0x8] sm:$0xff]
    %v3768 = vld [vmem:[#allocation10 + $0x10] sm:$0xff]
    %v3769 = vld [vmem:[#allocation10 + $0x18] sm:$0xff]
    %v3770 = vld [vmem:[#allocation11] sm:$0xff]
    %v3771 = vld [vmem:[#allocation11 + $0x8] sm:$0xff]
    %v3772 = vld [vmem:[#allocation11 + $0x10] sm:$0xff]
    %v3773 = vld [vmem:[#allocation11 + $0x18] sm:$0xff]
    %3774 = vmatprep.subr.mxu0 0.0
    %3775 = vmatpush1.msra.mxu0 0.0
    %3776 = vmatprep.subr.mxu0 0.0
    %3777 = vmatpush1.msra.mxu0 0.0
    %3778 = vmatprep.subr.mxu0 0.0
    %3779 = vmatpush1.msra.mxu0 0.0
    %3780 = vmatprep.subr.mxu0 0.0
    %3781 = vmatpush1.msra.mxu0 0.0
    %3782 = vmatprep.subr.mxu0 0.0
    %3783 = vmatpush1.msra.mxu0 0.0
    %3784 = vmatprep.subr.mxu0 0.0
    %3785 = vmatpush1.msra.mxu0 0.0
    %3786 = vmatprep.subr.mxu0 0.0
    %3787 = vmatpush1.msra.mxu0 0.0
    %3788 = vmatprep.subr.mxu0 0.0
    %3789 = vmatpush1.msra.mxu0 0.0
    %3790 = vmatprep.subr.mxu0 0.0
    %3791 = vmatpush1.msra.mxu0 0.0
    %3792 = vmatprep.subr.mxu0 0.0
    %3793 = vmatpush1.msra.mxu0 0.0
    %3794 = vmatprep.subr.mxu0 0.0
    %3795 = vmatpush1.msra.mxu0 0.0
    %3796 = vmatprep.subr.mxu0 0.0
    %3797 = vmatpush1.msra.mxu0 0.0
    %3798 = vmatprep.subr.mxu0 0.0
    %v3799 = vand.u32 %v3773, 4294901760
    %3800 = vmatpush1.msra.mxu0 %v3799
    %3801 = vmatprep.subr.mxu0 0.0
    %v3802 = vand.u32 %v3772, 4294901760
    %3803 = vmatpush1.msra.mxu0 %v3802
    %3804 = vmatprep.subr.mxu0 0.0
    %v3805 = vand.u32 %v3771, 4294901760
    %3806 = vmatpush1.msra.mxu0 %v3805
    %3807 = vmatprep.subr.mxu0 0.0
    %v3808 = vand.u32 %v3770, 4294901760
    %3809 = vmatpush1.msra.mxu0 %v3808
    %3810 = vmatprep.subr.mxu0 0.0
    %3811 = vmatpush2.msra.mxu0 0.0
    %3812 = vmatprep.subr.mxu0 0.0
    %3813 = vmatpush2.msra.mxu0 0.0
    %3814 = vmatprep.subr.mxu0 0.0
    %3815 = vmatpush2.msra.mxu0 0.0
    %3816 = vmatprep.subr.mxu0 0.0
    %3817 = vmatpush2.msra.mxu0 0.0
    %3818 = vmatprep.subr.mxu0 0.0
    %3819 = vmatpush2.msra.mxu0 0.0
    %3820 = vmatprep.subr.mxu0 0.0
    %3821 = vmatpush2.msra.mxu0 0.0
    %3822 = vmatprep.subr.mxu0 0.0
    %3823 = vmatpush2.msra.mxu0 0.0
    %3824 = vmatprep.subr.mxu0 0.0
    %3825 = vmatpush2.msra.mxu0 0.0
    %3826 = vmatprep.subr.mxu0 0.0
    %3827 = vmatpush2.msra.mxu0 0.0
    %3828 = vmatprep.subr.mxu0 0.0
    %3829 = vmatpush2.msra.mxu0 0.0
    %3830 = vmatprep.subr.mxu0 0.0
    %3831 = vmatpush2.msra.mxu0 0.0
    %3832 = vmatprep.subr.mxu0 0.0
    %3833 = vmatpush2.msra.mxu0 0.0
    %3834 = vmatprep.subr.mxu0 0.0
    %3835 = vmatpush2.msra.mxu0 0.0
    %3836 = vmatprep.subr.mxu0 0.0
    %3837 = vmatpush2.msra.mxu0 0.0
    %3838 = vmatprep.subr.mxu0 0.0
    %3839 = vmatpush2.msra.mxu0 0.0
    %3840 = vmatprep.subr.mxu0 0.0
    %3841 = vmatpush2.msra.mxu0 0.0
    %3842 = vmatprep.mubr.f32.mxu0 0.0
    %v3843 = vand.u32 %v2500, 4294901760
    %v3844 = vsub.f32 %v2500, %v3843
    %v3845 = vand.u32 %v3844, 4294901760
    %v3846 = vsub.f32 %v3844, %v3845
    %v3847 = vand.u32 %v3846, 4294901760
    %3848 = vmatmul.mubr.f32.gmra.mxu0 %v3847
    %v3849 = vpop.f32.mrf.mxu0
    %v3850 = vadd.f32 0.0, %v3849
    %v3851 = vpop.f32.mrf.mxu0
    %3852 = vmatprep.mubr.f32.mxu0 0.0
    %v3853 = vand.u32 %v2503, 4294901760
    %v3854 = vsub.f32 %v2503, %v3853
    %v3855 = vand.u32 %v3854, 4294901760
    %v3856 = vsub.f32 %v3854, %v3855
    %v3857 = vand.u32 %v3856, 4294901760
    %3858 = vmatmul.mubr.f32.gmra.mxu0 %v3857
    %v3859 = vpop.f32.mrf.mxu0
    %v3860 = vadd.f32 0.0, %v3859
    %v3861 = vpop.f32.mrf.mxu0
    %3862 = vmatprep.mubr.f32.mxu0 0.0
    %v3863 = vand.u32 %v2506, 4294901760
    %v3864 = vsub.f32 %v2506, %v3863
    %v3865 = vand.u32 %v3864, 4294901760
    %v3866 = vsub.f32 %v3864, %v3865
    %v3867 = vand.u32 %v3866, 4294901760
    %3868 = vmatmul.mubr.f32.gmra.mxu0 %v3867
    %v3869 = vpop.f32.mrf.mxu0
    %v3870 = vadd.f32 0.0, %v3869
    %v3871 = vpop.f32.mrf.mxu0
    %3872 = vmatprep.mubr.f32.mxu0 0.0
    %v3873 = vand.u32 %v2509, 4294901760
    %v3874 = vsub.f32 %v2509, %v3873
    %v3875 = vand.u32 %v3874, 4294901760
    %v3876 = vsub.f32 %v3874, %v3875
    %v3877 = vand.u32 %v3876, 4294901760
    %3878 = vmatmul.mubr.f32.gmra.mxu0 %v3877
    %v3879 = vpop.f32.mrf.mxu0
    %v3880 = vadd.f32 0.0, %v3879
    %v3881 = vpop.f32.mrf.mxu0
    %3882 = vdwg.mxu0
    %3883 = vmatprep.subr.mxu0 0.0
    %3884 = vmatpush1.msra.mxu0 0.0
    %3885 = vmatprep.subr.mxu0 0.0
    %3886 = vmatpush1.msra.mxu0 0.0
    %3887 = vmatprep.subr.mxu0 0.0
    %3888 = vmatpush1.msra.mxu0 0.0
    %3889 = vmatprep.subr.mxu0 0.0
    %3890 = vmatpush1.msra.mxu0 0.0
    %3891 = vmatprep.subr.mxu0 0.0
    %3892 = vmatpush1.msra.mxu0 0.0
    %3893 = vmatprep.subr.mxu0 0.0
    %3894 = vmatpush1.msra.mxu0 0.0
    %3895 = vmatprep.subr.mxu0 0.0
    %3896 = vmatpush1.msra.mxu0 0.0
    %3897 = vmatprep.subr.mxu0 0.0
    %3898 = vmatpush1.msra.mxu0 0.0
    %3899 = vmatprep.subr.mxu0 0.0
    %3900 = vmatpush1.msra.mxu0 0.0
    %3901 = vmatprep.subr.mxu0 0.0
    %3902 = vmatpush1.msra.mxu0 0.0
    %3903 = vmatprep.subr.mxu0 0.0
    %3904 = vmatpush1.msra.mxu0 0.0
    %3905 = vmatprep.subr.mxu0 0.0
    %3906 = vmatpush1.msra.mxu0 0.0
    %3907 = vmatprep.subr.mxu0 0.0
    %v3908 = vand.u32 %v3773, 4294901760
    %v3909 = vsub.f32 %v3773, %v3908
    %v3910 = vand.u32 %v3909, 4294901760
    %v3911 = vsub.f32 %v3909, %v3910
    %v3912 = vand.u32 %v3911, 4294901760
    %3913 = vmatpush1.msra.mxu0 %v3912
    %3914 = vmatprep.subr.mxu0 0.0
    %v3915 = vand.u32 %v3772, 4294901760
    %v3916 = vsub.f32 %v3772, %v3915
    %v3917 = vand.u32 %v3916, 4294901760
    %v3918 = vsub.f32 %v3916, %v3917
    %v3919 = vand.u32 %v3918, 4294901760
    %3920 = vmatpush1.msra.mxu0 %v3919
    %3921 = vmatprep.subr.mxu0 0.0
    %v3922 = vand.u32 %v3771, 4294901760
    %v3923 = vsub.f32 %v3771, %v3922
    %v3924 = vand.u32 %v3923, 4294901760
    %v3925 = vsub.f32 %v3923, %v3924
    %v3926 = vand.u32 %v3925, 4294901760
    %3927 = vmatpush1.msra.mxu0 %v3926
    %3928 = vmatprep.subr.mxu0 0.0
    %v3929 = vand.u32 %v3770, 4294901760
    %v3930 = vsub.f32 %v3770, %v3929
    %v3931 = vand.u32 %v3930, 4294901760
    %v3932 = vsub.f32 %v3930, %v3931
    %v3933 = vand.u32 %v3932, 4294901760
    %3934 = vmatpush1.msra.mxu0 %v3933
    %3935 = vmatprep.subr.mxu0 0.0
    %3936 = vmatpush2.msra.mxu0 0.0
    %3937 = vmatprep.subr.mxu0 0.0
    %3938 = vmatpush2.msra.mxu0 0.0
    %3939 = vmatprep.subr.mxu0 0.0
    %3940 = vmatpush2.msra.mxu0 0.0
    %3941 = vmatprep.subr.mxu0 0.0
    %3942 = vmatpush2.msra.mxu0 0.0
    %3943 = vmatprep.subr.mxu0 0.0
    %3944 = vmatpush2.msra.mxu0 0.0
    %3945 = vmatprep.subr.mxu0 0.0
    %3946 = vmatpush2.msra.mxu0 0.0
    %3947 = vmatprep.subr.mxu0 0.0
    %3948 = vmatpush2.msra.mxu0 0.0
    %3949 = vmatprep.subr.mxu0 0.0
    %3950 = vmatpush2.msra.mxu0 0.0
    %3951 = vmatprep.subr.mxu0 0.0
    %3952 = vmatpush2.msra.mxu0 0.0
    %3953 = vmatprep.subr.mxu0 0.0
    %3954 = vmatpush2.msra.mxu0 0.0
    %3955 = vmatprep.subr.mxu0 0.0
    %3956 = vmatpush2.msra.mxu0 0.0
    %3957 = vmatprep.subr.mxu0 0.0
    %3958 = vmatpush2.msra.mxu0 0.0
    %3959 = vmatprep.subr.mxu0 0.0
    %3960 = vmatpush2.msra.mxu0 0.0
    %3961 = vmatprep.subr.mxu0 0.0
    %3962 = vmatpush2.msra.mxu0 0.0
    %3963 = vmatprep.subr.mxu0 0.0
    %3964 = vmatpush2.msra.mxu0 0.0
    %3965 = vmatprep.subr.mxu0 0.0
    %3966 = vmatpush2.msra.mxu0 0.0
    %3967 = vmatprep.mubr.f32.mxu0 0.0
    %v3968 = vand.u32 %v2500, 4294901760
    %3969 = vmatmul.mubr.f32.gmra.mxu0 %v3968
    %v3970 = vpop.f32.mrf.mxu0
    %v3971 = vadd.f32 %v3850, %v3970
    %v3972 = vpop.f32.mrf.mxu0
    %3973 = vmatprep.mubr.f32.mxu0 0.0
    %v3974 = vand.u32 %v2503, 4294901760
    %3975 = vmatmul.mubr.f32.gmra.mxu0 %v3974
    %v3976 = vpop.f32.mrf.mxu0
    %v3977 = vadd.f32 %v3860, %v3976
    %v3978 = vpop.f32.mrf.mxu0
    %3979 = vmatprep.mubr.f32.mxu0 0.0
    %v3980 = vand.u32 %v2506, 4294901760
    %3981 = vmatmul.mubr.f32.gmra.mxu0 %v3980
    %v3982 = vpop.f32.mrf.mxu0
    %v3983 = vadd.f32 %v3870, %v3982
    %v3984 = vpop.f32.mrf.mxu0
    %3985 = vmatprep.mubr.f32.mxu0 0.0
    %v3986 = vand.u32 %v2509, 4294901760
    %3987 = vmatmul.mubr.f32.gmra.mxu0 %v3986
    %v3988 = vpop.f32.mrf.mxu0
    %v3989 = vadd.f32 %v3880, %v3988
    %v3990 = vpop.f32.mrf.mxu0
    %3991 = vdwg.mxu0
    %3992 = vmatprep.subr.mxu0 0.0
    %3993 = vmatpush1.msra.mxu0 0.0
    %3994 = vmatprep.subr.mxu0 0.0
    %3995 = vmatpush1.msra.mxu0 0.0
    %3996 = vmatprep.subr.mxu0 0.0
    %3997 = vmatpush1.msra.mxu0 0.0
    %3998 = vmatprep.subr.mxu0 0.0
    %3999 = vmatpush1.msra.mxu0 0.0
    %4000 = vmatprep.subr.mxu0 0.0
    %4001 = vmatpush1.msra.mxu0 0.0
    %4002 = vmatprep.subr.mxu0 0.0
    %4003 = vmatpush1.msra.mxu0 0.0
    %4004 = vmatprep.subr.mxu0 0.0
    %4005 = vmatpush1.msra.mxu0 0.0
    %4006 = vmatprep.subr.mxu0 0.0
    %4007 = vmatpush1.msra.mxu0 0.0
    %4008 = vmatprep.subr.mxu0 0.0
    %4009 = vmatpush1.msra.mxu0 0.0
    %4010 = vmatprep.subr.mxu0 0.0
    %4011 = vmatpush1.msra.mxu0 0.0
    %4012 = vmatprep.subr.mxu0 0.0
    %4013 = vmatpush1.msra.mxu0 0.0
    %4014 = vmatprep.subr.mxu0 0.0
    %4015 = vmatpush1.msra.mxu0 0.0
    %4016 = vmatprep.subr.mxu0 0.0
    %v4017 = vand.u32 %v3773, 4294901760
    %v4018 = vsub.f32 %v3773, %v4017
    %4019 = vmatpush1.msra.mxu0 %v4018
    %4020 = vmatprep.subr.mxu0 0.0
    %v4021 = vand.u32 %v3772, 4294901760
    %v4022 = vsub.f32 %v3772, %v4021
    %4023 = vmatpush1.msra.mxu0 %v4022
    %4024 = vmatprep.subr.mxu0 0.0
    %v4025 = vand.u32 %v3771, 4294901760
    %v4026 = vsub.f32 %v3771, %v4025
    %4027 = vmatpush1.msra.mxu0 %v4026
    %4028 = vmatprep.subr.mxu0 0.0
    %v4029 = vand.u32 %v3770, 4294901760
    %v4030 = vsub.f32 %v3770, %v4029
    %4031 = vmatpush1.msra.mxu0 %v4030
    %4032 = vmatprep.subr.mxu0 0.0
    %4033 = vmatpush2.msra.mxu0 0.0
    %4034 = vmatprep.subr.mxu0 0.0
    %4035 = vmatpush2.msra.mxu0 0.0
    %4036 = vmatprep.subr.mxu0 0.0
    %4037 = vmatpush2.msra.mxu0 0.0
    %4038 = vmatprep.subr.mxu0 0.0
    %4039 = vmatpush2.msra.mxu0 0.0
    %4040 = vmatprep.subr.mxu0 0.0
    %4041 = vmatpush2.msra.mxu0 0.0
    %4042 = vmatprep.subr.mxu0 0.0
    %4043 = vmatpush2.msra.mxu0 0.0
    %4044 = vmatprep.subr.mxu0 0.0
    %4045 = vmatpush2.msra.mxu0 0.0
    %4046 = vmatprep.subr.mxu0 0.0
    %4047 = vmatpush2.msra.mxu0 0.0
    %4048 = vmatprep.subr.mxu0 0.0
    %4049 = vmatpush2.msra.mxu0 0.0
    %4050 = vmatprep.subr.mxu0 0.0
    %4051 = vmatpush2.msra.mxu0 0.0
    %4052 = vmatprep.subr.mxu0 0.0
    %4053 = vmatpush2.msra.mxu0 0.0
    %4054 = vmatprep.subr.mxu0 0.0
    %4055 = vmatpush2.msra.mxu0 0.0
    %4056 = vmatprep.subr.mxu0 0.0
    %4057 = vmatpush2.msra.mxu0 0.0
    %4058 = vmatprep.subr.mxu0 0.0
    %4059 = vmatpush2.msra.mxu0 0.0
    %4060 = vmatprep.subr.mxu0 0.0
    %4061 = vmatpush2.msra.mxu0 0.0
    %4062 = vmatprep.subr.mxu0 0.0
    %4063 = vmatpush2.msra.mxu0 0.0
    %4064 = vmatprep.mubr.f32.mxu0 0.0
    %v4065 = vand.u32 %v2500, 4294901760
    %v4066 = vsub.f32 %v2500, %v4065
    %4067 = vmatmul.mubr.f32.gmra.mxu0 %v4066
    %v4068 = vpop.f32.mrf.mxu0
    %v4069 = vadd.f32 %v3971, %v4068
    %v4070 = vpop.f32.mrf.mxu0
    %4071 = vmatprep.mubr.f32.mxu0 0.0
    %v4072 = vand.u32 %v2503, 4294901760
    %v4073 = vsub.f32 %v2503, %v4072
    %4074 = vmatmul.mubr.f32.gmra.mxu0 %v4073
    %v4075 = vpop.f32.mrf.mxu0
    %v4076 = vadd.f32 %v3977, %v4075
    %v4077 = vpop.f32.mrf.mxu0
    %4078 = vmatprep.mubr.f32.mxu0 0.0
    %v4079 = vand.u32 %v2506, 4294901760
    %v4080 = vsub.f32 %v2506, %v4079
    %4081 = vmatmul.mubr.f32.gmra.mxu0 %v4080
    %v4082 = vpop.f32.mrf.mxu0
    %v4083 = vadd.f32 %v3983, %v4082
    %v4084 = vpop.f32.mrf.mxu0
    %4085 = vmatprep.mubr.f32.mxu0 0.0
    %v4086 = vand.u32 %v2509, 4294901760
    %v4087 = vsub.f32 %v2509, %v4086
    %4088 = vmatmul.mubr.f32.gmra.mxu0 %v4087
    %v4089 = vpop.f32.mrf.mxu0
    %v4090 = vadd.f32 %v3989, %v4089
    %v4091 = vpop.f32.mrf.mxu0
    %4092 = vdwg.mxu0
    %4093 = vmatprep.subr.mxu0 0.0
    %4094 = vmatpush1.msra.mxu0 0.0
    %4095 = vmatprep.subr.mxu0 0.0
    %4096 = vmatpush1.msra.mxu0 0.0
    %4097 = vmatprep.subr.mxu0 0.0
    %4098 = vmatpush1.msra.mxu0 0.0
    %4099 = vmatprep.subr.mxu0 0.0
    %4100 = vmatpush1.msra.mxu0 0.0
    %4101 = vmatprep.subr.mxu0 0.0
    %4102 = vmatpush1.msra.mxu0 0.0
    %4103 = vmatprep.subr.mxu0 0.0
    %4104 = vmatpush1.msra.mxu0 0.0
    %4105 = vmatprep.subr.mxu0 0.0
    %4106 = vmatpush1.msra.mxu0 0.0
    %4107 = vmatprep.subr.mxu0 0.0
    %4108 = vmatpush1.msra.mxu0 0.0
    %4109 = vmatprep.subr.mxu0 0.0
    %4110 = vmatpush1.msra.mxu0 0.0
    %4111 = vmatprep.subr.mxu0 0.0
    %4112 = vmatpush1.msra.mxu0 0.0
    %4113 = vmatprep.subr.mxu0 0.0
    %4114 = vmatpush1.msra.mxu0 0.0
    %4115 = vmatprep.subr.mxu0 0.0
    %4116 = vmatpush1.msra.mxu0 0.0
    %4117 = vmatprep.subr.mxu0 0.0
    %v4118 = vand.u32 %v3773, 4294901760
    %4119 = vmatpush1.msra.mxu0 %v4118
    %4120 = vmatprep.subr.mxu0 0.0
    %v4121 = vand.u32 %v3772, 4294901760
    %4122 = vmatpush1.msra.mxu0 %v4121
    %4123 = vmatprep.subr.mxu0 0.0
    %v4124 = vand.u32 %v3771, 4294901760
    %4125 = vmatpush1.msra.mxu0 %v4124
    %4126 = vmatprep.subr.mxu0 0.0
    %v4127 = vand.u32 %v3770, 4294901760
    %4128 = vmatpush1.msra.mxu0 %v4127
    %4129 = vmatprep.subr.mxu0 0.0
    %4130 = vmatpush2.msra.mxu0 0.0
    %4131 = vmatprep.subr.mxu0 0.0
    %4132 = vmatpush2.msra.mxu0 0.0
    %4133 = vmatprep.subr.mxu0 0.0
    %4134 = vmatpush2.msra.mxu0 0.0
    %4135 = vmatprep.subr.mxu0 0.0
    %4136 = vmatpush2.msra.mxu0 0.0
    %4137 = vmatprep.subr.mxu0 0.0
    %4138 = vmatpush2.msra.mxu0 0.0
    %4139 = vmatprep.subr.mxu0 0.0
    %4140 = vmatpush2.msra.mxu0 0.0
    %4141 = vmatprep.subr.mxu0 0.0
    %4142 = vmatpush2.msra.mxu0 0.0
    %4143 = vmatprep.subr.mxu0 0.0
    %4144 = vmatpush2.msra.mxu0 0.0
    %4145 = vmatprep.subr.mxu0 0.0
    %4146 = vmatpush2.msra.mxu0 0.0
    %4147 = vmatprep.subr.mxu0 0.0
    %4148 = vmatpush2.msra.mxu0 0.0
    %4149 = vmatprep.subr.mxu0 0.0
    %4150 = vmatpush2.msra.mxu0 0.0
    %4151 = vmatprep.subr.mxu0 0.0
    %4152 = vmatpush2.msra.mxu0 0.0
    %4153 = vmatprep.subr.mxu0 0.0
    %4154 = vmatpush2.msra.mxu0 0.0
    %4155 = vmatprep.subr.mxu0 0.0
    %4156 = vmatpush2.msra.mxu0 0.0
    %4157 = vmatprep.subr.mxu0 0.0
    %4158 = vmatpush2.msra.mxu0 0.0
    %4159 = vmatprep.subr.mxu0 0.0
    %4160 = vmatpush2.msra.mxu0 0.0
    %4161 = vmatprep.mubr.f32.mxu0 0.0
    %v4162 = vand.u32 %v2500, 4294901760
    %v4163 = vsub.f32 %v2500, %v4162
    %v4164 = vand.u32 %v4163, 4294901760
    %4165 = vmatmul.mubr.f32.gmra.mxu0 %v4164
    %v4166 = vpop.f32.mrf.mxu0
    %v4167 = vadd.f32 %v4069, %v4166
    %v4168 = vpop.f32.mrf.mxu0
    %4169 = vmatprep.mubr.f32.mxu0 0.0
    %v4170 = vand.u32 %v2503, 4294901760
    %v4171 = vsub.f32 %v2503, %v4170
    %v4172 = vand.u32 %v4171, 4294901760
    %4173 = vmatmul.mubr.f32.gmra.mxu0 %v4172
    %v4174 = vpop.f32.mrf.mxu0
    %v4175 = vadd.f32 %v4076, %v4174
    %v4176 = vpop.f32.mrf.mxu0
    %4177 = vmatprep.mubr.f32.mxu0 0.0
    %v4178 = vand.u32 %v2506, 4294901760
    %v4179 = vsub.f32 %v2506, %v4178
    %v4180 = vand.u32 %v4179, 4294901760
    %4181 = vmatmul.mubr.f32.gmra.mxu0 %v4180
    %v4182 = vpop.f32.mrf.mxu0
    %v4183 = vadd.f32 %v4083, %v4182
    %v4184 = vpop.f32.mrf.mxu0
    %4185 = vmatprep.mubr.f32.mxu0 0.0
    %v4186 = vand.u32 %v2509, 4294901760
    %v4187 = vsub.f32 %v2509, %v4186
    %v4188 = vand.u32 %v4187, 4294901760
    %4189 = vmatmul.mubr.f32.gmra.mxu0 %v4188
    %v4190 = vpop.f32.mrf.mxu0
    %v4191 = vadd.f32 %v4090, %v4190
    %v4192 = vpop.f32.mrf.mxu0
    %4193 = vdwg.mxu0
    %4194 = vmatprep.subr.mxu0 0.0
    %4195 = vmatpush1.msra.mxu0 0.0
    %4196 = vmatprep.subr.mxu0 0.0
    %4197 = vmatpush1.msra.mxu0 0.0
    %4198 = vmatprep.subr.mxu0 0.0
    %4199 = vmatpush1.msra.mxu0 0.0
    %4200 = vmatprep.subr.mxu0 0.0
    %4201 = vmatpush1.msra.mxu0 0.0
    %4202 = vmatprep.subr.mxu0 0.0
    %4203 = vmatpush1.msra.mxu0 0.0
    %4204 = vmatprep.subr.mxu0 0.0
    %4205 = vmatpush1.msra.mxu0 0.0
    %4206 = vmatprep.subr.mxu0 0.0
    %4207 = vmatpush1.msra.mxu0 0.0
    %4208 = vmatprep.subr.mxu0 0.0
    %4209 = vmatpush1.msra.mxu0 0.0
    %4210 = vmatprep.subr.mxu0 0.0
    %4211 = vmatpush1.msra.mxu0 0.0
    %4212 = vmatprep.subr.mxu0 0.0
    %4213 = vmatpush1.msra.mxu0 0.0
    %4214 = vmatprep.subr.mxu0 0.0
    %4215 = vmatpush1.msra.mxu0 0.0
    %4216 = vmatprep.subr.mxu0 0.0
    %4217 = vmatpush1.msra.mxu0 0.0
    %4218 = vmatprep.subr.mxu0 0.0
    %v4219 = vand.u32 %v3773, 4294901760
    %v4220 = vsub.f32 %v3773, %v4219
    %v4221 = vand.u32 %v4220, 4294901760
    %4222 = vmatpush1.msra.mxu0 %v4221
    %4223 = vmatprep.subr.mxu0 0.0
    %v4224 = vand.u32 %v3772, 4294901760
    %v4225 = vsub.f32 %v3772, %v4224
    %v4226 = vand.u32 %v4225, 4294901760
    %4227 = vmatpush1.msra.mxu0 %v4226
    %4228 = vmatprep.subr.mxu0 0.0
    %v4229 = vand.u32 %v3771, 4294901760
    %v4230 = vsub.f32 %v3771, %v4229
    %v4231 = vand.u32 %v4230, 4294901760
    %4232 = vmatpush1.msra.mxu0 %v4231
    %4233 = vmatprep.subr.mxu0 0.0
    %v4234 = vand.u32 %v3770, 4294901760
    %v4235 = vsub.f32 %v3770, %v4234
    %v4236 = vand.u32 %v4235, 4294901760
    %4237 = vmatpush1.msra.mxu0 %v4236
    %4238 = vmatprep.subr.mxu0 0.0
    %4239 = vmatpush2.msra.mxu0 0.0
    %4240 = vmatprep.subr.mxu0 0.0
    %4241 = vmatpush2.msra.mxu0 0.0
    %4242 = vmatprep.subr.mxu0 0.0
    %4243 = vmatpush2.msra.mxu0 0.0
    %4244 = vmatprep.subr.mxu0 0.0
    %4245 = vmatpush2.msra.mxu0 0.0
    %4246 = vmatprep.subr.mxu0 0.0
    %4247 = vmatpush2.msra.mxu0 0.0
    %4248 = vmatprep.subr.mxu0 0.0
    %4249 = vmatpush2.msra.mxu0 0.0
    %4250 = vmatprep.subr.mxu0 0.0
    %4251 = vmatpush2.msra.mxu0 0.0
    %4252 = vmatprep.subr.mxu0 0.0
    %4253 = vmatpush2.msra.mxu0 0.0
    %4254 = vmatprep.subr.mxu0 0.0
    %4255 = vmatpush2.msra.mxu0 0.0
    %4256 = vmatprep.subr.mxu0 0.0
    %4257 = vmatpush2.msra.mxu0 0.0
    %4258 = vmatprep.subr.mxu0 0.0
    %4259 = vmatpush2.msra.mxu0 0.0
    %4260 = vmatprep.subr.mxu0 0.0
    %4261 = vmatpush2.msra.mxu0 0.0
    %4262 = vmatprep.subr.mxu0 0.0
    %4263 = vmatpush2.msra.mxu0 0.0
    %4264 = vmatprep.subr.mxu0 0.0
    %4265 = vmatpush2.msra.mxu0 0.0
    %4266 = vmatprep.subr.mxu0 0.0
    %4267 = vmatpush2.msra.mxu0 0.0
    %4268 = vmatprep.subr.mxu0 0.0
    %4269 = vmatpush2.msra.mxu0 0.0
    %4270 = vmatprep.mubr.f32.mxu0 0.0
    %v4271 = vand.u32 %v2500, 4294901760
    %4272 = vmatmul.mubr.f32.gmra.mxu0 %v4271
    %v4273 = vpop.f32.mrf.mxu0
    %v4274 = vadd.f32 %v4167, %v4273
    %v4275 = vpop.f32.mrf.mxu0
    %4276 = vmatprep.mubr.f32.mxu0 0.0
    %v4277 = vand.u32 %v2503, 4294901760
    %4278 = vmatmul.mubr.f32.gmra.mxu0 %v4277
    %v4279 = vpop.f32.mrf.mxu0
    %v4280 = vadd.f32 %v4175, %v4279
    %v4281 = vpop.f32.mrf.mxu0
    %4282 = vmatprep.mubr.f32.mxu0 0.0
    %v4283 = vand.u32 %v2506, 4294901760
    %4284 = vmatmul.mubr.f32.gmra.mxu0 %v4283
    %v4285 = vpop.f32.mrf.mxu0
    %v4286 = vadd.f32 %v4183, %v4285
    %v4287 = vpop.f32.mrf.mxu0
    %4288 = vmatprep.mubr.f32.mxu0 0.0
    %v4289 = vand.u32 %v2509, 4294901760
    %4290 = vmatmul.mubr.f32.gmra.mxu0 %v4289
    %v4291 = vpop.f32.mrf.mxu0
    %v4292 = vadd.f32 %v4191, %v4291
    %v4293 = vpop.f32.mrf.mxu0
    %4294 = vdwg.mxu0
    %4295 = vmatprep.subr.mxu0 0.0
    %4296 = vmatpush1.msra.mxu0 0.0
    %4297 = vmatprep.subr.mxu0 0.0
    %4298 = vmatpush1.msra.mxu0 0.0
    %4299 = vmatprep.subr.mxu0 0.0
    %4300 = vmatpush1.msra.mxu0 0.0
    %4301 = vmatprep.subr.mxu0 0.0
    %4302 = vmatpush1.msra.mxu0 0.0
    %4303 = vmatprep.subr.mxu0 0.0
    %4304 = vmatpush1.msra.mxu0 0.0
    %4305 = vmatprep.subr.mxu0 0.0
    %4306 = vmatpush1.msra.mxu0 0.0
    %4307 = vmatprep.subr.mxu0 0.0
    %4308 = vmatpush1.msra.mxu0 0.0
    %4309 = vmatprep.subr.mxu0 0.0
    %4310 = vmatpush1.msra.mxu0 0.0
    %4311 = vmatprep.subr.mxu0 0.0
    %4312 = vmatpush1.msra.mxu0 0.0
    %4313 = vmatprep.subr.mxu0 0.0
    %4314 = vmatpush1.msra.mxu0 0.0
    %4315 = vmatprep.subr.mxu0 0.0
    %4316 = vmatpush1.msra.mxu0 0.0
    %4317 = vmatprep.subr.mxu0 0.0
    %4318 = vmatpush1.msra.mxu0 0.0
    %4319 = vmatprep.subr.mxu0 0.0
    %v4320 = vand.u32 %v3773, 4294901760
    %4321 = vmatpush1.msra.mxu0 %v4320
    %4322 = vmatprep.subr.mxu0 0.0
    %v4323 = vand.u32 %v3772, 4294901760
    %4324 = vmatpush1.msra.mxu0 %v4323
    %4325 = vmatprep.subr.mxu0 0.0
    %v4326 = vand.u32 %v3771, 4294901760
    %4327 = vmatpush1.msra.mxu0 %v4326
    %4328 = vmatprep.subr.mxu0 0.0
    %v4329 = vand.u32 %v3770, 4294901760
    %4330 = vmatpush1.msra.mxu0 %v4329
    %4331 = vmatprep.subr.mxu0 0.0
    %4332 = vmatpush2.msra.mxu0 0.0
    %4333 = vmatprep.subr.mxu0 0.0
    %4334 = vmatpush2.msra.mxu0 0.0
    %4335 = vmatprep.subr.mxu0 0.0
    %4336 = vmatpush2.msra.mxu0 0.0
    %4337 = vmatprep.subr.mxu0 0.0
    %4338 = vmatpush2.msra.mxu0 0.0
    %4339 = vmatprep.subr.mxu0 0.0
    %4340 = vmatpush2.msra.mxu0 0.0
    %4341 = vmatprep.subr.mxu0 0.0
    %4342 = vmatpush2.msra.mxu0 0.0
    %4343 = vmatprep.subr.mxu0 0.0
    %4344 = vmatpush2.msra.mxu0 0.0
    %4345 = vmatprep.subr.mxu0 0.0
    %4346 = vmatpush2.msra.mxu0 0.0
    %4347 = vmatprep.subr.mxu0 0.0
    %4348 = vmatpush2.msra.mxu0 0.0
    %4349 = vmatprep.subr.mxu0 0.0
    %4350 = vmatpush2.msra.mxu0 0.0
    %4351 = vmatprep.subr.mxu0 0.0
    %4352 = vmatpush2.msra.mxu0 0.0
    %4353 = vmatprep.subr.mxu0 0.0
    %4354 = vmatpush2.msra.mxu0 0.0
    %4355 = vmatprep.subr.mxu0 0.0
    %4356 = vmatpush2.msra.mxu0 0.0
    %4357 = vmatprep.subr.mxu0 0.0
    %4358 = vmatpush2.msra.mxu0 0.0
    %4359 = vmatprep.subr.mxu0 0.0
    %4360 = vmatpush2.msra.mxu0 0.0
    %4361 = vmatprep.subr.mxu0 0.0
    %4362 = vmatpush2.msra.mxu0 0.0
    %4363 = vmatprep.mubr.f32.mxu0 0.0
    %v4364 = vand.u32 %v2500, 4294901760
    %4365 = vmatmul.mubr.f32.gmra.mxu0 %v4364
    %v4366 = vpop.f32.mrf.mxu0
    %v4367 = vadd.f32 %v4274, %v4366
    %v4368 = vpop.f32.mrf.mxu0
    %4369 = vmatprep.mubr.f32.mxu0 0.0
    %v4370 = vand.u32 %v2503, 4294901760
    %4371 = vmatmul.mubr.f32.gmra.mxu0 %v4370
    %v4372 = vpop.f32.mrf.mxu0
    %v4373 = vadd.f32 %v4280, %v4372
    %v4374 = vpop.f32.mrf.mxu0
    %4375 = vmatprep.mubr.f32.mxu0 0.0
    %v4376 = vand.u32 %v2506, 4294901760
    %4377 = vmatmul.mubr.f32.gmra.mxu0 %v4376
    %v4378 = vpop.f32.mrf.mxu0
    %v4379 = vadd.f32 %v4286, %v4378
    %v4380 = vpop.f32.mrf.mxu0
    %4381 = vmatprep.mubr.f32.mxu0 0.0
    %v4382 = vand.u32 %v2509, 4294901760
    %4383 = vmatmul.mubr.f32.gmra.mxu0 %v4382
    %v4384 = vpop.f32.mrf.mxu0
    %v4385 = vadd.f32 %v4292, %v4384
    %v4386 = vpop.f32.mrf.mxu0
    %4387 = vdwg.mxu0
    %4388 = vmatprep.subr.mxu0 0.0
    %4389 = vmatpush1.msra.mxu0 0.0
    %4390 = vmatprep.subr.mxu0 0.0
    %4391 = vmatpush1.msra.mxu0 0.0
    %4392 = vmatprep.subr.mxu0 0.0
    %4393 = vmatpush1.msra.mxu0 0.0
    %4394 = vmatprep.subr.mxu0 0.0
    %4395 = vmatpush1.msra.mxu0 0.0
    %4396 = vmatprep.subr.mxu0 0.0
    %4397 = vmatpush1.msra.mxu0 0.0
    %4398 = vmatprep.subr.mxu0 0.0
    %4399 = vmatpush1.msra.mxu0 0.0
    %4400 = vmatprep.subr.mxu0 0.0
    %4401 = vmatpush1.msra.mxu0 0.0
    %4402 = vmatprep.subr.mxu0 0.0
    %4403 = vmatpush1.msra.mxu0 0.0
    %4404 = vmatprep.subr.mxu0 0.0
    %4405 = vmatpush1.msra.mxu0 0.0
    %4406 = vmatprep.subr.mxu0 0.0
    %4407 = vmatpush1.msra.mxu0 0.0
    %4408 = vmatprep.subr.mxu0 0.0
    %4409 = vmatpush1.msra.mxu0 0.0
    %4410 = vmatprep.subr.mxu0 0.0
    %4411 = vmatpush1.msra.mxu0 0.0
    %4412 = vmatprep.subr.mxu0 0.0
    %v4413 = vand.u32 %v3769, 4294901760
    %4414 = vmatpush1.msra.mxu0 %v4413
    %4415 = vmatprep.subr.mxu0 0.0
    %v4416 = vand.u32 %v3768, 4294901760
    %4417 = vmatpush1.msra.mxu0 %v4416
    %4418 = vmatprep.subr.mxu0 0.0
    %v4419 = vand.u32 %v3767, 4294901760
    %4420 = vmatpush1.msra.mxu0 %v4419
    %4421 = vmatprep.subr.mxu0 0.0
    %v4422 = vand.u32 %v3766, 4294901760
    %4423 = vmatpush1.msra.mxu0 %v4422
    %4424 = vmatprep.subr.mxu0 0.0
    %4425 = vmatpush2.msra.mxu0 0.0
    %4426 = vmatprep.subr.mxu0 0.0
    %4427 = vmatpush2.msra.mxu0 0.0
    %4428 = vmatprep.subr.mxu0 0.0
    %4429 = vmatpush2.msra.mxu0 0.0
    %4430 = vmatprep.subr.mxu0 0.0
    %4431 = vmatpush2.msra.mxu0 0.0
    %4432 = vmatprep.subr.mxu0 0.0
    %4433 = vmatpush2.msra.mxu0 0.0
    %4434 = vmatprep.subr.mxu0 0.0
    %4435 = vmatpush2.msra.mxu0 0.0
    %4436 = vmatprep.subr.mxu0 0.0
    %4437 = vmatpush2.msra.mxu0 0.0
    %4438 = vmatprep.subr.mxu0 0.0
    %4439 = vmatpush2.msra.mxu0 0.0
    %4440 = vmatprep.subr.mxu0 0.0
    %4441 = vmatpush2.msra.mxu0 0.0
    %4442 = vmatprep.subr.mxu0 0.0
    %4443 = vmatpush2.msra.mxu0 0.0
    %4444 = vmatprep.subr.mxu0 0.0
    %4445 = vmatpush2.msra.mxu0 0.0
    %4446 = vmatprep.subr.mxu0 0.0
    %4447 = vmatpush2.msra.mxu0 0.0
    %4448 = vmatprep.subr.mxu0 0.0
    %4449 = vmatpush2.msra.mxu0 0.0
    %4450 = vmatprep.subr.mxu0 0.0
    %4451 = vmatpush2.msra.mxu0 0.0
    %4452 = vmatprep.subr.mxu0 0.0
    %4453 = vmatpush2.msra.mxu0 0.0
    %4454 = vmatprep.subr.mxu0 0.0
    %4455 = vmatpush2.msra.mxu0 0.0
    %4456 = vmatprep.mubr.f32.mxu0 0.0
    %v4457 = vand.u32 %v3126, 4294901760
    %v4458 = vsub.f32 %v3126, %v4457
    %v4459 = vand.u32 %v4458, 4294901760
    %v4460 = vsub.f32 %v4458, %v4459
    %v4461 = vand.u32 %v4460, 4294901760
    %4462 = vmatmul.mubr.f32.gmra.mxu0 %v4461
    %v4463 = vpop.f32.mrf.mxu0
    %v4464 = vadd.f32 %v4367, %v4463
    %v4465 = vpop.f32.mrf.mxu0
    %4466 = vmatprep.mubr.f32.mxu0 0.0
    %v4467 = vand.u32 %v3129, 4294901760
    %v4468 = vsub.f32 %v3129, %v4467
    %v4469 = vand.u32 %v4468, 4294901760
    %v4470 = vsub.f32 %v4468, %v4469
    %v4471 = vand.u32 %v4470, 4294901760
    %4472 = vmatmul.mubr.f32.gmra.mxu0 %v4471
    %v4473 = vpop.f32.mrf.mxu0
    %v4474 = vadd.f32 %v4373, %v4473
    %v4475 = vpop.f32.mrf.mxu0
    %4476 = vmatprep.mubr.f32.mxu0 0.0
    %v4477 = vand.u32 %v3132, 4294901760
    %v4478 = vsub.f32 %v3132, %v4477
    %v4479 = vand.u32 %v4478, 4294901760
    %v4480 = vsub.f32 %v4478, %v4479
    %v4481 = vand.u32 %v4480, 4294901760
    %4482 = vmatmul.mubr.f32.gmra.mxu0 %v4481
    %v4483 = vpop.f32.mrf.mxu0
    %v4484 = vadd.f32 %v4379, %v4483
    %v4485 = vpop.f32.mrf.mxu0
    %4486 = vmatprep.mubr.f32.mxu0 0.0
    %v4487 = vand.u32 %v3135, 4294901760
    %v4488 = vsub.f32 %v3135, %v4487
    %v4489 = vand.u32 %v4488, 4294901760
    %v4490 = vsub.f32 %v4488, %v4489
    %v4491 = vand.u32 %v4490, 4294901760
    %4492 = vmatmul.mubr.f32.gmra.mxu0 %v4491
    %v4493 = vpop.f32.mrf.mxu0
    %v4494 = vadd.f32 %v4385, %v4493
    %v4495 = vpop.f32.mrf.mxu0
    %4496 = vdwg.mxu0
    %4497 = vmatprep.subr.mxu0 0.0
    %4498 = vmatpush1.msra.mxu0 0.0
    %4499 = vmatprep.subr.mxu0 0.0
    %4500 = vmatpush1.msra.mxu0 0.0
    %4501 = vmatprep.subr.mxu0 0.0
    %4502 = vmatpush1.msra.mxu0 0.0
    %4503 = vmatprep.subr.mxu0 0.0
    %4504 = vmatpush1.msra.mxu0 0.0
    %4505 = vmatprep.subr.mxu0 0.0
    %4506 = vmatpush1.msra.mxu0 0.0
    %4507 = vmatprep.subr.mxu0 0.0
    %4508 = vmatpush1.msra.mxu0 0.0
    %4509 = vmatprep.subr.mxu0 0.0
    %4510 = vmatpush1.msra.mxu0 0.0
    %4511 = vmatprep.subr.mxu0 0.0
    %4512 = vmatpush1.msra.mxu0 0.0
    %4513 = vmatprep.subr.mxu0 0.0
    %4514 = vmatpush1.msra.mxu0 0.0
    %4515 = vmatprep.subr.mxu0 0.0
    %4516 = vmatpush1.msra.mxu0 0.0
    %4517 = vmatprep.subr.mxu0 0.0
    %4518 = vmatpush1.msra.mxu0 0.0
    %4519 = vmatprep.subr.mxu0 0.0
    %4520 = vmatpush1.msra.mxu0 0.0
    %4521 = vmatprep.subr.mxu0 0.0
    %v4522 = vand.u32 %v3769, 4294901760
    %v4523 = vsub.f32 %v3769, %v4522
    %v4524 = vand.u32 %v4523, 4294901760
    %v4525 = vsub.f32 %v4523, %v4524
    %v4526 = vand.u32 %v4525, 4294901760
    %4527 = vmatpush1.msra.mxu0 %v4526
    %4528 = vmatprep.subr.mxu0 0.0
    %v4529 = vand.u32 %v3768, 4294901760
    %v4530 = vsub.f32 %v3768, %v4529
    %v4531 = vand.u32 %v4530, 4294901760
    %v4532 = vsub.f32 %v4530, %v4531
    %v4533 = vand.u32 %v4532, 4294901760
    %4534 = vmatpush1.msra.mxu0 %v4533
    %4535 = vmatprep.subr.mxu0 0.0
    %v4536 = vand.u32 %v3767, 4294901760
    %v4537 = vsub.f32 %v3767, %v4536
    %v4538 = vand.u32 %v4537, 4294901760
    %v4539 = vsub.f32 %v4537, %v4538
    %v4540 = vand.u32 %v4539, 4294901760
    %4541 = vmatpush1.msra.mxu0 %v4540
    %4542 = vmatprep.subr.mxu0 0.0
    %v4543 = vand.u32 %v3766, 4294901760
    %v4544 = vsub.f32 %v3766, %v4543
    %v4545 = vand.u32 %v4544, 4294901760
    %v4546 = vsub.f32 %v4544, %v4545
    %v4547 = vand.u32 %v4546, 4294901760
    %4548 = vmatpush1.msra.mxu0 %v4547
    %4549 = vmatprep.subr.mxu0 0.0
    %4550 = vmatpush2.msra.mxu0 0.0
    %4551 = vmatprep.subr.mxu0 0.0
    %4552 = vmatpush2.msra.mxu0 0.0
    %4553 = vmatprep.subr.mxu0 0.0
    %4554 = vmatpush2.msra.mxu0 0.0
    %4555 = vmatprep.subr.mxu0 0.0
    %4556 = vmatpush2.msra.mxu0 0.0
    %4557 = vmatprep.subr.mxu0 0.0
    %4558 = vmatpush2.msra.mxu0 0.0
    %4559 = vmatprep.subr.mxu0 0.0
    %4560 = vmatpush2.msra.mxu0 0.0
    %4561 = vmatprep.subr.mxu0 0.0
    %4562 = vmatpush2.msra.mxu0 0.0
    %4563 = vmatprep.subr.mxu0 0.0
    %4564 = vmatpush2.msra.mxu0 0.0
    %4565 = vmatprep.subr.mxu0 0.0
    %4566 = vmatpush2.msra.mxu0 0.0
    %4567 = vmatprep.subr.mxu0 0.0
    %4568 = vmatpush2.msra.mxu0 0.0
    %4569 = vmatprep.subr.mxu0 0.0
    %4570 = vmatpush2.msra.mxu0 0.0
    %4571 = vmatprep.subr.mxu0 0.0
    %4572 = vmatpush2.msra.mxu0 0.0
    %4573 = vmatprep.subr.mxu0 0.0
    %4574 = vmatpush2.msra.mxu0 0.0
    %4575 = vmatprep.subr.mxu0 0.0
    %4576 = vmatpush2.msra.mxu0 0.0
    %4577 = vmatprep.subr.mxu0 0.0
    %4578 = vmatpush2.msra.mxu0 0.0
    %4579 = vmatprep.subr.mxu0 0.0
    %4580 = vmatpush2.msra.mxu0 0.0
    %4581 = vmatprep.mubr.f32.mxu0 0.0
    %v4582 = vand.u32 %v3126, 4294901760
    %4583 = vmatmul.mubr.f32.gmra.mxu0 %v4582
    %v4584 = vpop.f32.mrf.mxu0
    %v4585 = vadd.f32 %v4464, %v4584
    %v4586 = vpop.f32.mrf.mxu0
    %4587 = vmatprep.mubr.f32.mxu0 0.0
    %v4588 = vand.u32 %v3129, 4294901760
    %4589 = vmatmul.mubr.f32.gmra.mxu0 %v4588
    %v4590 = vpop.f32.mrf.mxu0
    %v4591 = vadd.f32 %v4474, %v4590
    %v4592 = vpop.f32.mrf.mxu0
    %4593 = vmatprep.mubr.f32.mxu0 0.0
    %v4594 = vand.u32 %v3132, 4294901760
    %4595 = vmatmul.mubr.f32.gmra.mxu0 %v4594
    %v4596 = vpop.f32.mrf.mxu0
    %v4597 = vadd.f32 %v4484, %v4596
    %v4598 = vpop.f32.mrf.mxu0
    %4599 = vmatprep.mubr.f32.mxu0 0.0
    %v4600 = vand.u32 %v3135, 4294901760
    %4601 = vmatmul.mubr.f32.gmra.mxu0 %v4600
    %v4602 = vpop.f32.mrf.mxu0
    %v4603 = vadd.f32 %v4494, %v4602
    %v4604 = vpop.f32.mrf.mxu0
    %4605 = vdwg.mxu0
    %4606 = vmatprep.subr.mxu0 0.0
    %4607 = vmatpush1.msra.mxu0 0.0
    %4608 = vmatprep.subr.mxu0 0.0
    %4609 = vmatpush1.msra.mxu0 0.0
    %4610 = vmatprep.subr.mxu0 0.0
    %4611 = vmatpush1.msra.mxu0 0.0
    %4612 = vmatprep.subr.mxu0 0.0
    %4613 = vmatpush1.msra.mxu0 0.0
    %4614 = vmatprep.subr.mxu0 0.0
    %4615 = vmatpush1.msra.mxu0 0.0
    %4616 = vmatprep.subr.mxu0 0.0
    %4617 = vmatpush1.msra.mxu0 0.0
    %4618 = vmatprep.subr.mxu0 0.0
    %4619 = vmatpush1.msra.mxu0 0.0
    %4620 = vmatprep.subr.mxu0 0.0
    %4621 = vmatpush1.msra.mxu0 0.0
    %4622 = vmatprep.subr.mxu0 0.0
    %4623 = vmatpush1.msra.mxu0 0.0
    %4624 = vmatprep.subr.mxu0 0.0
    %4625 = vmatpush1.msra.mxu0 0.0
    %4626 = vmatprep.subr.mxu0 0.0
    %4627 = vmatpush1.msra.mxu0 0.0
    %4628 = vmatprep.subr.mxu0 0.0
    %4629 = vmatpush1.msra.mxu0 0.0
    %4630 = vmatprep.subr.mxu0 0.0
    %v4631 = vand.u32 %v3769, 4294901760
    %v4632 = vsub.f32 %v3769, %v4631
    %4633 = vmatpush1.msra.mxu0 %v4632
    %4634 = vmatprep.subr.mxu0 0.0
    %v4635 = vand.u32 %v3768, 4294901760
    %v4636 = vsub.f32 %v3768, %v4635
    %4637 = vmatpush1.msra.mxu0 %v4636
    %4638 = vmatprep.subr.mxu0 0.0
    %v4639 = vand.u32 %v3767, 4294901760
    %v4640 = vsub.f32 %v3767, %v4639
    %4641 = vmatpush1.msra.mxu0 %v4640
    %4642 = vmatprep.subr.mxu0 0.0
    %v4643 = vand.u32 %v3766, 4294901760
    %v4644 = vsub.f32 %v3766, %v4643
    %4645 = vmatpush1.msra.mxu0 %v4644
    %4646 = vmatprep.subr.mxu0 0.0
    %4647 = vmatpush2.msra.mxu0 0.0
    %4648 = vmatprep.subr.mxu0 0.0
    %4649 = vmatpush2.msra.mxu0 0.0
    %4650 = vmatprep.subr.mxu0 0.0
    %4651 = vmatpush2.msra.mxu0 0.0
    %4652 = vmatprep.subr.mxu0 0.0
    %4653 = vmatpush2.msra.mxu0 0.0
    %4654 = vmatprep.subr.mxu0 0.0
    %4655 = vmatpush2.msra.mxu0 0.0
    %4656 = vmatprep.subr.mxu0 0.0
    %4657 = vmatpush2.msra.mxu0 0.0
    %4658 = vmatprep.subr.mxu0 0.0
    %4659 = vmatpush2.msra.mxu0 0.0
    %4660 = vmatprep.subr.mxu0 0.0
    %4661 = vmatpush2.msra.mxu0 0.0
    %4662 = vmatprep.subr.mxu0 0.0
    %4663 = vmatpush2.msra.mxu0 0.0
    %4664 = vmatprep.subr.mxu0 0.0
    %4665 = vmatpush2.msra.mxu0 0.0
    %4666 = vmatprep.subr.mxu0 0.0
    %4667 = vmatpush2.msra.mxu0 0.0
    %4668 = vmatprep.subr.mxu0 0.0
    %4669 = vmatpush2.msra.mxu0 0.0
    %4670 = vmatprep.subr.mxu0 0.0
    %4671 = vmatpush2.msra.mxu0 0.0
    %4672 = vmatprep.subr.mxu0 0.0
    %4673 = vmatpush2.msra.mxu0 0.0
    %4674 = vmatprep.subr.mxu0 0.0
    %4675 = vmatpush2.msra.mxu0 0.0
    %4676 = vmatprep.subr.mxu0 0.0
    %4677 = vmatpush2.msra.mxu0 0.0
    %4678 = vmatprep.mubr.f32.mxu0 0.0
    %v4679 = vand.u32 %v3126, 4294901760
    %v4680 = vsub.f32 %v3126, %v4679
    %4681 = vmatmul.mubr.f32.gmra.mxu0 %v4680
    %v4682 = vpop.f32.mrf.mxu0
    %v4683 = vadd.f32 %v4585, %v4682
    %v4684 = vpop.f32.mrf.mxu0
    %4685 = vmatprep.mubr.f32.mxu0 0.0
    %v4686 = vand.u32 %v3129, 4294901760
    %v4687 = vsub.f32 %v3129, %v4686
    %4688 = vmatmul.mubr.f32.gmra.mxu0 %v4687
    %v4689 = vpop.f32.mrf.mxu0
    %v4690 = vadd.f32 %v4591, %v4689
    %v4691 = vpop.f32.mrf.mxu0
    %4692 = vmatprep.mubr.f32.mxu0 0.0
    %v4693 = vand.u32 %v3132, 4294901760
    %v4694 = vsub.f32 %v3132, %v4693
    %4695 = vmatmul.mubr.f32.gmra.mxu0 %v4694
    %v4696 = vpop.f32.mrf.mxu0
    %v4697 = vadd.f32 %v4597, %v4696
    %v4698 = vpop.f32.mrf.mxu0
    %4699 = vmatprep.mubr.f32.mxu0 0.0
    %v4700 = vand.u32 %v3135, 4294901760
    %v4701 = vsub.f32 %v3135, %v4700
    %4702 = vmatmul.mubr.f32.gmra.mxu0 %v4701
    %v4703 = vpop.f32.mrf.mxu0
    %v4704 = vadd.f32 %v4603, %v4703
    %v4705 = vpop.f32.mrf.mxu0
    %4706 = vdwg.mxu0
    %4707 = vmatprep.subr.mxu0 0.0
    %4708 = vmatpush1.msra.mxu0 0.0
    %4709 = vmatprep.subr.mxu0 0.0
    %4710 = vmatpush1.msra.mxu0 0.0
    %4711 = vmatprep.subr.mxu0 0.0
    %4712 = vmatpush1.msra.mxu0 0.0
    %4713 = vmatprep.subr.mxu0 0.0
    %4714 = vmatpush1.msra.mxu0 0.0
    %4715 = vmatprep.subr.mxu0 0.0
    %4716 = vmatpush1.msra.mxu0 0.0
    %4717 = vmatprep.subr.mxu0 0.0
    %4718 = vmatpush1.msra.mxu0 0.0
    %4719 = vmatprep.subr.mxu0 0.0
    %4720 = vmatpush1.msra.mxu0 0.0
    %4721 = vmatprep.subr.mxu0 0.0
    %4722 = vmatpush1.msra.mxu0 0.0
    %4723 = vmatprep.subr.mxu0 0.0
    %4724 = vmatpush1.msra.mxu0 0.0
    %4725 = vmatprep.subr.mxu0 0.0
    %4726 = vmatpush1.msra.mxu0 0.0
    %4727 = vmatprep.subr.mxu0 0.0
    %4728 = vmatpush1.msra.mxu0 0.0
    %4729 = vmatprep.subr.mxu0 0.0
    %4730 = vmatpush1.msra.mxu0 0.0
    %4731 = vmatprep.subr.mxu0 0.0
    %v4732 = vand.u32 %v3769, 4294901760
    %4733 = vmatpush1.msra.mxu0 %v4732
    %4734 = vmatprep.subr.mxu0 0.0
    %v4735 = vand.u32 %v3768, 4294901760
    %4736 = vmatpush1.msra.mxu0 %v4735
    %4737 = vmatprep.subr.mxu0 0.0
    %v4738 = vand.u32 %v3767, 4294901760
    %4739 = vmatpush1.msra.mxu0 %v4738
    %4740 = vmatprep.subr.mxu0 0.0
    %v4741 = vand.u32 %v3766, 4294901760
    %4742 = vmatpush1.msra.mxu0 %v4741
    %4743 = vmatprep.subr.mxu0 0.0
    %4744 = vmatpush2.msra.mxu0 0.0
    %4745 = vmatprep.subr.mxu0 0.0
    %4746 = vmatpush2.msra.mxu0 0.0
    %4747 = vmatprep.subr.mxu0 0.0
    %4748 = vmatpush2.msra.mxu0 0.0
    %4749 = vmatprep.subr.mxu0 0.0
    %4750 = vmatpush2.msra.mxu0 0.0
    %4751 = vmatprep.subr.mxu0 0.0
    %4752 = vmatpush2.msra.mxu0 0.0
    %4753 = vmatprep.subr.mxu0 0.0
    %4754 = vmatpush2.msra.mxu0 0.0
    %4755 = vmatprep.subr.mxu0 0.0
    %4756 = vmatpush2.msra.mxu0 0.0
    %4757 = vmatprep.subr.mxu0 0.0
    %4758 = vmatpush2.msra.mxu0 0.0
    %4759 = vmatprep.subr.mxu0 0.0
    %4760 = vmatpush2.msra.mxu0 0.0
    %4761 = vmatprep.subr.mxu0 0.0
    %4762 = vmatpush2.msra.mxu0 0.0
    %4763 = vmatprep.subr.mxu0 0.0
    %4764 = vmatpush2.msra.mxu0 0.0
    %4765 = vmatprep.subr.mxu0 0.0
    %4766 = vmatpush2.msra.mxu0 0.0
    %4767 = vmatprep.subr.mxu0 0.0
    %4768 = vmatpush2.msra.mxu0 0.0
    %4769 = vmatprep.subr.mxu0 0.0
    %4770 = vmatpush2.msra.mxu0 0.0
    %4771 = vmatprep.subr.mxu0 0.0
    %4772 = vmatpush2.msra.mxu0 0.0
    %4773 = vmatprep.subr.mxu0 0.0
    %4774 = vmatpush2.msra.mxu0 0.0
    %4775 = vmatprep.mubr.f32.mxu0 0.0
    %v4776 = vand.u32 %v3126, 4294901760
    %v4777 = vsub.f32 %v3126, %v4776
    %v4778 = vand.u32 %v4777, 4294901760
    %4779 = vmatmul.mubr.f32.gmra.mxu0 %v4778
    %v4780 = vpop.f32.mrf.mxu0
    %v4781 = vadd.f32 %v4683, %v4780
    %v4782 = vpop.f32.mrf.mxu0
    %4783 = vmatprep.mubr.f32.mxu0 0.0
    %v4784 = vand.u32 %v3129, 4294901760
    %v4785 = vsub.f32 %v3129, %v4784
    %v4786 = vand.u32 %v4785, 4294901760
    %4787 = vmatmul.mubr.f32.gmra.mxu0 %v4786
    %v4788 = vpop.f32.mrf.mxu0
    %v4789 = vadd.f32 %v4690, %v4788
    %v4790 = vpop.f32.mrf.mxu0
    %4791 = vmatprep.mubr.f32.mxu0 0.0
    %v4792 = vand.u32 %v3132, 4294901760
    %v4793 = vsub.f32 %v3132, %v4792
    %v4794 = vand.u32 %v4793, 4294901760
    %4795 = vmatmul.mubr.f32.gmra.mxu0 %v4794
    %v4796 = vpop.f32.mrf.mxu0
    %v4797 = vadd.f32 %v4697, %v4796
    %v4798 = vpop.f32.mrf.mxu0
    %4799 = vmatprep.mubr.f32.mxu0 0.0
    %v4800 = vand.u32 %v3135, 4294901760
    %v4801 = vsub.f32 %v3135, %v4800
    %v4802 = vand.u32 %v4801, 4294901760
    %4803 = vmatmul.mubr.f32.gmra.mxu0 %v4802
    %v4804 = vpop.f32.mrf.mxu0
    %v4805 = vadd.f32 %v4704, %v4804
    %v4806 = vpop.f32.mrf.mxu0
    %4807 = vdwg.mxu0
    %4808 = vmatprep.subr.mxu0 0.0
    %4809 = vmatpush1.msra.mxu0 0.0
    %4810 = vmatprep.subr.mxu0 0.0
    %4811 = vmatpush1.msra.mxu0 0.0
    %4812 = vmatprep.subr.mxu0 0.0
    %4813 = vmatpush1.msra.mxu0 0.0
    %4814 = vmatprep.subr.mxu0 0.0
    %4815 = vmatpush1.msra.mxu0 0.0
    %4816 = vmatprep.subr.mxu0 0.0
    %4817 = vmatpush1.msra.mxu0 0.0
    %4818 = vmatprep.subr.mxu0 0.0
    %4819 = vmatpush1.msra.mxu0 0.0
    %4820 = vmatprep.subr.mxu0 0.0
    %4821 = vmatpush1.msra.mxu0 0.0
    %4822 = vmatprep.subr.mxu0 0.0
    %4823 = vmatpush1.msra.mxu0 0.0
    %4824 = vmatprep.subr.mxu0 0.0
    %4825 = vmatpush1.msra.mxu0 0.0
    %4826 = vmatprep.subr.mxu0 0.0
    %4827 = vmatpush1.msra.mxu0 0.0
    %4828 = vmatprep.subr.mxu0 0.0
    %4829 = vmatpush1.msra.mxu0 0.0
    %4830 = vmatprep.subr.mxu0 0.0
    %4831 = vmatpush1.msra.mxu0 0.0
    %4832 = vmatprep.subr.mxu0 0.0
    %v4833 = vand.u32 %v3769, 4294901760
    %v4834 = vsub.f32 %v3769, %v4833
    %v4835 = vand.u32 %v4834, 4294901760
    %4836 = vmatpush1.msra.mxu0 %v4835
    %4837 = vmatprep.subr.mxu0 0.0
    %v4838 = vand.u32 %v3768, 4294901760
    %v4839 = vsub.f32 %v3768, %v4838
    %v4840 = vand.u32 %v4839, 4294901760
    %4841 = vmatpush1.msra.mxu0 %v4840
    %4842 = vmatprep.subr.mxu0 0.0
    %v4843 = vand.u32 %v3767, 4294901760
    %v4844 = vsub.f32 %v3767, %v4843
    %v4845 = vand.u32 %v4844, 4294901760
    %4846 = vmatpush1.msra.mxu0 %v4845
    %4847 = vmatprep.subr.mxu0 0.0
    %v4848 = vand.u32 %v3766, 4294901760
    %v4849 = vsub.f32 %v3766, %v4848
    %v4850 = vand.u32 %v4849, 4294901760
    %4851 = vmatpush1.msra.mxu0 %v4850
    %4852 = vmatprep.subr.mxu0 0.0
    %4853 = vmatpush2.msra.mxu0 0.0
    %4854 = vmatprep.subr.mxu0 0.0
    %4855 = vmatpush2.msra.mxu0 0.0
    %4856 = vmatprep.subr.mxu0 0.0
    %4857 = vmatpush2.msra.mxu0 0.0
    %4858 = vmatprep.subr.mxu0 0.0
    %4859 = vmatpush2.msra.mxu0 0.0
    %4860 = vmatprep.subr.mxu0 0.0
    %4861 = vmatpush2.msra.mxu0 0.0
    %4862 = vmatprep.subr.mxu0 0.0
    %4863 = vmatpush2.msra.mxu0 0.0
    %4864 = vmatprep.subr.mxu0 0.0
    %4865 = vmatpush2.msra.mxu0 0.0
    %4866 = vmatprep.subr.mxu0 0.0
    %4867 = vmatpush2.msra.mxu0 0.0
    %4868 = vmatprep.subr.mxu0 0.0
    %4869 = vmatpush2.msra.mxu0 0.0
    %4870 = vmatprep.subr.mxu0 0.0
    %4871 = vmatpush2.msra.mxu0 0.0
    %4872 = vmatprep.subr.mxu0 0.0
    %4873 = vmatpush2.msra.mxu0 0.0
    %4874 = vmatprep.subr.mxu0 0.0
    %4875 = vmatpush2.msra.mxu0 0.0
    %4876 = vmatprep.subr.mxu0 0.0
    %4877 = vmatpush2.msra.mxu0 0.0
    %4878 = vmatprep.subr.mxu0 0.0
    %4879 = vmatpush2.msra.mxu0 0.0
    %4880 = vmatprep.subr.mxu0 0.0
    %4881 = vmatpush2.msra.mxu0 0.0
    %4882 = vmatprep.subr.mxu0 0.0
    %4883 = vmatpush2.msra.mxu0 0.0
    %4884 = vmatprep.mubr.f32.mxu0 0.0
    %v4885 = vand.u32 %v3126, 4294901760
    %4886 = vmatmul.mubr.f32.gmra.mxu0 %v4885
    %v4887 = vpop.f32.mrf.mxu0
    %v4888 = vadd.f32 %v4781, %v4887
    %v4889 = vpop.f32.mrf.mxu0
    %4890 = vmatprep.mubr.f32.mxu0 0.0
    %v4891 = vand.u32 %v3129, 4294901760
    %4892 = vmatmul.mubr.f32.gmra.mxu0 %v4891
    %v4893 = vpop.f32.mrf.mxu0
    %v4894 = vadd.f32 %v4789, %v4893
    %v4895 = vpop.f32.mrf.mxu0
    %4896 = vmatprep.mubr.f32.mxu0 0.0
    %v4897 = vand.u32 %v3132, 4294901760
    %4898 = vmatmul.mubr.f32.gmra.mxu0 %v4897
    %v4899 = vpop.f32.mrf.mxu0
    %v4900 = vadd.f32 %v4797, %v4899
    %v4901 = vpop.f32.mrf.mxu0
    %4902 = vmatprep.mubr.f32.mxu0 0.0
    %v4903 = vand.u32 %v3135, 4294901760
    %4904 = vmatmul.mubr.f32.gmra.mxu0 %v4903
    %v4905 = vpop.f32.mrf.mxu0
    %v4906 = vadd.f32 %v4805, %v4905
    %v4907 = vpop.f32.mrf.mxu0
    %4908 = vdwg.mxu0
    %4909 = vmatprep.subr.mxu0 0.0
    %4910 = vmatpush1.msra.mxu0 0.0
    %4911 = vmatprep.subr.mxu0 0.0
    %4912 = vmatpush1.msra.mxu0 0.0
    %4913 = vmatprep.subr.mxu0 0.0
    %4914 = vmatpush1.msra.mxu0 0.0
    %4915 = vmatprep.subr.mxu0 0.0
    %4916 = vmatpush1.msra.mxu0 0.0
    %4917 = vmatprep.subr.mxu0 0.0
    %4918 = vmatpush1.msra.mxu0 0.0
    %4919 = vmatprep.subr.mxu0 0.0
    %4920 = vmatpush1.msra.mxu0 0.0
    %4921 = vmatprep.subr.mxu0 0.0
    %4922 = vmatpush1.msra.mxu0 0.0
    %4923 = vmatprep.subr.mxu0 0.0
    %4924 = vmatpush1.msra.mxu0 0.0
    %4925 = vmatprep.subr.mxu0 0.0
    %4926 = vmatpush1.msra.mxu0 0.0
    %4927 = vmatprep.subr.mxu0 0.0
    %4928 = vmatpush1.msra.mxu0 0.0
    %4929 = vmatprep.subr.mxu0 0.0
    %4930 = vmatpush1.msra.mxu0 0.0
    %4931 = vmatprep.subr.mxu0 0.0
    %4932 = vmatpush1.msra.mxu0 0.0
    %4933 = vmatprep.subr.mxu0 0.0
    %v4934 = vand.u32 %v3769, 4294901760
    %4935 = vmatpush1.msra.mxu0 %v4934
    %4936 = vmatprep.subr.mxu0 0.0
    %v4937 = vand.u32 %v3768, 4294901760
    %4938 = vmatpush1.msra.mxu0 %v4937
    %4939 = vmatprep.subr.mxu0 0.0
    %v4940 = vand.u32 %v3767, 4294901760
    %4941 = vmatpush1.msra.mxu0 %v4940
    %4942 = vmatprep.subr.mxu0 0.0
    %v4943 = vand.u32 %v3766, 4294901760
    %4944 = vmatpush1.msra.mxu0 %v4943
    %4945 = vmatprep.subr.mxu0 0.0
    %4946 = vmatpush2.msra.mxu0 0.0
    %4947 = vmatprep.subr.mxu0 0.0
    %4948 = vmatpush2.msra.mxu0 0.0
    %4949 = vmatprep.subr.mxu0 0.0
    %4950 = vmatpush2.msra.mxu0 0.0
    %4951 = vmatprep.subr.mxu0 0.0
    %4952 = vmatpush2.msra.mxu0 0.0
    %4953 = vmatprep.subr.mxu0 0.0
    %4954 = vmatpush2.msra.mxu0 0.0
    %4955 = vmatprep.subr.mxu0 0.0
    %4956 = vmatpush2.msra.mxu0 0.0
    %4957 = vmatprep.subr.mxu0 0.0
    %4958 = vmatpush2.msra.mxu0 0.0
    %4959 = vmatprep.subr.mxu0 0.0
    %4960 = vmatpush2.msra.mxu0 0.0
    %4961 = vmatprep.subr.mxu0 0.0
    %4962 = vmatpush2.msra.mxu0 0.0
    %4963 = vmatprep.subr.mxu0 0.0
    %4964 = vmatpush2.msra.mxu0 0.0
    %4965 = vmatprep.subr.mxu0 0.0
    %4966 = vmatpush2.msra.mxu0 0.0
    %4967 = vmatprep.subr.mxu0 0.0
    %4968 = vmatpush2.msra.mxu0 0.0
    %4969 = vmatprep.subr.mxu0 0.0
    %4970 = vmatpush2.msra.mxu0 0.0
    %4971 = vmatprep.subr.mxu0 0.0
    %4972 = vmatpush2.msra.mxu0 0.0
    %4973 = vmatprep.subr.mxu0 0.0
    %4974 = vmatpush2.msra.mxu0 0.0
    %4975 = vmatprep.subr.mxu0 0.0
    %4976 = vmatpush2.msra.mxu0 0.0
    %4977 = vmatprep.mubr.f32.mxu0 0.0
    %v4978 = vand.u32 %v3126, 4294901760
    %4979 = vmatmul.mubr.f32.gmra.mxu0 %v4978
    %v4980 = vpop.f32.mrf.mxu0
    %v4981 = vadd.f32 %v4888, %v4980
    %v4982 = vpop.f32.mrf.mxu0
    %4983 = vmatprep.mubr.f32.mxu0 0.0
    %v4984 = vand.u32 %v3129, 4294901760
    %4985 = vmatmul.mubr.f32.gmra.mxu0 %v4984
    %v4986 = vpop.f32.mrf.mxu0
    %v4987 = vadd.f32 %v4894, %v4986
    %v4988 = vpop.f32.mrf.mxu0
    %4989 = vmatprep.mubr.f32.mxu0 0.0
    %v4990 = vand.u32 %v3132, 4294901760
    %4991 = vmatmul.mubr.f32.gmra.mxu0 %v4990
    %v4992 = vpop.f32.mrf.mxu0
    %v4993 = vadd.f32 %v4900, %v4992
    %v4994 = vpop.f32.mrf.mxu0
    %4995 = vmatprep.mubr.f32.mxu0 0.0
    %v4996 = vand.u32 %v3135, 4294901760
    %4997 = vmatmul.mubr.f32.gmra.mxu0 %v4996
    %v4998 = vpop.f32.mrf.mxu0
    %v4999 = vadd.f32 %v4906, %v4998
    %v5000 = vpop.f32.mrf.mxu0
    %5001 = vdwg.mxu0
    %5002 = vst.msk [vmem:[#allocation14] sm:$0xff] %vm2498, %v4981
    %5003 = vst.msk [vmem:[#allocation14 + $0x8] sm:$0xff] %vm2498, %v4987
    %5004 = vst.msk [vmem:[#allocation14 + $0x10] sm:$0xff] %vm2498, %v4993
    %5005 = vst.msk [vmem:[#allocation14 + $0x18] sm:$0xff] %vm2498, %v4999
    %v5006 = vsel %vm158, %v132, 0
    %5008 = vmatprep.subr.mxu0 0.0
    %5009 = vmatpush1.msra.mxu0 0.0
    %5010 = vmatprep.subr.mxu0 0.0
    %5011 = vmatpush1.msra.mxu0 0.0
    %5012 = vmatprep.subr.mxu0 0.0
    %5013 = vmatpush1.msra.mxu0 0.0
    %5014 = vmatprep.subr.mxu0 0.0
    %5015 = vmatpush1.msra.mxu0 0.0
    %5016 = vmatprep.subr.mxu0 0.0
    %5017 = vmatpush1.msra.mxu0 0.0
    %5018 = vmatprep.subr.mxu0 0.0
    %5019 = vmatpush1.msra.mxu0 0.0
    %5020 = vmatprep.subr.mxu0 0.0
    %5021 = vmatpush1.msra.mxu0 0.0
    %5022 = vmatprep.subr.mxu0 0.0
    %5023 = vmatpush1.msra.mxu0 0.0
    %5024 = vmatprep.subr.mxu0 0.0
    %5025 = vmatpush1.msra.mxu0 0.0
    %5026 = vmatprep.subr.mxu0 0.0
    %5027 = vmatpush1.msra.mxu0 0.0
    %5028 = vmatprep.subr.mxu0 0.0
    %5029 = vmatpush1.msra.mxu0 0.0
    %5030 = vmatprep.subr.mxu0 0.0
    %5031 = vmatpush1.msra.mxu0 0.0
    %5032 = vmatprep.subr.mxu0 0.0
    %5033 = vmatpush1.msra.mxu0 0.0
    %5034 = vmatprep.subr.mxu0 0.0
    %5035 = vmatpush1.msra.mxu0 0.0
    %5036 = vmatprep.subr.mxu0 0.0
    %5037 = vmatpush1.msra.mxu0 0.0
    %5038 = vmatprep.subr.mxu0 0.0
    %v5039 = vand.u32 %v5006, 4294901760
    %5040 = vmatpush1.msra.mxu0 %v5039
    %5041 = vmatprep.subr.mxu0 0.0
    %5042 = vmatpush2.msra.mxu0 0.0
    %5043 = vmatprep.subr.mxu0 0.0
    %5044 = vmatpush2.msra.mxu0 0.0
    %5045 = vmatprep.subr.mxu0 0.0
    %5046 = vmatpush2.msra.mxu0 0.0
    %5047 = vmatprep.subr.mxu0 0.0
    %5048 = vmatpush2.msra.mxu0 0.0
    %5049 = vmatprep.subr.mxu0 0.0
    %5050 = vmatpush2.msra.mxu0 0.0
    %5051 = vmatprep.subr.mxu0 0.0
    %5052 = vmatpush2.msra.mxu0 0.0
    %5053 = vmatprep.subr.mxu0 0.0
    %5054 = vmatpush2.msra.mxu0 0.0
    %5055 = vmatprep.subr.mxu0 0.0
    %5056 = vmatpush2.msra.mxu0 0.0
    %5057 = vmatprep.subr.mxu0 0.0
    %5058 = vmatpush2.msra.mxu0 0.0
    %5059 = vmatprep.subr.mxu0 0.0
    %5060 = vmatpush2.msra.mxu0 0.0
    %5061 = vmatprep.subr.mxu0 0.0
    %5062 = vmatpush2.msra.mxu0 0.0
    %5063 = vmatprep.subr.mxu0 0.0
    %5064 = vmatpush2.msra.mxu0 0.0
    %5065 = vmatprep.subr.mxu0 0.0
    %5066 = vmatpush2.msra.mxu0 0.0
    %5067 = vmatprep.subr.mxu0 0.0
    %5068 = vmatpush2.msra.mxu0 0.0
    %5069 = vmatprep.subr.mxu0 0.0
    %5070 = vmatpush2.msra.mxu0 0.0
    %5071 = vmatprep.subr.mxu0 0.0
    %5072 = vmatpush2.msra.mxu0 0.0
    %5073 = vmatprep.mubr.f32.mxu0 0.0
    %v5074 = vand.u32 %v1901, 4294901760
    %v5075 = vsub.f32 %v1901, %v5074
    %v5076 = vand.u32 %v5075, 4294901760
    %v5077 = vsub.f32 %v5075, %v5076
    %v5078 = vand.u32 %v5077, 4294901760
    %5079 = vmatmul.mubr.f32.gmra.mxu0 %v5078
    %v5080 = vpop.f32.mrf.mxu0
    %v5081 = vadd.f32 0.0, %v5080
    %v5082 = vpop.f32.mrf.mxu0
    %5083 = vmatprep.mubr.f32.mxu0 0.0
    %v5084 = vand.u32 %v1904, 4294901760
    %v5085 = vsub.f32 %v1904, %v5084
    %v5086 = vand.u32 %v5085, 4294901760
    %v5087 = vsub.f32 %v5085, %v5086
    %v5088 = vand.u32 %v5087, 4294901760
    %5089 = vmatmul.mubr.f32.gmra.mxu0 %v5088
    %v5090 = vpop.f32.mrf.mxu0
    %v5091 = vadd.f32 0.0, %v5090
    %v5092 = vpop.f32.mrf.mxu0
    %5093 = vmatprep.mubr.f32.mxu0 0.0
    %v5094 = vand.u32 %v1907, 4294901760
    %v5095 = vsub.f32 %v1907, %v5094
    %v5096 = vand.u32 %v5095, 4294901760
    %v5097 = vsub.f32 %v5095, %v5096
    %v5098 = vand.u32 %v5097, 4294901760
    %5099 = vmatmul.mubr.f32.gmra.mxu0 %v5098
    %v5100 = vpop.f32.mrf.mxu0
    %v5101 = vadd.f32 0.0, %v5100
    %v5102 = vpop.f32.mrf.mxu0
    %5103 = vmatprep.mubr.f32.mxu0 0.0
    %v5104 = vand.u32 %v1910, 4294901760
    %v5105 = vsub.f32 %v1910, %v5104
    %v5106 = vand.u32 %v5105, 4294901760
    %v5107 = vsub.f32 %v5105, %v5106
    %v5108 = vand.u32 %v5107, 4294901760
    %5109 = vmatmul.mubr.f32.gmra.mxu0 %v5108
    %v5110 = vpop.f32.mrf.mxu0
    %v5111 = vadd.f32 0.0, %v5110
    %v5112 = vpop.f32.mrf.mxu0
    %5113 = vdwg.mxu0
    %5114 = vmatprep.subr.mxu0 0.0
    %5115 = vmatpush1.msra.mxu0 0.0
    %5116 = vmatprep.subr.mxu0 0.0
    %5117 = vmatpush1.msra.mxu0 0.0
    %5118 = vmatprep.subr.mxu0 0.0
    %5119 = vmatpush1.msra.mxu0 0.0
    %5120 = vmatprep.subr.mxu0 0.0
    %5121 = vmatpush1.msra.mxu0 0.0
    %5122 = vmatprep.subr.mxu0 0.0
    %5123 = vmatpush1.msra.mxu0 0.0
    %5124 = vmatprep.subr.mxu0 0.0
    %5125 = vmatpush1.msra.mxu0 0.0
    %5126 = vmatprep.subr.mxu0 0.0
    %5127 = vmatpush1.msra.mxu0 0.0
    %5128 = vmatprep.subr.mxu0 0.0
    %5129 = vmatpush1.msra.mxu0 0.0
    %5130 = vmatprep.subr.mxu0 0.0
    %5131 = vmatpush1.msra.mxu0 0.0
    %5132 = vmatprep.subr.mxu0 0.0
    %5133 = vmatpush1.msra.mxu0 0.0
    %5134 = vmatprep.subr.mxu0 0.0
    %5135 = vmatpush1.msra.mxu0 0.0
    %5136 = vmatprep.subr.mxu0 0.0
    %5137 = vmatpush1.msra.mxu0 0.0
    %5138 = vmatprep.subr.mxu0 0.0
    %5139 = vmatpush1.msra.mxu0 0.0
    %5140 = vmatprep.subr.mxu0 0.0
    %5141 = vmatpush1.msra.mxu0 0.0
    %5142 = vmatprep.subr.mxu0 0.0
    %5143 = vmatpush1.msra.mxu0 0.0
    %5144 = vmatprep.subr.mxu0 0.0
    %v5145 = vand.u32 %v5006, 4294901760
    %v5146 = vsub.f32 %v5006, %v5145
    %v5147 = vand.u32 %v5146, 4294901760
    %v5148 = vsub.f32 %v5146, %v5147
    %v5149 = vand.u32 %v5148, 4294901760
    %5150 = vmatpush1.msra.mxu0 %v5149
    %5151 = vmatprep.subr.mxu0 0.0
    %5152 = vmatpush2.msra.mxu0 0.0
    %5153 = vmatprep.subr.mxu0 0.0
    %5154 = vmatpush2.msra.mxu0 0.0
    %5155 = vmatprep.subr.mxu0 0.0
    %5156 = vmatpush2.msra.mxu0 0.0
    %5157 = vmatprep.subr.mxu0 0.0
    %5158 = vmatpush2.msra.mxu0 0.0
    %5159 = vmatprep.subr.mxu0 0.0
    %5160 = vmatpush2.msra.mxu0 0.0
    %5161 = vmatprep.subr.mxu0 0.0
    %5162 = vmatpush2.msra.mxu0 0.0
    %5163 = vmatprep.subr.mxu0 0.0
    %5164 = vmatpush2.msra.mxu0 0.0
    %5165 = vmatprep.subr.mxu0 0.0
    %5166 = vmatpush2.msra.mxu0 0.0
    %5167 = vmatprep.subr.mxu0 0.0
    %5168 = vmatpush2.msra.mxu0 0.0
    %5169 = vmatprep.subr.mxu0 0.0
    %5170 = vmatpush2.msra.mxu0 0.0
    %5171 = vmatprep.subr.mxu0 0.0
    %5172 = vmatpush2.msra.mxu0 0.0
    %5173 = vmatprep.subr.mxu0 0.0
    %5174 = vmatpush2.msra.mxu0 0.0
    %5175 = vmatprep.subr.mxu0 0.0
    %5176 = vmatpush2.msra.mxu0 0.0
    %5177 = vmatprep.subr.mxu0 0.0
    %5178 = vmatpush2.msra.mxu0 0.0
    %5179 = vmatprep.subr.mxu0 0.0
    %5180 = vmatpush2.msra.mxu0 0.0
    %5181 = vmatprep.subr.mxu0 0.0
    %5182 = vmatpush2.msra.mxu0 0.0
    %5183 = vmatprep.mubr.f32.mxu0 0.0
    %v5184 = vand.u32 %v1901, 4294901760
    %5185 = vmatmul.mubr.f32.gmra.mxu0 %v5184
    %v5186 = vpop.f32.mrf.mxu0
    %v5187 = vadd.f32 %v5081, %v5186
    %v5188 = vpop.f32.mrf.mxu0
    %5189 = vmatprep.mubr.f32.mxu0 0.0
    %v5190 = vand.u32 %v1904, 4294901760
    %5191 = vmatmul.mubr.f32.gmra.mxu0 %v5190
    %v5192 = vpop.f32.mrf.mxu0
    %v5193 = vadd.f32 %v5091, %v5192
    %v5194 = vpop.f32.mrf.mxu0
    %5195 = vmatprep.mubr.f32.mxu0 0.0
    %v5196 = vand.u32 %v1907, 4294901760
    %5197 = vmatmul.mubr.f32.gmra.mxu0 %v5196
    %v5198 = vpop.f32.mrf.mxu0
    %v5199 = vadd.f32 %v5101, %v5198
    %v5200 = vpop.f32.mrf.mxu0
    %5201 = vmatprep.mubr.f32.mxu0 0.0
    %v5202 = vand.u32 %v1910, 4294901760
    %5203 = vmatmul.mubr.f32.gmra.mxu0 %v5202
    %v5204 = vpop.f32.mrf.mxu0
    %v5205 = vadd.f32 %v5111, %v5204
    %v5206 = vpop.f32.mrf.mxu0
    %5207 = vdwg.mxu0
    %5208 = vmatprep.subr.mxu0 0.0
    %5209 = vmatpush1.msra.mxu0 0.0
    %5210 = vmatprep.subr.mxu0 0.0
    %5211 = vmatpush1.msra.mxu0 0.0
    %5212 = vmatprep.subr.mxu0 0.0
    %5213 = vmatpush1.msra.mxu0 0.0
    %5214 = vmatprep.subr.mxu0 0.0
    %5215 = vmatpush1.msra.mxu0 0.0
    %5216 = vmatprep.subr.mxu0 0.0
    %5217 = vmatpush1.msra.mxu0 0.0
    %5218 = vmatprep.subr.mxu0 0.0
    %5219 = vmatpush1.msra.mxu0 0.0
    %5220 = vmatprep.subr.mxu0 0.0
    %5221 = vmatpush1.msra.mxu0 0.0
    %5222 = vmatprep.subr.mxu0 0.0
    %5223 = vmatpush1.msra.mxu0 0.0
    %5224 = vmatprep.subr.mxu0 0.0
    %5225 = vmatpush1.msra.mxu0 0.0
    %5226 = vmatprep.subr.mxu0 0.0
    %5227 = vmatpush1.msra.mxu0 0.0
    %5228 = vmatprep.subr.mxu0 0.0
    %5229 = vmatpush1.msra.mxu0 0.0
    %5230 = vmatprep.subr.mxu0 0.0
    %5231 = vmatpush1.msra.mxu0 0.0
    %5232 = vmatprep.subr.mxu0 0.0
    %5233 = vmatpush1.msra.mxu0 0.0
    %5234 = vmatprep.subr.mxu0 0.0
    %5235 = vmatpush1.msra.mxu0 0.0
    %5236 = vmatprep.subr.mxu0 0.0
    %5237 = vmatpush1.msra.mxu0 0.0
    %5238 = vmatprep.subr.mxu0 0.0
    %v5239 = vand.u32 %v5006, 4294901760
    %v5240 = vsub.f32 %v5006, %v5239
    %5241 = vmatpush1.msra.mxu0 %v5240
    %5242 = vmatprep.subr.mxu0 0.0
    %5243 = vmatpush2.msra.mxu0 0.0
    %5244 = vmatprep.subr.mxu0 0.0
    %5245 = vmatpush2.msra.mxu0 0.0
    %5246 = vmatprep.subr.mxu0 0.0
    %5247 = vmatpush2.msra.mxu0 0.0
    %5248 = vmatprep.subr.mxu0 0.0
    %5249 = vmatpush2.msra.mxu0 0.0
    %5250 = vmatprep.subr.mxu0 0.0
    %5251 = vmatpush2.msra.mxu0 0.0
    %5252 = vmatprep.subr.mxu0 0.0
    %5253 = vmatpush2.msra.mxu0 0.0
    %5254 = vmatprep.subr.mxu0 0.0
    %5255 = vmatpush2.msra.mxu0 0.0
    %5256 = vmatprep.subr.mxu0 0.0
    %5257 = vmatpush2.msra.mxu0 0.0
    %5258 = vmatprep.subr.mxu0 0.0
    %5259 = vmatpush2.msra.mxu0 0.0
    %5260 = vmatprep.subr.mxu0 0.0
    %5261 = vmatpush2.msra.mxu0 0.0
    %5262 = vmatprep.subr.mxu0 0.0
    %5263 = vmatpush2.msra.mxu0 0.0
    %5264 = vmatprep.subr.mxu0 0.0
    %5265 = vmatpush2.msra.mxu0 0.0
    %5266 = vmatprep.subr.mxu0 0.0
    %5267 = vmatpush2.msra.mxu0 0.0
    %5268 = vmatprep.subr.mxu0 0.0
    %5269 = vmatpush2.msra.mxu0 0.0
    %5270 = vmatprep.subr.mxu0 0.0
    %5271 = vmatpush2.msra.mxu0 0.0
    %5272 = vmatprep.subr.mxu0 0.0
    %5273 = vmatpush2.msra.mxu0 0.0
    %5274 = vmatprep.mubr.f32.mxu0 0.0
    %v5275 = vand.u32 %v1901, 4294901760
    %v5276 = vsub.f32 %v1901, %v5275
    %5277 = vmatmul.mubr.f32.gmra.mxu0 %v5276
    %v5278 = vpop.f32.mrf.mxu0
    %v5279 = vadd.f32 %v5187, %v5278
    %v5280 = vpop.f32.mrf.mxu0
    %5281 = vmatprep.mubr.f32.mxu0 0.0
    %v5282 = vand.u32 %v1904, 4294901760
    %v5283 = vsub.f32 %v1904, %v5282
    %5284 = vmatmul.mubr.f32.gmra.mxu0 %v5283
    %v5285 = vpop.f32.mrf.mxu0
    %v5286 = vadd.f32 %v5193, %v5285
    %v5287 = vpop.f32.mrf.mxu0
    %5288 = vmatprep.mubr.f32.mxu0 0.0
    %v5289 = vand.u32 %v1907, 4294901760
    %v5290 = vsub.f32 %v1907, %v5289
    %5291 = vmatmul.mubr.f32.gmra.mxu0 %v5290
    %v5292 = vpop.f32.mrf.mxu0
    %v5293 = vadd.f32 %v5199, %v5292
    %v5294 = vpop.f32.mrf.mxu0
    %5295 = vmatprep.mubr.f32.mxu0 0.0
    %v5296 = vand.u32 %v1910, 4294901760
    %v5297 = vsub.f32 %v1910, %v5296
    %5298 = vmatmul.mubr.f32.gmra.mxu0 %v5297
    %v5299 = vpop.f32.mrf.mxu0
    %v5300 = vadd.f32 %v5205, %v5299
    %v5301 = vpop.f32.mrf.mxu0
    %5302 = vdwg.mxu0
    %5303 = vmatprep.subr.mxu0 0.0
    %5304 = vmatpush1.msra.mxu0 0.0
    %5305 = vmatprep.subr.mxu0 0.0
    %5306 = vmatpush1.msra.mxu0 0.0
    %5307 = vmatprep.subr.mxu0 0.0
    %5308 = vmatpush1.msra.mxu0 0.0
    %5309 = vmatprep.subr.mxu0 0.0
    %5310 = vmatpush1.msra.mxu0 0.0
    %5311 = vmatprep.subr.mxu0 0.0
    %5312 = vmatpush1.msra.mxu0 0.0
    %5313 = vmatprep.subr.mxu0 0.0
    %5314 = vmatpush1.msra.mxu0 0.0
    %5315 = vmatprep.subr.mxu0 0.0
    %5316 = vmatpush1.msra.mxu0 0.0
    %5317 = vmatprep.subr.mxu0 0.0
    %5318 = vmatpush1.msra.mxu0 0.0
    %5319 = vmatprep.subr.mxu0 0.0
    %5320 = vmatpush1.msra.mxu0 0.0
    %5321 = vmatprep.subr.mxu0 0.0
    %5322 = vmatpush1.msra.mxu0 0.0
    %5323 = vmatprep.subr.mxu0 0.0
    %5324 = vmatpush1.msra.mxu0 0.0
    %5325 = vmatprep.subr.mxu0 0.0
    %5326 = vmatpush1.msra.mxu0 0.0
    %5327 = vmatprep.subr.mxu0 0.0
    %5328 = vmatpush1.msra.mxu0 0.0
    %5329 = vmatprep.subr.mxu0 0.0
    %5330 = vmatpush1.msra.mxu0 0.0
    %5331 = vmatprep.subr.mxu0 0.0
    %5332 = vmatpush1.msra.mxu0 0.0
    %5333 = vmatprep.subr.mxu0 0.0
    %v5334 = vand.u32 %v5006, 4294901760
    %5335 = vmatpush1.msra.mxu0 %v5334
    %5336 = vmatprep.subr.mxu0 0.0
    %5337 = vmatpush2.msra.mxu0 0.0
    %5338 = vmatprep.subr.mxu0 0.0
    %5339 = vmatpush2.msra.mxu0 0.0
    %5340 = vmatprep.subr.mxu0 0.0
    %5341 = vmatpush2.msra.mxu0 0.0
    %5342 = vmatprep.subr.mxu0 0.0
    %5343 = vmatpush2.msra.mxu0 0.0
    %5344 = vmatprep.subr.mxu0 0.0
    %5345 = vmatpush2.msra.mxu0 0.0
    %5346 = vmatprep.subr.mxu0 0.0
    %5347 = vmatpush2.msra.mxu0 0.0
    %5348 = vmatprep.subr.mxu0 0.0
    %5349 = vmatpush2.msra.mxu0 0.0
    %5350 = vmatprep.subr.mxu0 0.0
    %5351 = vmatpush2.msra.mxu0 0.0
    %5352 = vmatprep.subr.mxu0 0.0
    %5353 = vmatpush2.msra.mxu0 0.0
    %5354 = vmatprep.subr.mxu0 0.0
    %5355 = vmatpush2.msra.mxu0 0.0
    %5356 = vmatprep.subr.mxu0 0.0
    %5357 = vmatpush2.msra.mxu0 0.0
    %5358 = vmatprep.subr.mxu0 0.0
    %5359 = vmatpush2.msra.mxu0 0.0
    %5360 = vmatprep.subr.mxu0 0.0
    %5361 = vmatpush2.msra.mxu0 0.0
    %5362 = vmatprep.subr.mxu0 0.0
    %5363 = vmatpush2.msra.mxu0 0.0
    %5364 = vmatprep.subr.mxu0 0.0
    %5365 = vmatpush2.msra.mxu0 0.0
    %5366 = vmatprep.subr.mxu0 0.0
    %5367 = vmatpush2.msra.mxu0 0.0
    %5368 = vmatprep.mubr.f32.mxu0 0.0
    %v5369 = vand.u32 %v1901, 4294901760
    %v5370 = vsub.f32 %v1901, %v5369
    %v5371 = vand.u32 %v5370, 4294901760
    %5372 = vmatmul.mubr.f32.gmra.mxu0 %v5371
    %v5373 = vpop.f32.mrf.mxu0
    %v5374 = vadd.f32 %v5279, %v5373
    %v5375 = vpop.f32.mrf.mxu0
    %5376 = vmatprep.mubr.f32.mxu0 0.0
    %v5377 = vand.u32 %v1904, 4294901760
    %v5378 = vsub.f32 %v1904, %v5377
    %v5379 = vand.u32 %v5378, 4294901760
    %5380 = vmatmul.mubr.f32.gmra.mxu0 %v5379
    %v5381 = vpop.f32.mrf.mxu0
    %v5382 = vadd.f32 %v5286, %v5381
    %v5383 = vpop.f32.mrf.mxu0
    %5384 = vmatprep.mubr.f32.mxu0 0.0
    %v5385 = vand.u32 %v1907, 4294901760
    %v5386 = vsub.f32 %v1907, %v5385
    %v5387 = vand.u32 %v5386, 4294901760
    %5388 = vmatmul.mubr.f32.gmra.mxu0 %v5387
    %v5389 = vpop.f32.mrf.mxu0
    %v5390 = vadd.f32 %v5293, %v5389
    %v5391 = vpop.f32.mrf.mxu0
    %5392 = vmatprep.mubr.f32.mxu0 0.0
    %v5393 = vand.u32 %v1910, 4294901760
    %v5394 = vsub.f32 %v1910, %v5393
    %v5395 = vand.u32 %v5394, 4294901760
    %5396 = vmatmul.mubr.f32.gmra.mxu0 %v5395
    %v5397 = vpop.f32.mrf.mxu0
    %v5398 = vadd.f32 %v5300, %v5397
    %v5399 = vpop.f32.mrf.mxu0
    %5400 = vdwg.mxu0
    %5401 = vmatprep.subr.mxu0 0.0
    %5402 = vmatpush1.msra.mxu0 0.0
    %5403 = vmatprep.subr.mxu0 0.0
    %5404 = vmatpush1.msra.mxu0 0.0
    %5405 = vmatprep.subr.mxu0 0.0
    %5406 = vmatpush1.msra.mxu0 0.0
    %5407 = vmatprep.subr.mxu0 0.0
    %5408 = vmatpush1.msra.mxu0 0.0
    %5409 = vmatprep.subr.mxu0 0.0
    %5410 = vmatpush1.msra.mxu0 0.0
    %5411 = vmatprep.subr.mxu0 0.0
    %5412 = vmatpush1.msra.mxu0 0.0
    %5413 = vmatprep.subr.mxu0 0.0
    %5414 = vmatpush1.msra.mxu0 0.0
    %5415 = vmatprep.subr.mxu0 0.0
    %5416 = vmatpush1.msra.mxu0 0.0
    %5417 = vmatprep.subr.mxu0 0.0
    %5418 = vmatpush1.msra.mxu0 0.0
    %5419 = vmatprep.subr.mxu0 0.0
    %5420 = vmatpush1.msra.mxu0 0.0
    %5421 = vmatprep.subr.mxu0 0.0
    %5422 = vmatpush1.msra.mxu0 0.0
    %5423 = vmatprep.subr.mxu0 0.0
    %5424 = vmatpush1.msra.mxu0 0.0
    %5425 = vmatprep.subr.mxu0 0.0
    %5426 = vmatpush1.msra.mxu0 0.0
    %5427 = vmatprep.subr.mxu0 0.0
    %5428 = vmatpush1.msra.mxu0 0.0
    %5429 = vmatprep.subr.mxu0 0.0
    %5430 = vmatpush1.msra.mxu0 0.0
    %5431 = vmatprep.subr.mxu0 0.0
    %v5432 = vand.u32 %v5006, 4294901760
    %v5433 = vsub.f32 %v5006, %v5432
    %v5434 = vand.u32 %v5433, 4294901760
    %5435 = vmatpush1.msra.mxu0 %v5434
    %5436 = vmatprep.subr.mxu0 0.0
    %5437 = vmatpush2.msra.mxu0 0.0
    %5438 = vmatprep.subr.mxu0 0.0
    %5439 = vmatpush2.msra.mxu0 0.0
    %5440 = vmatprep.subr.mxu0 0.0
    %5441 = vmatpush2.msra.mxu0 0.0
    %5442 = vmatprep.subr.mxu0 0.0
    %5443 = vmatpush2.msra.mxu0 0.0
    %5444 = vmatprep.subr.mxu0 0.0
    %5445 = vmatpush2.msra.mxu0 0.0
    %5446 = vmatprep.subr.mxu0 0.0
    %5447 = vmatpush2.msra.mxu0 0.0
    %5448 = vmatprep.subr.mxu0 0.0
    %5449 = vmatpush2.msra.mxu0 0.0
    %5450 = vmatprep.subr.mxu0 0.0
    %5451 = vmatpush2.msra.mxu0 0.0
    %5452 = vmatprep.subr.mxu0 0.0
    %5453 = vmatpush2.msra.mxu0 0.0
    %5454 = vmatprep.subr.mxu0 0.0
    %5455 = vmatpush2.msra.mxu0 0.0
    %5456 = vmatprep.subr.mxu0 0.0
    %5457 = vmatpush2.msra.mxu0 0.0
    %5458 = vmatprep.subr.mxu0 0.0
    %5459 = vmatpush2.msra.mxu0 0.0
    %5460 = vmatprep.subr.mxu0 0.0
    %5461 = vmatpush2.msra.mxu0 0.0
    %5462 = vmatprep.subr.mxu0 0.0
    %5463 = vmatpush2.msra.mxu0 0.0
    %5464 = vmatprep.subr.mxu0 0.0
    %5465 = vmatpush2.msra.mxu0 0.0
    %5466 = vmatprep.subr.mxu0 0.0
    %5467 = vmatpush2.msra.mxu0 0.0
    %5468 = vmatprep.mubr.f32.mxu0 0.0
    %v5469 = vand.u32 %v1901, 4294901760
    %5470 = vmatmul.mubr.f32.gmra.mxu0 %v5469
    %v5471 = vpop.f32.mrf.mxu0
    %v5472 = vadd.f32 %v5374, %v5471
    %v5473 = vpop.f32.mrf.mxu0
    %5474 = vmatprep.mubr.f32.mxu0 0.0
    %v5475 = vand.u32 %v1904, 4294901760
    %5476 = vmatmul.mubr.f32.gmra.mxu0 %v5475
    %v5477 = vpop.f32.mrf.mxu0
    %v5478 = vadd.f32 %v5382, %v5477
    %v5479 = vpop.f32.mrf.mxu0
    %5480 = vmatprep.mubr.f32.mxu0 0.0
    %v5481 = vand.u32 %v1907, 4294901760
    %5482 = vmatmul.mubr.f32.gmra.mxu0 %v5481
    %v5483 = vpop.f32.mrf.mxu0
    %v5484 = vadd.f32 %v5390, %v5483
    %v5485 = vpop.f32.mrf.mxu0
    %5486 = vmatprep.mubr.f32.mxu0 0.0
    %v5487 = vand.u32 %v1910, 4294901760
    %5488 = vmatmul.mubr.f32.gmra.mxu0 %v5487
    %v5489 = vpop.f32.mrf.mxu0
    %v5490 = vadd.f32 %v5398, %v5489
    %v5491 = vpop.f32.mrf.mxu0
    %5492 = vdwg.mxu0
    %5493 = vmatprep.subr.mxu0 0.0
    %5494 = vmatpush1.msra.mxu0 0.0
    %5495 = vmatprep.subr.mxu0 0.0
    %5496 = vmatpush1.msra.mxu0 0.0
    %5497 = vmatprep.subr.mxu0 0.0
    %5498 = vmatpush1.msra.mxu0 0.0
    %5499 = vmatprep.subr.mxu0 0.0
    %5500 = vmatpush1.msra.mxu0 0.0
    %5501 = vmatprep.subr.mxu0 0.0
    %5502 = vmatpush1.msra.mxu0 0.0
    %5503 = vmatprep.subr.mxu0 0.0
    %5504 = vmatpush1.msra.mxu0 0.0
    %5505 = vmatprep.subr.mxu0 0.0
    %5506 = vmatpush1.msra.mxu0 0.0
    %5507 = vmatprep.subr.mxu0 0.0
    %5508 = vmatpush1.msra.mxu0 0.0
    %5509 = vmatprep.subr.mxu0 0.0
    %5510 = vmatpush1.msra.mxu0 0.0
    %5511 = vmatprep.subr.mxu0 0.0
    %5512 = vmatpush1.msra.mxu0 0.0
    %5513 = vmatprep.subr.mxu0 0.0
    %5514 = vmatpush1.msra.mxu0 0.0
    %5515 = vmatprep.subr.mxu0 0.0
    %5516 = vmatpush1.msra.mxu0 0.0
    %5517 = vmatprep.subr.mxu0 0.0
    %5518 = vmatpush1.msra.mxu0 0.0
    %5519 = vmatprep.subr.mxu0 0.0
    %5520 = vmatpush1.msra.mxu0 0.0
    %5521 = vmatprep.subr.mxu0 0.0
    %5522 = vmatpush1.msra.mxu0 0.0
    %5523 = vmatprep.subr.mxu0 0.0
    %v5524 = vand.u32 %v5006, 4294901760
    %5525 = vmatpush1.msra.mxu0 %v5524
    %5526 = vmatprep.subr.mxu0 0.0
    %5527 = vmatpush2.msra.mxu0 0.0
    %5528 = vmatprep.subr.mxu0 0.0
    %5529 = vmatpush2.msra.mxu0 0.0
    %5530 = vmatprep.subr.mxu0 0.0
    %5531 = vmatpush2.msra.mxu0 0.0
    %5532 = vmatprep.subr.mxu0 0.0
    %5533 = vmatpush2.msra.mxu0 0.0
    %5534 = vmatprep.subr.mxu0 0.0
    %5535 = vmatpush2.msra.mxu0 0.0
    %5536 = vmatprep.subr.mxu0 0.0
    %5537 = vmatpush2.msra.mxu0 0.0
    %5538 = vmatprep.subr.mxu0 0.0
    %5539 = vmatpush2.msra.mxu0 0.0
    %5540 = vmatprep.subr.mxu0 0.0
    %5541 = vmatpush2.msra.mxu0 0.0
    %5542 = vmatprep.subr.mxu0 0.0
    %5543 = vmatpush2.msra.mxu0 0.0
    %5544 = vmatprep.subr.mxu0 0.0
    %5545 = vmatpush2.msra.mxu0 0.0
    %5546 = vmatprep.subr.mxu0 0.0
    %5547 = vmatpush2.msra.mxu0 0.0
    %5548 = vmatprep.subr.mxu0 0.0
    %5549 = vmatpush2.msra.mxu0 0.0
    %5550 = vmatprep.subr.mxu0 0.0
    %5551 = vmatpush2.msra.mxu0 0.0
    %5552 = vmatprep.subr.mxu0 0.0
    %5553 = vmatpush2.msra.mxu0 0.0
    %5554 = vmatprep.subr.mxu0 0.0
    %5555 = vmatpush2.msra.mxu0 0.0
    %5556 = vmatprep.subr.mxu0 0.0
    %5557 = vmatpush2.msra.mxu0 0.0
    %5558 = vmatprep.mubr.f32.mxu0 0.0
    %v5559 = vand.u32 %v1901, 4294901760
    %5560 = vmatmul.mubr.f32.gmra.mxu0 %v5559
    %v5561 = vpop.f32.mrf.mxu0
    %v5562 = vadd.f32 %v5472, %v5561
    %v5563 = vpop.f32.mrf.mxu0
    %5564 = vmatprep.mubr.f32.mxu0 0.0
    %v5565 = vand.u32 %v1904, 4294901760
    %5566 = vmatmul.mubr.f32.gmra.mxu0 %v5565
    %v5567 = vpop.f32.mrf.mxu0
    %v5568 = vadd.f32 %v5478, %v5567
    %v5569 = vpop.f32.mrf.mxu0
    %5570 = vmatprep.mubr.f32.mxu0 0.0
    %v5571 = vand.u32 %v1907, 4294901760
    %5572 = vmatmul.mubr.f32.gmra.mxu0 %v5571
    %v5573 = vpop.f32.mrf.mxu0
    %v5574 = vadd.f32 %v5484, %v5573
    %v5575 = vpop.f32.mrf.mxu0
    %5576 = vmatprep.mubr.f32.mxu0 0.0
    %v5577 = vand.u32 %v1910, 4294901760
    %5578 = vmatmul.mubr.f32.gmra.mxu0 %v5577
    %v5579 = vpop.f32.mrf.mxu0
    %v5580 = vadd.f32 %v5490, %v5579
    %v5581 = vpop.f32.mrf.mxu0
    %5582 = vdwg.mxu0
    %v5583 = vmul.f32 %v5562, 2.0
    %v5584 = vmul.f32 %v5568, 2.0
    %v5585 = vmul.f32 %v5574, 2.0
    %v5586 = vmul.f32 %v5580, 2.0
    %v5587 = vmul.f32 %v5583, 3.218876
    %v5588 = vmul.f32 %v5584, 3.218876
    %v5589 = vmul.f32 %v5585, 3.218876
    %v5590 = vmul.f32 %v5586, 3.218876
    %v5591 = vmul.f32 %v5587, 1.442695
    %v5592 = vpow.pop %v5591
    %v5593 = vmul.f32 %v5588, 1.442695
    %v5594 = vpow.pop %v5593
    %v5595 = vmul.f32 %v5589, 1.442695
    %v5596 = vpow.pop %v5595
    %v5597 = vmul.f32 %v5590, 1.442695
    %v5598 = vpow.pop %v5597
    %v5599 = vsub.f32 %v5592, 1.0
    %v5600 = vsub.f32 %v5594, 1.0
    %v5601 = vsub.f32 %v5596, 1.0
    %v5602 = vsub.f32 %v5598, 1.0
    %v5603 = vrcp.pop 6.437752
    %v5604 = vmul.f32 %v5599, %v5603
    %v5605 = vmul.f32 %v5600, %v5603
    %v5606 = vmul.f32 %v5601, %v5603
    %v5607 = vmul.f32 %v5602, %v5603
    %v5608 = vrsqrt.pop %v5604
    %v5609 = vmul.f32 %v5604, %v5608
    %vm5610 = vcmp.eq.f32.partialorder %v5604, inf
    %v5611 = vsel %vm5610, %v5604, %v5609
    %vm5612 = vcmp.eq.f32.partialorder %v5604, 0.0
    %v5613 = vand.u32 %v5604, 2147483648
    %v5614 = vsel %vm5612, %v5613, %v5611
    %v5615 = vrsqrt.pop %v5605
    %v5616 = vmul.f32 %v5605, %v5615
    %vm5617 = vcmp.eq.f32.partialorder %v5605, inf
    %v5618 = vsel %vm5617, %v5605, %v5616
    %vm5619 = vcmp.eq.f32.partialorder %v5605, 0.0
    %v5620 = vand.u32 %v5605, 2147483648
    %v5621 = vsel %vm5619, %v5620, %v5618
    %v5622 = vrsqrt.pop %v5606
    %v5623 = vmul.f32 %v5606, %v5622
    %vm5624 = vcmp.eq.f32.partialorder %v5606, inf
    %v5625 = vsel %vm5624, %v5606, %v5623
    %vm5626 = vcmp.eq.f32.partialorder %v5606, 0.0
    %v5627 = vand.u32 %v5606, 2147483648
    %v5628 = vsel %vm5626, %v5627, %v5625
    %v5629 = vrsqrt.pop %v5607
    %v5630 = vmul.f32 %v5607, %v5629
    %vm5631 = vcmp.eq.f32.partialorder %v5607, inf
    %v5632 = vsel %vm5631, %v5607, %v5630
    %vm5633 = vcmp.eq.f32.partialorder %v5607, 0.0
    %v5634 = vand.u32 %v5607, 2147483648
    %v5635 = vsel %vm5633, %v5634, %v5632
    %v5636 = vadd.f32 %v5614, 1e-07
    %v5637 = vadd.f32 %v5621, 1e-07
    %v5638 = vadd.f32 %v5628, 1e-07
    %v5639 = vadd.f32 %v5635, 1e-07
    %v5640 = vrcp.pop %v5636
    %v5641 = vmul.f32 1.0, %v5640
    %v5642 = vrcp.pop %v5637
    %v5643 = vmul.f32 1.0, %v5642
    %v5644 = vrcp.pop %v5638
    %v5645 = vmul.f32 1.0, %v5644
    %v5646 = vrcp.pop %v5639
    %v5647 = vmul.f32 1.0, %v5646
    %vm5648 = vcmask 7168
    %5649 = vst.msk [vmem:[%s16] sm:$0xff] %vm5648, %v5641
    %5650 = vst.msk [vmem:[%s16 + $0x8] sm:$0xff] %vm5648, %v5643
    %5651 = vst.msk [vmem:[%s16 + $0x10] sm:$0xff] %vm5648, %v5645
    %5652 = vst.msk [vmem:[%s16 + $0x18] sm:$0xff] %vm5648, %v5647
    // Predicated region
    $region82: #{tpu_custom_call.1} parent=1 // pred_check
      _
    $region83: #{tpu_custom_call.1} parent=1 // pred_check_branch
      %5654 = sbr.rel (0) target = $region85
    $region84: #{tpu_custom_call.1} parent=1 // pred_region
      %s5656 = ssub.s32 512, 512
      %5657 = vsyncadd [#allocation4], %s5656
      %s5658 = sshll.u32 [#allocation13], 4
      %s5659 = int_to_ptr.vmem [resolvable:$true] %s5658
      %5664 = dma.vmem_to_hbm [thread:$0]  %s5659, 512, %s14, [#allocation4], 128, 128, 8
    $region85: #{tpu_custom_call.1} parent=1 // pred_fallthru
      _
    // Predicated region
    $region86: #{tpu_custom_call.1} parent=1 // pred_check
      _
    $region87: #{tpu_custom_call.1} parent=1 // pred_check_branch
      %5666 = sbr.rel (0) target = $region89
    $region88: #{tpu_custom_call.1} parent=1 // pred_region
      %s5668 = ssub.s32 512, 512
      %5669 = vsyncadd [#allocation15], %s5668
      %s5670 = sshll.u32 [#allocation14], 4
      %s5671 = int_to_ptr.vmem [resolvable:$true] %s5670
      %5676 = dma.vmem_to_hbm [thread:$0]  %s5671, 512, %s15, [#allocation15], 128, 128, 8
    $region89: #{tpu_custom_call.1} parent=1 // pred_fallthru
      _
    // Predicated region
    $region90: #{tpu_custom_call.1} parent=1 // pred_check
      _
    $region91: #{tpu_custom_call.1} parent=1 // pred_check_branch
      %5678 = sbr.rel (0) target = $region93
    $region92: #{tpu_custom_call.1} parent=1 // pred_region
      _
    $region93: #{tpu_custom_call.1} parent=1 // pred_fallthru
      _
    // Predicated region
    $region94: #{tpu_custom_call.1} parent=1 // pred_check
      _
    $region95: #{tpu_custom_call.1} parent=1 // pred_check_branch
      %5680 = sbr.rel (0) target = $region97
    $region96: #{tpu_custom_call.1} parent=1 // pred_region
      %5681 = dma.done [#allocation4], 512
    $region97: #{tpu_custom_call.1} parent=1 // pred_fallthru
      _
    // Predicated region
    $region98: #{tpu_custom_call.1} parent=1 // pred_check
      _
    $region99: #{tpu_custom_call.1} parent=1 // pred_check_branch
      %5683 = sbr.rel (0) target = $region101
    $region100: #{tpu_custom_call.1} parent=1 // pred_region
      %5684 = dma.done [#allocation15], 512
    $region101: #{tpu_custom_call.1} parent=1 // pred_fallthru
      _
    // Predicated region
    $region102: #{tpu_custom_call.1} parent=1 // pred_check
      _
    $region103: #{tpu_custom_call.1} parent=1 // pred_check_branch
      %5686 = sbr.rel (0) target = $region105
    $region104: #{tpu_custom_call.1} parent=1 // pred_region
      _
    $region105: #{tpu_custom_call.1} parent=1 // pred_fallthru
      _
    %5687 = vsyncpa [#allocation3], 1
    %5688 = vsyncpa [#allocation6], 1
    %5689 = vsyncpa [#allocation9], 1
    %5690 = vsyncpa [#allocation12], 1
    %5691 = vsyncpa [#allocation4], 1
    %5692 = vsyncpa [#allocation15], 1

</llo_original>
